<compile_context>
chip_gen: v6e
topology: v6e:2x2x1
jax: 0.10.0
libtpu: 0.0.40
codegen_flags: <defaults>
</compile_context>

<pallas_src>
import jax
import jax.numpy as jnp
from jax import lax
from jax.experimental import pallas as pl
from jax.experimental.pallas import tpu as pltpu

LANE = 128


def _round_up(n, m):
    return (n + m - 1) // m * m


def _conv3x3_one_matmul(x_f32, w_bf16_2d):
    """3x3 VALID conv over the full width as a single big-K MXU matmul.

    x_f32:      (H, W, C) float32 with W % 8 == 0 and C % 128 == 0.
    w_bf16_2d:  (9*C, Cout) bf16, K ordered (kh, kw, c) i.e. HWIO.reshape(-1, Cout).
    Returns ((Ho*W, Cout) float32, Ho). Output columns >= W-2 are junk (caller drops them).
    """
    H, W, C = x_f32.shape
    Ho = H - 2
    # One zero row so every tap slice below stays in-bounds.
    xpad = jnp.concatenate([x_f32, jnp.zeros((1, W, C), jnp.float32)], axis=0)
    xflat = xpad.reshape((H + 1) * W, C)            # pure view: W is sublane-aligned
    taps = [
        lax.slice_in_dim(xflat, kh * W + kw, kh * W + kw + Ho * W, axis=0)
        for kh in range(3) for kw in range(3)
    ]
    # Lane-aligned concat (C is a multiple of 128) -> (Ho*W, 9*C); single cast for the MXU.
    patches = jnp.concatenate(taps, axis=-1).astype(jnp.bfloat16)
    acc = jnp.dot(patches, w_bf16_2d, preferred_element_type=jnp.float32)
    return acc, Ho


def fused_double_block_kernel(x_ref, w1_ref, s1_ref, b1_ref,
                              w2_ref, s2_ref, b2_ref, o_ref):
    # x_ref:      (1, H, W, Cin) bf16      one image (NHWC)
    # w{1,2}_ref: (9*Cpad, Cout) bf16      im2col-folded conv weights (VMEM-resident)
    # s*/b*_ref:  (1, Cout) f32            folded BatchNorm(eval) affine
    # o_ref:      (1, Ho2, Wo2, C2) f32
    _, H, W, Cin = x_ref.shape
    K1, C1 = w1_ref.shape
    _, C2 = w2_ref.shape
    _, _, Wo2, _ = o_ref.shape

    cin_pad = K1 // 9
    x = x_ref[0].astype(jnp.float32)
    if cin_pad > Cin:   # pad channels so lane tiles are dense (zeros match zero weight rows)
        x = jnp.concatenate(
            [x, jnp.zeros((H, W, cin_pad - Cin), jnp.float32)], axis=-1)

    # ---- stage 1: conv + BN + ReLU; intermediate stays on-chip ----
    acc1, Ho1 = _conv3x3_one_matmul(x, w1_ref[...])
    y1 = jnp.maximum(acc1 * s1_ref[0] + b1_ref[0], 0.0)        # f32 epilogue, broadcast once
    y1 = y1.reshape(Ho1, W, C1)                                 # full width, junk cols kept

    # ---- stage 2: conv + BN + ReLU (+ outer F.relu, a no-op, kept for fidelity) ----
    acc2, Ho2 = _conv3x3_one_matmul(y1, w2_ref[...])
    y2 = jnp.maximum(acc2 * s2_ref[0] + b2_ref[0], 0.0)
    y2 = jnp.maximum(y2, 0.0)
    y2 = y2.reshape(Ho2, W, C2)[:, :Wo2, :]                     # drop junk columns once
    o_ref[0] = y2.astype(o_ref.dtype)


def _pack_conv_weight(w_hwio, cin_pad):
    kh, kw, cin, cout = w_hwio.shape
    if cin_pad > cin:
        w_hwio = jnp.pad(w_hwio, ((0, 0), (0, 0), (0, cin_pad - cin), (0, 0)))
    return w_hwio.reshape(kh * kw * cin_pad, cout).astype(jnp.bfloat16)


def prepare_kernel_params(params):
    """One-time (non-hot-path) packing of ((w_hwio, scale, shift), ...) for the kernel."""
    (w1, s1, b1), (w2, s2, b2) = params
    cin1, c1 = w1.shape[2], w1.shape[3]
    return (
        _pack_conv_weight(w1, _round_up(cin1, LANE)), s1.reshape(1, -1), b1.reshape(1, -1),
        _pack_conv_weight(w2, _round_up(c1, LANE)), s2.reshape(1, -1), b2.reshape(1, -1),
    )


def branch2_forward(x_nhwc, kparams):
    """x_nhwc: (N, H, W, Cin) f32 — NHWC end-to-end (layout permute done once at model ingestion)."""
    w1_2d, s1, b1, w2_2d, s2, b2 = kparams
    N, H, W, Cin = x_nhwc.shape
    C1, C2 = w1_2d.shape[1], w2_2d.shape[1]
    assert W % 8 == 0, "kernel assumes a sublane-aligned width"
    Ho2, Wo2 = H - 4, W - 4

    x_bf = x_nhwc.astype(jnp.bfloat16)   # bf16 at the boundary: MXU-native, half the DMA bytes

    return pl.pallas_call(
        fused_double_block_kernel,
        out_shape=jax.ShapeDtypeStruct((N, Ho2, Wo2, C2), jnp.float32),
        grid=(N,),
        in_specs=[
            pl.BlockSpec((1, H, W, Cin), lambda n: (n, 0, 0, 0)),
            # constant index_map => weights DMA'd once and stay resident across grid steps
            pl.BlockSpec(w1_2d.shape, lambda n: (0, 0)),
            pl.BlockSpec((1, C1), lambda n: (0, 0)),
            pl.BlockSpec((1, C1), lambda n: (0, 0)),
            pl.BlockSpec(w2_2d.shape, lambda n: (0, 0)),
            pl.BlockSpec((1, C2), lambda n: (0, 0)),
            pl.BlockSpec((1, C2), lambda n: (0, 0)),
        ],
        out_specs=pl.BlockSpec((1, Ho2, Wo2, C2), lambda n: (n, 0, 0, 0)),
        compiler_params=pltpu.CompilerParams(
            # N parallel grid steps -> both v7x TensorCores get an image each
            dimension_semantics=("parallel",)),
    )(x_bf, w1_2d, s1, b1, w2_2d, s2, b2)


def make_block_params(key, cin, cout, k=3, eps=1e-5):
    """Deterministic Conv2d + BatchNorm2d (eval) params, BN folded into scale/shift."""
    k_w, k_b, k_g, k_be, k_m, k_v = jax.random.split(key, 6)
    w_oihw = jax.random.normal(k_w, (cout, cin, k, k), jnp.float32) * 0.05
    conv_b = jax.random.normal(k_b, (cout,), jnp.float32) * 0.05
    gamma = 1.0 + 0.1 * jax.random.normal(k_g, (cout,), jnp.float32)
    beta = 0.1 * jax.random.normal(k_be, (cout,), jnp.float32)
    running_mean = 0.1 * jax.random.normal(k_m, (cout,), jnp.float32)
    running_var = 1.0 + 0.1 * jax.random.uniform(k_v, (cout,), jnp.float32)
    # y = gamma * (conv(x) + b - mean) / sqrt(var + eps) + beta
    scale = gamma / jnp.sqrt(running_var + eps)
    shift = beta + scale * (conv_b - running_mean)
    w_hwio = jnp.transpose(w_oihw, (2, 3, 1, 0))   # OIHW -> HWIO
    return w_hwio, scale, shift


def branch2_reference(x_nhwc, params):
    """Same numerics as the kernel: bf16 matmul inputs, f32 accumulation and epilogue."""
    dn = ("NHWC", "HWIO", "NHWC")
    y = x_nhwc.astype(jnp.bfloat16)
    n = len(params)
    for i, (w, s, b) in enumerate(params):
        y = lax.conv_general_dilated(y, w.astype(jnp.bfloat16), (1, 1), "VALID",
                                     dimension_numbers=dn,
                                     preferred_element_type=jnp.float32)
        y = jnp.maximum(y * s + b, 0.0)
        if i + 1 < n:
            y = y.astype(jnp.bfloat16)
    return jnp.maximum(y, 0.0)


if __name__ == "__main__":
    key = jax.random.PRNGKey(0)
    k_x, k_p1, k_p2 = jax.random.split(key, 3)

    # Per module spec: 64 input channels, batch=2, spatial=16. Activations are kept NHWC
    # end-to-end (the PyTorch NCHW layout permute belongs outside the hot path).
    x = jax.random.normal(k_x, (2, 16, 16, 64), jnp.float32)

    params = (make_block_params(k_p1, 64, 128),
              make_block_params(k_p2, 128, 128))
    kparams = prepare_kernel_params(params)   # one-time weight packing, not in the hot path

    out = branch2_forward(x, kparams)
    out = jax.block_until_ready(out)

    ref = branch2_reference(x, params)
    assert out.shape == (2, 12, 12, 128), out.shape
    max_err = float(jnp.max(jnp.abs(out - ref)))
    assert jnp.allclose(out, ref, atol=2e-2, rtol=2e-2), max_err

    print("KERNEL_OK")
</pallas_src>

<mosaic_0001>
module attributes {stable_mosaic.version = 11 : i64} {
  func.func @fused_double_block_kernel(%arg0: i32, %arg1: memref<1x16x16x64xbf16, #tpu.memory_space<vmem>>, %arg2: memref<1152x128xbf16, #tpu.memory_space<vmem>>, %arg3: memref<1x128xf32, #tpu.memory_space<vmem>>, %arg4: memref<1x128xf32, #tpu.memory_space<vmem>>, %arg5: memref<1152x128xbf16, #tpu.memory_space<vmem>>, %arg6: memref<1x128xf32, #tpu.memory_space<vmem>>, %arg7: memref<1x128xf32, #tpu.memory_space<vmem>>, %arg8: memref<1x12x12x128xf32, #tpu.memory_space<vmem>>) attributes {dimension_semantics = [#tpu.dimension_semantics<parallel>], iteration_bounds = array<i64: 2>, scalar_prefetch = 0 : i64, scratch_operands = 0 : i64, tpu.core_type = #tpu.core_type<tc>, window_params = [{transform_indices = @transform_0, window_bounds = array<i64: 1, 16, 16, 64>}, {pipeline_mode = #tpu.pipeline_mode<synchronous>, transform_indices = @transform_1, window_bounds = array<i64: 1152, 128>}, {pipeline_mode = #tpu.pipeline_mode<synchronous>, transform_indices = @transform_2, window_bounds = array<i64: 1, 128>}, {pipeline_mode = #tpu.pipeline_mode<synchronous>, transform_indices = @transform_3, window_bounds = array<i64: 1, 128>}, {pipeline_mode = #tpu.pipeline_mode<synchronous>, transform_indices = @transform_4, window_bounds = array<i64: 1152, 128>}, {pipeline_mode = #tpu.pipeline_mode<synchronous>, transform_indices = @transform_5, window_bounds = array<i64: 1, 128>}, {pipeline_mode = #tpu.pipeline_mode<synchronous>, transform_indices = @transform_6, window_bounds = array<i64: 1, 128>}, {transform_indices = @transform_7, window_bounds = array<i64: 1, 12, 12, 128>}]} {
    %c0 = arith.constant 0 : index
    %c0_0 = arith.constant 0 : index
    %c0_1 = arith.constant 0 : index
    %c0_2 = arith.constant 0 : index
    %0 = vector.load %arg1[%c0, %c0_0, %c0_1, %c0_2] : memref<1x16x16x64xbf16, #tpu.memory_space<vmem>>, vector<1x16x16x64xbf16>
    %1 = vector.shape_cast %0 : vector<1x16x16x64xbf16> to vector<16x16x64xbf16>
    %2 = arith.extf %1 : vector<16x16x64xbf16> to vector<16x16x64xf32>
    %cst = arith.constant 0.000000e+00 : f32
    %3 = vector.broadcast %cst : f32 to vector<16x16x64xf32>
    %4 = tpu.concatenate %2, %3 in 2 : vector<16x16x64xf32>, vector<16x16x64xf32> -> vector<16x16x128xf32>
    %c0_3 = arith.constant 0 : index
    %c0_4 = arith.constant 0 : index
    %5 = vector.load %arg2[%c0_3, %c0_4] : memref<1152x128xbf16, #tpu.memory_space<vmem>>, vector<1152x128xbf16>
    %cst_5 = arith.constant 0.000000e+00 : f32
    %6 = vector.broadcast %cst_5 : f32 to vector<1x16x128xf32>
    %7 = tpu.concatenate %4, %6 in 0 : vector<16x16x128xf32>, vector<1x16x128xf32> -> vector<17x16x128xf32>
    %8 = vector.shape_cast %7 : vector<17x16x128xf32> to vector<272x128xf32>
    %9 = vector.extract_strided_slice %8 {offsets = [0, 0], sizes = [224, 128], strides = [1, 1]} : vector<272x128xf32> to vector<224x128xf32>
    %10 = vector.extract_strided_slice %8 {offsets = [1, 0], sizes = [224, 128], strides = [1, 1]} : vector<272x128xf32> to vector<224x128xf32>
    %11 = vector.extract_strided_slice %8 {offsets = [2, 0], sizes = [224, 128], strides = [1, 1]} : vector<272x128xf32> to vector<224x128xf32>
    %12 = vector.extract_strided_slice %8 {offsets = [16, 0], sizes = [224, 128], strides = [1, 1]} : vector<272x128xf32> to vector<224x128xf32>
    %13 = vector.extract_strided_slice %8 {offsets = [17, 0], sizes = [224, 128], strides = [1, 1]} : vector<272x128xf32> to vector<224x128xf32>
    %14 = vector.extract_strided_slice %8 {offsets = [18, 0], sizes = [224, 128], strides = [1, 1]} : vector<272x128xf32> to vector<224x128xf32>
    %15 = vector.extract_strided_slice %8 {offsets = [32, 0], sizes = [224, 128], strides = [1, 1]} : vector<272x128xf32> to vector<224x128xf32>
    %16 = vector.extract_strided_slice %8 {offsets = [33, 0], sizes = [224, 128], strides = [1, 1]} : vector<272x128xf32> to vector<224x128xf32>
    %17 = vector.extract_strided_slice %8 {offsets = [34, 0], sizes = [224, 128], strides = [1, 1]} : vector<272x128xf32> to vector<224x128xf32>
    %18 = tpu.concatenate %9, %10, %11, %12, %13, %14, %15, %16, %17 in 1 : vector<224x128xf32>, vector<224x128xf32>, vector<224x128xf32>, vector<224x128xf32>, vector<224x128xf32>, vector<224x128xf32>, vector<224x128xf32>, vector<224x128xf32>, vector<224x128xf32> -> vector<224x1152xf32>
    %19 = arith.truncf %18 : vector<224x1152xf32> to vector<224x1152xbf16>
    %cst_6 = arith.constant dense<0.000000e+00> : vector<224x128xf32>
    %20 = tpu.matmul %19, %5, %cst_6 {dimension_numbers = #tpu.dot_dimension_numbers<[1], [0], [0], [1], [0, 0, 1, 1], [], []>} : vector<224x1152xbf16>, vector<1152x128xbf16>, vector<224x128xf32> -> vector<224x128xf32>
    %c0_7 = arith.constant 0 : index
    %c0_8 = arith.constant 0 : index
    %21 = vector.load %arg3[%c0_7, %c0_8] : memref<1x128xf32, #tpu.memory_space<vmem>>, vector<1x128xf32>
    %22 = vector.shape_cast %21 : vector<1x128xf32> to vector<128xf32>
    %23 = vector.shape_cast %22 : vector<128xf32> to vector<1x128xf32>
    %24 = vector.broadcast %23 : vector<1x128xf32> to vector<224x128xf32>
    %25 = arith.mulf %20, %24 : vector<224x128xf32>
    %c0_9 = arith.constant 0 : index
    %c0_10 = arith.constant 0 : index
    %26 = vector.load %arg4[%c0_9, %c0_10] : memref<1x128xf32, #tpu.memory_space<vmem>>, vector<1x128xf32>
    %27 = vector.shape_cast %26 : vector<1x128xf32> to vector<128xf32>
    %28 = vector.shape_cast %27 : vector<128xf32> to vector<1x128xf32>
    %29 = vector.broadcast %28 : vector<1x128xf32> to vector<224x128xf32>
    %30 = arith.addf %25, %29 : vector<224x128xf32>
    %cst_11 = arith.constant 0.000000e+00 : f32
    %31 = vector.broadcast %cst_11 : f32 to vector<224x128xf32>
    %32 = arith.maximumf %30, %31 : vector<224x128xf32>
    %33 = vector.shape_cast %32 : vector<224x128xf32> to vector<14x16x128xf32>
    %c0_12 = arith.constant 0 : index
    %c0_13 = arith.constant 0 : index
    %34 = vector.load %arg5[%c0_12, %c0_13] : memref<1152x128xbf16, #tpu.memory_space<vmem>>, vector<1152x128xbf16>
    %cst_14 = arith.constant 0.000000e+00 : f32
    %35 = vector.broadcast %cst_14 : f32 to vector<1x16x128xf32>
    %36 = tpu.concatenate %33, %35 in 0 : vector<14x16x128xf32>, vector<1x16x128xf32> -> vector<15x16x128xf32>
    %37 = vector.shape_cast %36 : vector<15x16x128xf32> to vector<240x128xf32>
    %38 = vector.extract_strided_slice %37 {offsets = [0, 0], sizes = [192, 128], strides = [1, 1]} : vector<240x128xf32> to vector<192x128xf32>
    %39 = vector.extract_strided_slice %37 {offsets = [1, 0], sizes = [192, 128], strides = [1, 1]} : vector<240x128xf32> to vector<192x128xf32>
    %40 = vector.extract_strided_slice %37 {offsets = [2, 0], sizes = [192, 128], strides = [1, 1]} : vector<240x128xf32> to vector<192x128xf32>
    %41 = vector.extract_strided_slice %37 {offsets = [16, 0], sizes = [192, 128], strides = [1, 1]} : vector<240x128xf32> to vector<192x128xf32>
    %42 = vector.extract_strided_slice %37 {offsets = [17, 0], sizes = [192, 128], strides = [1, 1]} : vector<240x128xf32> to vector<192x128xf32>
    %43 = vector.extract_strided_slice %37 {offsets = [18, 0], sizes = [192, 128], strides = [1, 1]} : vector<240x128xf32> to vector<192x128xf32>
    %44 = vector.extract_strided_slice %37 {offsets = [32, 0], sizes = [192, 128], strides = [1, 1]} : vector<240x128xf32> to vector<192x128xf32>
    %45 = vector.extract_strided_slice %37 {offsets = [33, 0], sizes = [192, 128], strides = [1, 1]} : vector<240x128xf32> to vector<192x128xf32>
    %46 = vector.extract_strided_slice %37 {offsets = [34, 0], sizes = [192, 128], strides = [1, 1]} : vector<240x128xf32> to vector<192x128xf32>
    %47 = tpu.concatenate %38, %39, %40, %41, %42, %43, %44, %45, %46 in 1 : vector<192x128xf32>, vector<192x128xf32>, vector<192x128xf32>, vector<192x128xf32>, vector<192x128xf32>, vector<192x128xf32>, vector<192x128xf32>, vector<192x128xf32>, vector<192x128xf32> -> vector<192x1152xf32>
    %48 = arith.truncf %47 : vector<192x1152xf32> to vector<192x1152xbf16>
    %cst_15 = arith.constant dense<0.000000e+00> : vector<192x128xf32>
    %49 = tpu.matmul %48, %34, %cst_15 {dimension_numbers = #tpu.dot_dimension_numbers<[1], [0], [0], [1], [0, 0, 1, 1], [], []>} : vector<192x1152xbf16>, vector<1152x128xbf16>, vector<192x128xf32> -> vector<192x128xf32>
    %c0_16 = arith.constant 0 : index
    %c0_17 = arith.constant 0 : index
    %50 = vector.load %arg6[%c0_16, %c0_17] : memref<1x128xf32, #tpu.memory_space<vmem>>, vector<1x128xf32>
    %51 = vector.shape_cast %50 : vector<1x128xf32> to vector<128xf32>
    %52 = vector.shape_cast %51 : vector<128xf32> to vector<1x128xf32>
    %53 = vector.broadcast %52 : vector<1x128xf32> to vector<192x128xf32>
    %54 = arith.mulf %49, %53 : vector<192x128xf32>
    %c0_18 = arith.constant 0 : index
    %c0_19 = arith.constant 0 : index
    %55 = vector.load %arg7[%c0_18, %c0_19] : memref<1x128xf32, #tpu.memory_space<vmem>>, vector<1x128xf32>
    %56 = vector.shape_cast %55 : vector<1x128xf32> to vector<128xf32>
    %57 = vector.shape_cast %56 : vector<128xf32> to vector<1x128xf32>
    %58 = vector.broadcast %57 : vector<1x128xf32> to vector<192x128xf32>
    %59 = arith.addf %54, %58 : vector<192x128xf32>
    %cst_20 = arith.constant 0.000000e+00 : f32
    %60 = vector.broadcast %cst_20 : f32 to vector<192x128xf32>
    %61 = arith.maximumf %59, %60 : vector<192x128xf32>
    %cst_21 = arith.constant 0.000000e+00 : f32
    %62 = vector.broadcast %cst_21 : f32 to vector<192x128xf32>
    %63 = arith.maximumf %61, %62 : vector<192x128xf32>
    %64 = vector.shape_cast %63 : vector<192x128xf32> to vector<12x16x128xf32>
    %65 = vector.extract_strided_slice %64 {offsets = [0, 0, 0], sizes = [12, 12, 128], strides = [1, 1, 1]} : vector<12x16x128xf32> to vector<12x12x128xf32>
    %c0_22 = arith.constant 0 : index
    %c0_23 = arith.constant 0 : index
    %c0_24 = arith.constant 0 : index
    %c0_25 = arith.constant 0 : index
    %66 = vector.load %arg8[%c0_22, %c0_23, %c0_24, %c0_25] : memref<1x12x12x128xf32, #tpu.memory_space<vmem>>, vector<1x12x12x128xf32>
    %67 = vector.shape_cast %66 : vector<1x12x12x128xf32> to vector<12x12x128xf32>
    %68 = vector.shape_cast %65 : vector<12x12x128xf32> to vector<1x12x12x128xf32>
    tpu.vector_store %arg8[%c0_22, %c0_23, %c0_24, %c0_25], %68 {strides = array<i32>} : memref<1x12x12x128xf32, #tpu.memory_space<vmem>>, vector<1x12x12x128xf32>,
    return
  }
  func.func @transform_0(%arg0: i32) -> (i32, i32, i32, i32) {
    %c0_i32 = arith.constant 0 : i32
    %c0_i32_0 = arith.constant 0 : i32
    %c0_i32_1 = arith.constant 0 : i32
    %c0_i32_2 = arith.constant 0 : i32
    return %arg0, %c0_i32, %c0_i32_0, %c0_i32_1 : i32, i32, i32, i32
  }
  func.func @transform_1(%arg0: i32) -> (i32, i32) {
    %c0_i32 = arith.constant 0 : i32
    %c0_i32_0 = arith.constant 0 : i32
    %c0_i32_1 = arith.constant 0 : i32
    return %c0_i32, %c0_i32_0 : i32, i32
  }
  func.func @transform_2(%arg0: i32) -> (i32, i32) {
    %c0_i32 = arith.constant 0 : i32
    %c0_i32_0 = arith.constant 0 : i32
    %c0_i32_1 = arith.constant 0 : i32
    return %c0_i32, %c0_i32_0 : i32, i32
  }
  func.func @transform_3(%arg0: i32) -> (i32, i32) {
    %c0_i32 = arith.constant 0 : i32
    %c0_i32_0 = arith.constant 0 : i32
    %c0_i32_1 = arith.constant 0 : i32
    return %c0_i32, %c0_i32_0 : i32, i32
  }
  func.func @transform_4(%arg0: i32) -> (i32, i32) {
    %c0_i32 = arith.constant 0 : i32
    %c0_i32_0 = arith.constant 0 : i32
    %c0_i32_1 = arith.constant 0 : i32
    return %c0_i32, %c0_i32_0 : i32, i32
  }
  func.func @transform_5(%arg0: i32) -> (i32, i32) {
    %c0_i32 = arith.constant 0 : i32
    %c0_i32_0 = arith.constant 0 : i32
    %c0_i32_1 = arith.constant 0 : i32
    return %c0_i32, %c0_i32_0 : i32, i32
  }
  func.func @transform_6(%arg0: i32) -> (i32, i32) {
    %c0_i32 = arith.constant 0 : i32
    %c0_i32_0 = arith.constant 0 : i32
    %c0_i32_1 = arith.constant 0 : i32
    return %c0_i32, %c0_i32_0 : i32, i32
  }
  func.func @transform_7(%arg0: i32) -> (i32, i32, i32, i32) {
    %c0_i32 = arith.constant 0 : i32
    %c0_i32_0 = arith.constant 0 : i32
    %c0_i32_1 = arith.constant 0 : i32
    %c0_i32_2 = arith.constant 0 : i32
    return %arg0, %c0_i32, %c0_i32_0, %c0_i32_1 : i32, i32, i32, i32
  }
}

</mosaic_0001>

<llo_original>
// kernel: tpu_custom_call.1
$region0: #{tpu_custom_call.1}
  #allocation0 [shape = 'u32[]', space=smem, size = 0x4, offset = 0x4, fixed_abs, tag = 'smem constant byte address 0x4 - core index']
  #allocation1 [shape = 'u32[144,128]{1,0:T(1,128)}', space=vmem, size = 0x12000, scoped, tag = 'internal scratch']
  %s0 = inlined_call_operand.hbm [shape: bf16[2,16,16,64], index: 0, kind: input, shape index: {}]
  %s1 = inlined_call_operand.hbm [shape: bf16[1152,128], index: 1, kind: input, shape index: {}]
  %s2 = inlined_call_operand.vmem [shape: f32[1,128], index: 2, kind: input, shape index: {}]
  %s3 = inlined_call_operand.vmem [shape: f32[1,128], index: 3, kind: input, shape index: {}]
  %s4 = inlined_call_operand.hbm [shape: bf16[1152,128], index: 4, kind: input, shape index: {}]
  %s5 = inlined_call_operand.vmem [shape: f32[1,128], index: 5, kind: input, shape index: {}]
  %s6 = inlined_call_operand.vmem [shape: f32[1,128], index: 6, kind: input, shape index: {}]
  %s7 = inlined_call_operand.vmem [shape: f32[2,12,12,128], index: 7, kind: output, shape index: {}]
  %s8 = sld [smem:[#allocation0]]
  $region73: #{tpu_custom_call.1} parent=0
    _
  %s10 = ssub.s32 1, %s8
  %s11 = scalar_select 0, %s10, %s8
  $region1: #{tpu_custom_call.1} parent=0
    #allocation2 [shape = 'u8[131072]{0}', space=vmem, size = 0x20000, scoped, tag = 'input window, operand 0']
    #allocation3 [shape = 's32[2]{0}', space=sflag, size = 0x8, scoped, tag = 'scoped memory for tpu_custom_call.1']
    #allocation4 [shape = 'u8[294912]{0}', space=vmem, size = 0x48000, scoped, tag = 'input window, operand 1, single buffered']
    #allocation5 [shape = 's32[1]{0}', space=sflag, size = 0x4, scoped, tag = 'scoped memory for tpu_custom_call.1']
    #allocation6 [shape = 'u8[294912]{0}', space=vmem, size = 0x48000, scoped, tag = 'input window, operand 4, single buffered']
    %12 = vsyncpa [#allocation3], 0
    %s13 = scalar_lea.sflag [#allocation3], 1
    %14 = vsyncpa %s13, 0
    %15 = vsyncpa [#allocation5], 0
    loop: start=0, step=1, limit=4
    $region2: #{tpu_custom_call.1} parent=1 // loop_pre_header
      _
    $region3: #{tpu_custom_call.1} parent=1 // loop_header
      %s17 = sphi 0, %s21
      %p18 = scmp.ge.s32.totalorder %s17, 4
      %s27 = sphi 0, %s29
      %s30 = sphi 0, %s27
      %s31 = sphi 0, %s30
      %s47 = sphi 0, %s31
      %s51 = sphi 0, %s51
      %s53 = sphi 0, %s51
      %s54 = sphi 0, %s53
      %s68 = sphi 0, %s54
      %s72 = sphi 0, %s72
      %s74 = sphi 0, %s72
      %s75 = sphi 0, %s74
      %s89 = sphi 0, %s75
      %s93 = sphi 0, %s93
      %s95 = sphi 0, %s93
      %s96 = sphi 0, %s95
      %s110 = sphi 0, %s96
      %s114 = sphi 0, %s114
      %s116 = sphi 0, %s114
      %s117 = sphi 0, %s116
      %s131 = sphi 0, %s117
      %s135 = sphi 0, %s135
      %s137 = sphi 0, %s135
      %s138 = sphi 0, %s137
      %s152 = sphi 0, %s138
      %s156 = sphi 0, %s156
      %s158 = sphi 0, %s156
      %s159 = sphi 0, %s158
      %s173 = sphi 0, %s159
      %s179 = sphi 0, %s181
      %s182 = sphi 0, %s179
      %s183 = sphi 0, %s182
      %s199 = sphi 0, %s183
    $region4: #{tpu_custom_call.1} parent=1 // loop_header_branch
      %20 = sbr.rel (%p18) target = $region8
    $region5: #{tpu_custom_call.1} parent=1 // loop_body
      %s22 = ssub.s32 %s17, 1
      %s23 = ssub.s32 %s17, 2
      %s24 = sadd.s32 %s17, 1
      %s25 = ssub.s32 %s17, %s24
      %p26 = scmp.eq.s32.totalorder %s25, 0
      %s28 = sadd.s32 %s27, 1
      %s29 = scalar_select %p26, %s27, %s28
      %p32 = pneg %p26
      %p33 = scmp.eq.s32.totalorder %s17, 1
      %p34 = por %p32, %p33
      %p35 = scmp.ne.s32.totalorder %s27, %s30
      %p36 = scmp.eq.s32.totalorder %s17, 0
      %p37 = por %p35, %p36
      %p38 = scmp.ne.s32.totalorder %s27, %s30
      %p39 = scmp.eq.s32.totalorder %s22, 1
      %p40 = por %p38, %p39
      %p41 = scmp.ne.s32.totalorder %s30, %s31
      %p42 = scmp.eq.s32.totalorder %s22, 0
      %p43 = por %p41, %p42
      %p44 = scmp.ne.s32.totalorder %s30, %s31
      %p45 = scmp.eq.s32.totalorder %s23, 1
      %p46 = por %p44, %p45
      %p48 = scmp.ne.s32.totalorder %s31, %s47
      %p49 = scmp.eq.s32.totalorder %s23, 0
      %p50 = por %p48, %p49
      %s52 = sadd.s32 %s51, 1
      %p55 = scmp.eq.s32.totalorder %s17, 1
      %p56 = scmp.ne.s32.totalorder %s51, %s53
      %p57 = scmp.eq.s32.totalorder %s17, 0
      %p58 = por %p56, %p57
      %p59 = scmp.ne.s32.totalorder %s51, %s53
      %p60 = scmp.eq.s32.totalorder %s22, 1
      %p61 = por %p59, %p60
      %p62 = scmp.ne.s32.totalorder %s53, %s54
      %p63 = scmp.eq.s32.totalorder %s22, 0
      %p64 = por %p62, %p63
      %p65 = scmp.ne.s32.totalorder %s53, %s54
      %p66 = scmp.eq.s32.totalorder %s23, 1
      %p67 = por %p65, %p66
      %p69 = scmp.ne.s32.totalorder %s54, %s68
      %p70 = scmp.eq.s32.totalorder %s23, 0
      %p71 = por %p69, %p70
      %s73 = sadd.s32 %s72, 1
      %p76 = scmp.eq.s32.totalorder %s17, 1
      %p77 = scmp.ne.s32.totalorder %s72, %s74
      %p78 = scmp.eq.s32.totalorder %s17, 0
      %p79 = por %p77, %p78
      %p80 = scmp.ne.s32.totalorder %s72, %s74
      %p81 = scmp.eq.s32.totalorder %s22, 1
      %p82 = por %p80, %p81
      %p83 = scmp.ne.s32.totalorder %s74, %s75
      %p84 = scmp.eq.s32.totalorder %s22, 0
      %p85 = por %p83, %p84
      %p86 = scmp.ne.s32.totalorder %s74, %s75
      %p87 = scmp.eq.s32.totalorder %s23, 1
      %p88 = por %p86, %p87
      %p90 = scmp.ne.s32.totalorder %s75, %s89
      %p91 = scmp.eq.s32.totalorder %s23, 0
      %p92 = por %p90, %p91
      %s94 = sadd.s32 %s93, 1
      %p97 = scmp.eq.s32.totalorder %s17, 1
      %p98 = scmp.ne.s32.totalorder %s93, %s95
      %p99 = scmp.eq.s32.totalorder %s17, 0
      %p100 = por %p98, %p99
      %p101 = scmp.ne.s32.totalorder %s93, %s95
      %p102 = scmp.eq.s32.totalorder %s22, 1
      %p103 = por %p101, %p102
      %p104 = scmp.ne.s32.totalorder %s95, %s96
      %p105 = scmp.eq.s32.totalorder %s22, 0
      %p106 = por %p104, %p105
      %p107 = scmp.ne.s32.totalorder %s95, %s96
      %p108 = scmp.eq.s32.totalorder %s23, 1
      %p109 = por %p107, %p108
      %p111 = scmp.ne.s32.totalorder %s96, %s110
      %p112 = scmp.eq.s32.totalorder %s23, 0
      %p113 = por %p111, %p112
      %s115 = sadd.s32 %s114, 1
      %p118 = scmp.eq.s32.totalorder %s17, 1
      %p119 = scmp.ne.s32.totalorder %s114, %s116
      %p120 = scmp.eq.s32.totalorder %s17, 0
      %p121 = por %p119, %p120
      %p122 = scmp.ne.s32.totalorder %s114, %s116
      %p123 = scmp.eq.s32.totalorder %s22, 1
      %p124 = por %p122, %p123
      %p125 = scmp.ne.s32.totalorder %s116, %s117
      %p126 = scmp.eq.s32.totalorder %s22, 0
      %p127 = por %p125, %p126
      %p128 = scmp.ne.s32.totalorder %s116, %s117
      %p129 = scmp.eq.s32.totalorder %s23, 1
      %p130 = por %p128, %p129
      %p132 = scmp.ne.s32.totalorder %s117, %s131
      %p133 = scmp.eq.s32.totalorder %s23, 0
      %p134 = por %p132, %p133
      %s136 = sadd.s32 %s135, 1
      %p139 = scmp.eq.s32.totalorder %s17, 1
      %p140 = scmp.ne.s32.totalorder %s135, %s137
      %p141 = scmp.eq.s32.totalorder %s17, 0
      %p142 = por %p140, %p141
      %p143 = scmp.ne.s32.totalorder %s135, %s137
      %p144 = scmp.eq.s32.totalorder %s22, 1
      %p145 = por %p143, %p144
      %p146 = scmp.ne.s32.totalorder %s137, %s138
      %p147 = scmp.eq.s32.totalorder %s22, 0
      %p148 = por %p146, %p147
      %p149 = scmp.ne.s32.totalorder %s137, %s138
      %p150 = scmp.eq.s32.totalorder %s23, 1
      %p151 = por %p149, %p150
      %p153 = scmp.ne.s32.totalorder %s138, %s152
      %p154 = scmp.eq.s32.totalorder %s23, 0
      %p155 = por %p153, %p154
      %s157 = sadd.s32 %s156, 1
      %p160 = scmp.eq.s32.totalorder %s17, 1
      %p161 = scmp.ne.s32.totalorder %s156, %s158
      %p162 = scmp.eq.s32.totalorder %s17, 0
      %p163 = por %p161, %p162
      %p164 = scmp.ne.s32.totalorder %s156, %s158
      %p165 = scmp.eq.s32.totalorder %s22, 1
      %p166 = por %p164, %p165
      %p167 = scmp.ne.s32.totalorder %s158, %s159
      %p168 = scmp.eq.s32.totalorder %s22, 0
      %p169 = por %p167, %p168
      %p170 = scmp.ne.s32.totalorder %s158, %s159
      %p171 = scmp.eq.s32.totalorder %s23, 1
      %p172 = por %p170, %p171
      %p174 = scmp.ne.s32.totalorder %s159, %s173
      %p175 = scmp.eq.s32.totalorder %s23, 0
      %p176 = por %p174, %p175
      %s177 = ssub.s32 %s17, %s24
      %p178 = scmp.eq.s32.totalorder %s177, 0
      %s180 = sadd.s32 %s179, 1
      %s181 = scalar_select %p178, %s179, %s180
      %p184 = pneg %p178
      %p185 = scmp.eq.s32.totalorder %s17, 1
      %p186 = por %p184, %p185
      %p187 = scmp.ne.s32.totalorder %s179, %s182
      %p188 = scmp.eq.s32.totalorder %s17, 0
      %p189 = por %p187, %p188
      %p190 = scmp.ne.s32.totalorder %s179, %s182
      %p191 = scmp.eq.s32.totalorder %s22, 1
      %p192 = por %p190, %p191
      %p193 = scmp.ne.s32.totalorder %s182, %s183
      %p194 = scmp.eq.s32.totalorder %s22, 0
      %p195 = por %p193, %p194
      %p196 = scmp.ne.s32.totalorder %s182, %s183
      %p197 = scmp.eq.s32.totalorder %s23, 1
      %p198 = por %p196, %p197
      %p200 = scmp.ne.s32.totalorder %s183, %s199
      %p201 = scmp.eq.s32.totalorder %s23, 0
      %p202 = por %p200, %p201
      %p203 = scmp.le.s32.totalorder 1, %s17
      %p204 = scmp.lt.s32.totalorder %s17, 3
      %p205 = pnand %p203, %p204
      %p206 = pneg %p205
      // Predicated region
      $region9: #{tpu_custom_call.1} parent=5 // pred_check
        _
      $region10: #{tpu_custom_call.1} parent=5 // pred_check_branch
        %208 = sbr.rel (%p205) target = $region12
      $region11: #{tpu_custom_call.1} parent=5 // pred_region
        %s209 = ssub.s32 %s17, 1
        // Predicated region
        $region13: #{tpu_custom_call.1} parent=11 // pred_check
          %p210 = pneg %p64
        $region14: #{tpu_custom_call.1} parent=11 // pred_check_branch
          %212 = sbr.rel (%p210) target = $region16
        $region15: #{tpu_custom_call.1} parent=11 // pred_region
          %s214 = ssub.s32 9216, 9216
          %215 = vsyncadd [#allocation5], %s214
          %s216 = sshll.u32 [#allocation4], 4
          %s217 = int_to_ptr.vmem [resolvable:$true] %s216
          %222 = dma.hbm_to_vmem [thread:$0]  %s1, 9216, %s217, [#allocation5], 64, 64, 4
        $region16: #{tpu_custom_call.1} parent=11 // pred_fallthru
          _
        // Predicated region
        $region17: #{tpu_custom_call.1} parent=11 // pred_check
          %p223 = pneg %p85
        $region18: #{tpu_custom_call.1} parent=11 // pred_check_branch
          %225 = sbr.rel (%p223) target = $region20
        $region19: #{tpu_custom_call.1} parent=11 // pred_region
          _
        $region20: #{tpu_custom_call.1} parent=11 // pred_fallthru
          _
        // Predicated region
        $region21: #{tpu_custom_call.1} parent=11 // pred_check
          %p226 = pneg %p106
        $region22: #{tpu_custom_call.1} parent=11 // pred_check_branch
          %228 = sbr.rel (%p226) target = $region24
        $region23: #{tpu_custom_call.1} parent=11 // pred_region
          _
        $region24: #{tpu_custom_call.1} parent=11 // pred_fallthru
          _
        // Predicated region
        $region25: #{tpu_custom_call.1} parent=11 // pred_check
          %p229 = pneg %p127
        $region26: #{tpu_custom_call.1} parent=11 // pred_check_branch
          %231 = sbr.rel (%p229) target = $region28
        $region27: #{tpu_custom_call.1} parent=11 // pred_region
          %s233 = ssub.s32 9216, 9216
          %234 = vsyncadd [#allocation5], %s233
          %s235 = sshll.u32 [#allocation6], 4
          %s236 = int_to_ptr.vmem [resolvable:$true] %s235
          %241 = dma.hbm_to_vmem [thread:$0]  %s4, 9216, %s236, [#allocation5], 64, 64, 4
        $region28: #{tpu_custom_call.1} parent=11 // pred_fallthru
          _
        // Predicated region
        $region29: #{tpu_custom_call.1} parent=11 // pred_check
          %p242 = pneg %p148
        $region30: #{tpu_custom_call.1} parent=11 // pred_check_branch
          %244 = sbr.rel (%p242) target = $region32
        $region31: #{tpu_custom_call.1} parent=11 // pred_region
          _
        $region32: #{tpu_custom_call.1} parent=11 // pred_fallthru
          _
        // Predicated region
        $region33: #{tpu_custom_call.1} parent=11 // pred_check
          %p245 = pneg %p169
        $region34: #{tpu_custom_call.1} parent=11 // pred_check_branch
          %247 = sbr.rel (%p245) target = $region36
        $region35: #{tpu_custom_call.1} parent=11 // pred_region
          _
        $region36: #{tpu_custom_call.1} parent=11 // pred_fallthru
          _
      $region12: #{tpu_custom_call.1} parent=5 // pred_fallthru
        _
      %p248 = scmp.lt.s32.totalorder %s17, 2
      // Predicated region
      $region37: #{tpu_custom_call.1} parent=5 // pred_check
        %p249 = pneg %p248
      $region38: #{tpu_custom_call.1} parent=5 // pred_check_branch
        %251 = sbr.rel (%p249) target = $region40
      $region39: #{tpu_custom_call.1} parent=5 // pred_region
        // Predicated region
        $region41: #{tpu_custom_call.1} parent=39 // pred_check
          %p252 = pneg %p37
        $region42: #{tpu_custom_call.1} parent=39 // pred_check_branch
          %254 = sbr.rel (%p252) target = $region44
        $region43: #{tpu_custom_call.1} parent=39 // pred_region
          %s255 = sand.u32 %s27, 1
          %s256 = scalar_lea.sflag [#allocation3], %s255
          %s257 = sand.u32 %s27, 1
          %s258 = smul.addr %s257, 128
          %s259 = scalar_lea.vmem [#allocation2], %s258
          %s261 = ssub.s32 2048, 2048
          %262 = vsyncadd %s256, %s261
          %s263 = smul.addr %s17, 32
          %s264 = smul.addr %s263, 64
          %s265 = scalar_lea.hbm %s0, %s264
          %s266 = sshll.u32 %s259, 4
          %s267 = int_to_ptr.vmem [resolvable:$true] %s266
          %272 = dma.hbm_to_vmem [thread:$0]  %s265, 2048, %s267, %s256, 64, 64, 4
        $region44: #{tpu_custom_call.1} parent=39 // pred_fallthru
          _
      $region40: #{tpu_custom_call.1} parent=5 // pred_fallthru
        _
      %p273 = scmp.le.s32.totalorder 1, %s17
      %p274 = scmp.lt.s32.totalorder %s17, 3
      %p275 = pnand %p273, %p274
      %p276 = pneg %p275
      // Predicated region
      $region45: #{tpu_custom_call.1} parent=5 // pred_check
        _
      $region46: #{tpu_custom_call.1} parent=5 // pred_check_branch
        %278 = sbr.rel (%p275) target = $region48
      $region47: #{tpu_custom_call.1} parent=5 // pred_region
        %s279 = ssub.s32 %s17, 1
        %s280 = sand.u32 %s30, 1
        %s281 = scalar_lea.sflag [#allocation3], %s280
        %s282 = sand.u32 %s30, 1
        %s283 = smul.addr %s282, 128
        %s284 = scalar_lea.vmem [#allocation2], %s283
        // Predicated region
        $region49: #{tpu_custom_call.1} parent=47 // pred_check
          %p285 = pneg %p43
        $region50: #{tpu_custom_call.1} parent=47 // pred_check_branch
          %287 = sbr.rel (%p285) target = $region52
        $region51: #{tpu_custom_call.1} parent=47 // pred_region
          %288 = dma.done %s281, 2048
        $region52: #{tpu_custom_call.1} parent=47 // pred_fallthru
          _
        // Predicated region
        $region53: #{tpu_custom_call.1} parent=47 // pred_check
          %p289 = pneg %p64
        $region54: #{tpu_custom_call.1} parent=47 // pred_check_branch
          %291 = sbr.rel (%p289) target = $region56
        $region55: #{tpu_custom_call.1} parent=47 // pred_region
          %292 = dma.done [#allocation5], 9216
        $region56: #{tpu_custom_call.1} parent=47 // pred_fallthru
          _
        // Predicated region
        $region57: #{tpu_custom_call.1} parent=47 // pred_check
          %p293 = pneg %p127
        $region58: #{tpu_custom_call.1} parent=47 // pred_check_branch
          %295 = sbr.rel (%p293) target = $region60
        $region59: #{tpu_custom_call.1} parent=47 // pred_region
          %296 = dma.done [#allocation5], 9216
        $region60: #{tpu_custom_call.1} parent=47 // pred_fallthru
          _
        %s297 = sand.u32 %s30, 1
        %s298 = scalar_lea.sflag [#allocation3], %s297
        %s299 = sand.u32 %s30, 1
        %s300 = smul.addr %s299, 128
        %s301 = scalar_lea.vmem [#allocation2], %s300
        %p302 = pneg %p43
        %p303 = pneg %p40
        %p304 = pneg %p64
        %p305 = pneg %p61
        %p306 = pneg %p85
        %p307 = pneg %p82
        %p308 = pneg %p106
        %p309 = pneg %p103
        %p310 = pneg %p127
        %p311 = pneg %p124
        %p312 = pneg %p148
        %p313 = pneg %p145
        %p314 = pneg %p169
        %p315 = pneg %p166
        %p316 = pneg %p195
        %p317 = pneg %p192
        %p318 = scmp.lt.s32.totalorder %s22, 1
        %s319 = scalar_select %p318, %s22, 1
        %s320 = smul.addr %s319, 24
        %s321 = smul.addr %s320, 8
        %s322 = scalar_lea.vmem %s7, %s321
        %p323 = scmp.lt.s32.totalorder %s22, 1
        %s324 = scalar_select %p323, %s22, 1
        %s325 = smul.addr %s324, 24
        %s326 = smul.addr %s325, 8
        %s327 = scalar_lea.vmem %s7, %s326
        %v329 = vld [vmem:[%s284] sm:$0xf]
        %v330 = vld [vmem:[%s284 + $0x4] sm:$0xf]
        %v331 = vld [vmem:[%s284 + $0x8] sm:$0xf]
        %v332 = vld [vmem:[%s284 + $0xc] sm:$0xf]
        %v333 = vld [vmem:[%s284 + $0x10] sm:$0xf]
        %v334 = vld [vmem:[%s284 + $0x14] sm:$0xf]
        %v335 = vld [vmem:[%s284 + $0x18] sm:$0xf]
        %v336 = vld [vmem:[%s284 + $0x1c] sm:$0xf]
        %v337 = vld [vmem:[%s284 + $0x20] sm:$0xf]
        %v338 = vld [vmem:[%s284 + $0x24] sm:$0xf]
        %v339 = vld [vmem:[%s284 + $0x28] sm:$0xf]
        %v340 = vld [vmem:[%s284 + $0x2c] sm:$0xf]
        %v341 = vld [vmem:[%s284 + $0x30] sm:$0xf]
        %v342 = vld [vmem:[%s284 + $0x34] sm:$0xf]
        %v343 = vld [vmem:[%s284 + $0x38] sm:$0xf]
        %v344 = vld [vmem:[%s284 + $0x3c] sm:$0xf]
        %v345 = vld [vmem:[%s284 + $0x40] sm:$0xf]
        %v346 = vld [vmem:[%s284 + $0x44] sm:$0xf]
        %v347 = vld [vmem:[%s284 + $0x48] sm:$0xf]
        %v348 = vld [vmem:[%s284 + $0x4c] sm:$0xf]
        %v349 = vld [vmem:[%s284 + $0x50] sm:$0xf]
        %v350 = vld [vmem:[%s284 + $0x54] sm:$0xf]
        %v351 = vld [vmem:[%s284 + $0x58] sm:$0xf]
        %v352 = vld [vmem:[%s284 + $0x5c] sm:$0xf]
        %v353 = vld [vmem:[%s284 + $0x60] sm:$0xf]
        %v354 = vld [vmem:[%s284 + $0x64] sm:$0xf]
        %v355 = vld [vmem:[%s284 + $0x68] sm:$0xf]
        %v356 = vld [vmem:[%s284 + $0x6c] sm:$0xf]
        %v357 = vld [vmem:[%s284 + $0x70] sm:$0xf]
        %v358 = vld [vmem:[%s284 + $0x74] sm:$0xf]
        %v359 = vld [vmem:[%s284 + $0x78] sm:$0xf]
        %v360 = vld [vmem:[%s284 + $0x7c] sm:$0xf]
        %v361 = vunpack.c.l.bf16 %v329
        %v362 = vunpack.c.l.bf16 %v330
        %v363 = vunpack.c.l.bf16 %v331
        %v364 = vunpack.c.l.bf16 %v332
        %v365 = vunpack.c.l.bf16 %v333
        %v366 = vunpack.c.l.bf16 %v334
        %v367 = vunpack.c.l.bf16 %v335
        %v368 = vunpack.c.l.bf16 %v336
        %v369 = vunpack.c.l.bf16 %v337
        %v370 = vunpack.c.l.bf16 %v338
        %v371 = vunpack.c.l.bf16 %v339
        %v372 = vunpack.c.l.bf16 %v340
        %v373 = vunpack.c.l.bf16 %v341
        %v374 = vunpack.c.l.bf16 %v342
        %v375 = vunpack.c.l.bf16 %v343
        %v376 = vunpack.c.l.bf16 %v344
        %v377 = vunpack.c.l.bf16 %v345
        %v378 = vunpack.c.l.bf16 %v346
        %v379 = vunpack.c.l.bf16 %v347
        %v380 = vunpack.c.l.bf16 %v348
        %v381 = vunpack.c.l.bf16 %v349
        %v382 = vunpack.c.l.bf16 %v350
        %v383 = vunpack.c.l.bf16 %v351
        %v384 = vunpack.c.l.bf16 %v352
        %v385 = vunpack.c.l.bf16 %v353
        %v386 = vunpack.c.l.bf16 %v354
        %v387 = vunpack.c.l.bf16 %v355
        %v388 = vunpack.c.l.bf16 %v356
        %v389 = vunpack.c.l.bf16 %v357
        %v390 = vunpack.c.l.bf16 %v358
        %v391 = vunpack.c.l.bf16 %v359
        %v392 = vunpack.c.l.bf16 %v360
        %vm393 = vcmask 523264
        %v394 = vsel %vm393, %v361, 0.0
        %v395 = vsel %vm393, %v362, 0.0
        %v396 = vsel %vm393, %v363, 0.0
        %v397 = vsel %vm393, %v364, 0.0
        %v398 = vsel %vm393, %v365, 0.0
        %v399 = vsel %vm393, %v366, 0.0
        %v400 = vsel %vm393, %v367, 0.0
        %v401 = vsel %vm393, %v368, 0.0
        %v402 = vsel %vm393, %v369, 0.0
        %v403 = vsel %vm393, %v370, 0.0
        %v404 = vsel %vm393, %v371, 0.0
        %v405 = vsel %vm393, %v372, 0.0
        %v406 = vsel %vm393, %v373, 0.0
        %v407 = vsel %vm393, %v374, 0.0
        %v408 = vsel %vm393, %v375, 0.0
        %v409 = vsel %vm393, %v376, 0.0
        %v410 = vsel %vm393, %v377, 0.0
        %v411 = vsel %vm393, %v378, 0.0
        %v412 = vsel %vm393, %v379, 0.0
        %v413 = vsel %vm393, %v380, 0.0
        %v414 = vsel %vm393, %v381, 0.0
        %v415 = vsel %vm393, %v382, 0.0
        %v416 = vsel %vm393, %v383, 0.0
        %v417 = vsel %vm393, %v384, 0.0
        %v418 = vsel %vm393, %v385, 0.0
        %v419 = vsel %vm393, %v386, 0.0
        %v420 = vsel %vm393, %v387, 0.0
        %v421 = vsel %vm393, %v388, 0.0
        %v422 = vsel %vm393, %v389, 0.0
        %v423 = vsel %vm393, %v390, 0.0
        %v424 = vsel %vm393, %v391, 0.0
        %v425 = vsel %vm393, %v392, 0.0
        %v426 = vld [vmem:[#allocation4] sm:$0xf]
        %v427 = vld [vmem:[#allocation4 + $0x4] sm:$0xf]
        %v428 = vld [vmem:[#allocation4 + $0x8] sm:$0xf]
        %v429 = vld [vmem:[#allocation4 + $0xc] sm:$0xf]
        %v430 = vld [vmem:[#allocation4 + $0x10] sm:$0xf]
        %v431 = vld [vmem:[#allocation4 + $0x14] sm:$0xf]
        %v432 = vld [vmem:[#allocation4 + $0x18] sm:$0xf]
        %v433 = vld [vmem:[#allocation4 + $0x1c] sm:$0xf]
        %v434 = vld [vmem:[#allocation4 + $0x20] sm:$0xf]
        %v435 = vld [vmem:[#allocation4 + $0x24] sm:$0xf]
        %v436 = vld [vmem:[#allocation4 + $0x28] sm:$0xf]
        %v437 = vld [vmem:[#allocation4 + $0x2c] sm:$0xf]
        %v438 = vld [vmem:[#allocation4 + $0x30] sm:$0xf]
        %v439 = vld [vmem:[#allocation4 + $0x34] sm:$0xf]
        %v440 = vld [vmem:[#allocation4 + $0x38] sm:$0xf]
        %v441 = vld [vmem:[#allocation4 + $0x3c] sm:$0xf]
        %v442 = vld [vmem:[#allocation4 + $0x40] sm:$0xf]
        %v443 = vld [vmem:[#allocation4 + $0x44] sm:$0xf]
        %v444 = vld [vmem:[#allocation4 + $0x48] sm:$0xf]
        %v445 = vld [vmem:[#allocation4 + $0x4c] sm:$0xf]
        %v446 = vld [vmem:[#allocation4 + $0x50] sm:$0xf]
        %v447 = vld [vmem:[#allocation4 + $0x54] sm:$0xf]
        %v448 = vld [vmem:[#allocation4 + $0x58] sm:$0xf]
        %v449 = vld [vmem:[#allocation4 + $0x5c] sm:$0xf]
        %v450 = vld [vmem:[#allocation4 + $0x60] sm:$0xf]
        %v451 = vld [vmem:[#allocation4 + $0x64] sm:$0xf]
        %v452 = vld [vmem:[#allocation4 + $0x68] sm:$0xf]
        %v453 = vld [vmem:[#allocation4 + $0x6c] sm:$0xf]
        %v454 = vld [vmem:[#allocation4 + $0x70] sm:$0xf]
        %v455 = vld [vmem:[#allocation4 + $0x74] sm:$0xf]
        %v456 = vld [vmem:[#allocation4 + $0x78] sm:$0xf]
        %v457 = vld [vmem:[#allocation4 + $0x7c] sm:$0xf]
        %v458 = vld [vmem:[#allocation4 + $0x80] sm:$0xf]
        %v459 = vld [vmem:[#allocation4 + $0x84] sm:$0xf]
        %v460 = vld [vmem:[#allocation4 + $0x88] sm:$0xf]
        %v461 = vld [vmem:[#allocation4 + $0x8c] sm:$0xf]
        %v462 = vld [vmem:[#allocation4 + $0x90] sm:$0xf]
        %v463 = vld [vmem:[#allocation4 + $0x94] sm:$0xf]
        %v464 = vld [vmem:[#allocation4 + $0x98] sm:$0xf]
        %v465 = vld [vmem:[#allocation4 + $0x9c] sm:$0xf]
        %v466 = vld [vmem:[#allocation4 + $0xa0] sm:$0xf]
        %v467 = vld [vmem:[#allocation4 + $0xa4] sm:$0xf]
        %v468 = vld [vmem:[#allocation4 + $0xa8] sm:$0xf]
        %v469 = vld [vmem:[#allocation4 + $0xac] sm:$0xf]
        %v470 = vld [vmem:[#allocation4 + $0xb0] sm:$0xf]
        %v471 = vld [vmem:[#allocation4 + $0xb4] sm:$0xf]
        %v472 = vld [vmem:[#allocation4 + $0xb8] sm:$0xf]
        %v473 = vld [vmem:[#allocation4 + $0xbc] sm:$0xf]
        %v474 = vld [vmem:[#allocation4 + $0xc0] sm:$0xf]
        %v475 = vld [vmem:[#allocation4 + $0xc4] sm:$0xf]
        %v476 = vld [vmem:[#allocation4 + $0xc8] sm:$0xf]
        %v477 = vld [vmem:[#allocation4 + $0xcc] sm:$0xf]
        %v478 = vld [vmem:[#allocation4 + $0xd0] sm:$0xf]
        %v479 = vld [vmem:[#allocation4 + $0xd4] sm:$0xf]
        %v480 = vld [vmem:[#allocation4 + $0xd8] sm:$0xf]
        %v481 = vld [vmem:[#allocation4 + $0xdc] sm:$0xf]
        %v482 = vld [vmem:[#allocation4 + $0xe0] sm:$0xf]
        %v483 = vld [vmem:[#allocation4 + $0xe4] sm:$0xf]
        %v484 = vld [vmem:[#allocation4 + $0xe8] sm:$0xf]
        %v485 = vld [vmem:[#allocation4 + $0xec] sm:$0xf]
        %v486 = vld [vmem:[#allocation4 + $0xf0] sm:$0xf]
        %v487 = vld [vmem:[#allocation4 + $0xf4] sm:$0xf]
        %v488 = vld [vmem:[#allocation4 + $0xf8] sm:$0xf]
        %v489 = vld [vmem:[#allocation4 + $0xfc] sm:$0xf]
        %v490 = vld [vmem:[#allocation4 + $0x100] sm:$0xf]
        %v491 = vld [vmem:[#allocation4 + $0x104] sm:$0xf]
        %v492 = vld [vmem:[#allocation4 + $0x108] sm:$0xf]
        %v493 = vld [vmem:[#allocation4 + $0x10c] sm:$0xf]
        %v494 = vld [vmem:[#allocation4 + $0x110] sm:$0xf]
        %v495 = vld [vmem:[#allocation4 + $0x114] sm:$0xf]
        %v496 = vld [vmem:[#allocation4 + $0x118] sm:$0xf]
        %v497 = vld [vmem:[#allocation4 + $0x11c] sm:$0xf]
        %v498 = vld [vmem:[#allocation4 + $0x120] sm:$0xf]
        %v499 = vld [vmem:[#allocation4 + $0x124] sm:$0xf]
        %v500 = vld [vmem:[#allocation4 + $0x128] sm:$0xf]
        %v501 = vld [vmem:[#allocation4 + $0x12c] sm:$0xf]
        %v502 = vld [vmem:[#allocation4 + $0x130] sm:$0xf]
        %v503 = vld [vmem:[#allocation4 + $0x134] sm:$0xf]
        %v504 = vld [vmem:[#allocation4 + $0x138] sm:$0xf]
        %v505 = vld [vmem:[#allocation4 + $0x13c] sm:$0xf]
        %v506 = vld [vmem:[#allocation4 + $0x140] sm:$0xf]
        %v507 = vld [vmem:[#allocation4 + $0x144] sm:$0xf]
        %v508 = vld [vmem:[#allocation4 + $0x148] sm:$0xf]
        %v509 = vld [vmem:[#allocation4 + $0x14c] sm:$0xf]
        %v510 = vld [vmem:[#allocation4 + $0x150] sm:$0xf]
        %v511 = vld [vmem:[#allocation4 + $0x154] sm:$0xf]
        %v512 = vld [vmem:[#allocation4 + $0x158] sm:$0xf]
        %v513 = vld [vmem:[#allocation4 + $0x15c] sm:$0xf]
        %v514 = vld [vmem:[#allocation4 + $0x160] sm:$0xf]
        %v515 = vld [vmem:[#allocation4 + $0x164] sm:$0xf]
        %v516 = vld [vmem:[#allocation4 + $0x168] sm:$0xf]
        %v517 = vld [vmem:[#allocation4 + $0x16c] sm:$0xf]
        %v518 = vld [vmem:[#allocation4 + $0x170] sm:$0xf]
        %v519 = vld [vmem:[#allocation4 + $0x174] sm:$0xf]
        %v520 = vld [vmem:[#allocation4 + $0x178] sm:$0xf]
        %v521 = vld [vmem:[#allocation4 + $0x17c] sm:$0xf]
        %v522 = vld [vmem:[#allocation4 + $0x180] sm:$0xf]
        %v523 = vld [vmem:[#allocation4 + $0x184] sm:$0xf]
        %v524 = vld [vmem:[#allocation4 + $0x188] sm:$0xf]
        %v525 = vld [vmem:[#allocation4 + $0x18c] sm:$0xf]
        %v526 = vld [vmem:[#allocation4 + $0x190] sm:$0xf]
        %v527 = vld [vmem:[#allocation4 + $0x194] sm:$0xf]
        %v528 = vld [vmem:[#allocation4 + $0x198] sm:$0xf]
        %v529 = vld [vmem:[#allocation4 + $0x19c] sm:$0xf]
        %v530 = vld [vmem:[#allocation4 + $0x1a0] sm:$0xf]
        %v531 = vld [vmem:[#allocation4 + $0x1a4] sm:$0xf]
        %v532 = vld [vmem:[#allocation4 + $0x1a8] sm:$0xf]
        %v533 = vld [vmem:[#allocation4 + $0x1ac] sm:$0xf]
        %v534 = vld [vmem:[#allocation4 + $0x1b0] sm:$0xf]
        %v535 = vld [vmem:[#allocation4 + $0x1b4] sm:$0xf]
        %v536 = vld [vmem:[#allocation4 + $0x1b8] sm:$0xf]
        %v537 = vld [vmem:[#allocation4 + $0x1bc] sm:$0xf]
        %v538 = vld [vmem:[#allocation4 + $0x1c0] sm:$0xf]
        %v539 = vld [vmem:[#allocation4 + $0x1c4] sm:$0xf]
        %v540 = vld [vmem:[#allocation4 + $0x1c8] sm:$0xf]
        %v541 = vld [vmem:[#allocation4 + $0x1cc] sm:$0xf]
        %v542 = vld [vmem:[#allocation4 + $0x1d0] sm:$0xf]
        %v543 = vld [vmem:[#allocation4 + $0x1d4] sm:$0xf]
        %v544 = vld [vmem:[#allocation4 + $0x1d8] sm:$0xf]
        %v545 = vld [vmem:[#allocation4 + $0x1dc] sm:$0xf]
        %v546 = vld [vmem:[#allocation4 + $0x1e0] sm:$0xf]
        %v547 = vld [vmem:[#allocation4 + $0x1e4] sm:$0xf]
        %v548 = vld [vmem:[#allocation4 + $0x1e8] sm:$0xf]
        %v549 = vld [vmem:[#allocation4 + $0x1ec] sm:$0xf]
        %v550 = vld [vmem:[#allocation4 + $0x1f0] sm:$0xf]
        %v551 = vld [vmem:[#allocation4 + $0x1f4] sm:$0xf]
        %v552 = vld [vmem:[#allocation4 + $0x1f8] sm:$0xf]
        %v553 = vld [vmem:[#allocation4 + $0x1fc] sm:$0xf]
        %v554 = vld [vmem:[#allocation4 + $0x200] sm:$0xf]
        %v555 = vld [vmem:[#allocation4 + $0x204] sm:$0xf]
        %v556 = vld [vmem:[#allocation4 + $0x208] sm:$0xf]
        %v557 = vld [vmem:[#allocation4 + $0x20c] sm:$0xf]
        %v558 = vld [vmem:[#allocation4 + $0x210] sm:$0xf]
        %v559 = vld [vmem:[#allocation4 + $0x214] sm:$0xf]
        %v560 = vld [vmem:[#allocation4 + $0x218] sm:$0xf]
        %v561 = vld [vmem:[#allocation4 + $0x21c] sm:$0xf]
        %v562 = vld [vmem:[#allocation4 + $0x220] sm:$0xf]
        %v563 = vld [vmem:[#allocation4 + $0x224] sm:$0xf]
        %v564 = vld [vmem:[#allocation4 + $0x228] sm:$0xf]
        %v565 = vld [vmem:[#allocation4 + $0x22c] sm:$0xf]
        %v566 = vld [vmem:[#allocation4 + $0x230] sm:$0xf]
        %v567 = vld [vmem:[#allocation4 + $0x234] sm:$0xf]
        %v568 = vld [vmem:[#allocation4 + $0x238] sm:$0xf]
        %v569 = vld [vmem:[#allocation4 + $0x23c] sm:$0xf]
        %vm599 = vcmask 1046528
        %v600 = vrot.slane %v394, 1
        %v601 = vrot.slane %v395, 1
        %v602 = vsel %vm599, %v600, %v601
        %v603 = vrot.slane %v396, 1
        %v604 = vsel %vm599, %v601, %v603
        %v605 = vrot.slane %v397, 1
        %v606 = vsel %vm599, %v603, %v605
        %v607 = vrot.slane %v398, 1
        %v608 = vsel %vm599, %v605, %v607
        %v609 = vrot.slane %v399, 1
        %v610 = vsel %vm599, %v607, %v609
        %v611 = vrot.slane %v400, 1
        %v612 = vsel %vm599, %v609, %v611
        %v613 = vrot.slane %v401, 1
        %v614 = vsel %vm599, %v611, %v613
        %v615 = vrot.slane %v402, 1
        %v616 = vsel %vm599, %v613, %v615
        %v617 = vrot.slane %v403, 1
        %v618 = vsel %vm599, %v615, %v617
        %v619 = vrot.slane %v404, 1
        %v620 = vsel %vm599, %v617, %v619
        %v621 = vrot.slane %v405, 1
        %v622 = vsel %vm599, %v619, %v621
        %v623 = vrot.slane %v406, 1
        %v624 = vsel %vm599, %v621, %v623
        %v625 = vrot.slane %v407, 1
        %v626 = vsel %vm599, %v623, %v625
        %v627 = vrot.slane %v408, 1
        %v628 = vsel %vm599, %v625, %v627
        %v629 = vrot.slane %v409, 1
        %v630 = vsel %vm599, %v627, %v629
        %v631 = vrot.slane %v410, 1
        %v632 = vsel %vm599, %v629, %v631
        %v633 = vrot.slane %v411, 1
        %v634 = vsel %vm599, %v631, %v633
        %v635 = vrot.slane %v412, 1
        %v636 = vsel %vm599, %v633, %v635
        %v637 = vrot.slane %v413, 1
        %v638 = vsel %vm599, %v635, %v637
        %v639 = vrot.slane %v414, 1
        %v640 = vsel %vm599, %v637, %v639
        %v641 = vrot.slane %v415, 1
        %v642 = vsel %vm599, %v639, %v641
        %v643 = vrot.slane %v416, 1
        %v644 = vsel %vm599, %v641, %v643
        %v645 = vrot.slane %v417, 1
        %v646 = vsel %vm599, %v643, %v645
        %v647 = vrot.slane %v418, 1
        %v648 = vsel %vm599, %v645, %v647
        %v649 = vrot.slane %v419, 1
        %v650 = vsel %vm599, %v647, %v649
        %v651 = vrot.slane %v420, 1
        %v652 = vsel %vm599, %v649, %v651
        %v653 = vrot.slane %v421, 1
        %v654 = vsel %vm599, %v651, %v653
        %v655 = vrot.slane %v422, 1
        %v656 = vsel %vm599, %v653, %v655
        %vm685 = vcmask 1045504
        %v686 = vrot.slane %v394, 2
        %v687 = vrot.slane %v395, 2
        %v688 = vsel %vm685, %v686, %v687
        %v689 = vrot.slane %v396, 2
        %v690 = vsel %vm685, %v687, %v689
        %v691 = vrot.slane %v397, 2
        %v692 = vsel %vm685, %v689, %v691
        %v693 = vrot.slane %v398, 2
        %v694 = vsel %vm685, %v691, %v693
        %v695 = vrot.slane %v399, 2
        %v696 = vsel %vm685, %v693, %v695
        %v697 = vrot.slane %v400, 2
        %v698 = vsel %vm685, %v695, %v697
        %v699 = vrot.slane %v401, 2
        %v700 = vsel %vm685, %v697, %v699
        %v701 = vrot.slane %v402, 2
        %v702 = vsel %vm685, %v699, %v701
        %v703 = vrot.slane %v403, 2
        %v704 = vsel %vm685, %v701, %v703
        %v705 = vrot.slane %v404, 2
        %v706 = vsel %vm685, %v703, %v705
        %v707 = vrot.slane %v405, 2
        %v708 = vsel %vm685, %v705, %v707
        %v709 = vrot.slane %v406, 2
        %v710 = vsel %vm685, %v707, %v709
        %v711 = vrot.slane %v407, 2
        %v712 = vsel %vm685, %v709, %v711
        %v713 = vrot.slane %v408, 2
        %v714 = vsel %vm685, %v711, %v713
        %v715 = vrot.slane %v409, 2
        %v716 = vsel %vm685, %v713, %v715
        %v717 = vrot.slane %v410, 2
        %v718 = vsel %vm685, %v715, %v717
        %v719 = vrot.slane %v411, 2
        %v720 = vsel %vm685, %v717, %v719
        %v721 = vrot.slane %v412, 2
        %v722 = vsel %vm685, %v719, %v721
        %v723 = vrot.slane %v413, 2
        %v724 = vsel %vm685, %v721, %v723
        %v725 = vrot.slane %v414, 2
        %v726 = vsel %vm685, %v723, %v725
        %v727 = vrot.slane %v415, 2
        %v728 = vsel %vm685, %v725, %v727
        %v729 = vrot.slane %v416, 2
        %v730 = vsel %vm685, %v727, %v729
        %v731 = vrot.slane %v417, 2
        %v732 = vsel %vm685, %v729, %v731
        %v733 = vrot.slane %v418, 2
        %v734 = vsel %vm685, %v731, %v733
        %v735 = vrot.slane %v419, 2
        %v736 = vsel %vm685, %v733, %v735
        %v737 = vrot.slane %v420, 2
        %v738 = vsel %vm685, %v735, %v737
        %v739 = vrot.slane %v421, 2
        %v740 = vsel %vm685, %v737, %v739
        %v741 = vrot.slane %v422, 2
        %v742 = vsel %vm685, %v739, %v741
        %v773 = vrot.slane %v423, 1
        %v774 = vsel %vm599, %v655, %v773
        %v775 = vrot.slane %v424, 1
        %v776 = vsel %vm599, %v773, %v775
        %v779 = vrot.slane %v423, 2
        %v780 = vsel %vm685, %v741, %v779
        %v781 = vrot.slane %v424, 2
        %v782 = vsel %vm685, %v779, %v781
        %v787 = vrot.slane %v425, 1
        %v788 = vsel %vm599, %v775, %v787
        %v789 = vrot.slane 0.0, 1
        %v790 = vsel %vm599, %v787, %v789
        %v793 = vrot.slane %v425, 2
        %v794 = vsel %vm685, %v781, %v793
        %v795 = vrot.slane 0.0, 2
        %v796 = vsel %vm685, %v793, %v795
        %v799 = vpack.c.bf16 %v395, %v394
        %v800 = vpack.c.bf16 %v604, %v602
        %v801 = vpack.c.bf16 %v690, %v688
        %v802 = vpack.c.bf16 %v397, %v396
        %v803 = vpack.c.bf16 %v608, %v606
        %v804 = vpack.c.bf16 %v694, %v692
        %v805 = vpack.c.bf16 %v399, %v398
        %v806 = vpack.c.bf16 %v612, %v610
        %v807 = vpack.c.bf16 %v698, %v696
        %v808 = vpack.c.bf16 %v401, %v400
        %v809 = vpack.c.bf16 %v616, %v614
        %v810 = vpack.c.bf16 %v702, %v700
        %v811 = vpack.c.bf16 %v403, %v402
        %v812 = vpack.c.bf16 %v620, %v618
        %v813 = vpack.c.bf16 %v706, %v704
        %v814 = vpack.c.bf16 %v405, %v404
        %v815 = vpack.c.bf16 %v624, %v622
        %v816 = vpack.c.bf16 %v710, %v708
        %v817 = vpack.c.bf16 %v407, %v406
        %v818 = vpack.c.bf16 %v628, %v626
        %v819 = vpack.c.bf16 %v714, %v712
        %v820 = vpack.c.bf16 %v409, %v408
        %v821 = vpack.c.bf16 %v632, %v630
        %v822 = vpack.c.bf16 %v718, %v716
        %v823 = vpack.c.bf16 %v411, %v410
        %v824 = vpack.c.bf16 %v636, %v634
        %v825 = vpack.c.bf16 %v722, %v720
        %v826 = vpack.c.bf16 %v413, %v412
        %v827 = vpack.c.bf16 %v640, %v638
        %v828 = vpack.c.bf16 %v726, %v724
        %v829 = vpack.c.bf16 %v415, %v414
        %v830 = vpack.c.bf16 %v644, %v642
        %v831 = vpack.c.bf16 %v730, %v728
        %v832 = vpack.c.bf16 %v417, %v416
        %v833 = vpack.c.bf16 %v648, %v646
        %v834 = vpack.c.bf16 %v734, %v732
        %v835 = vpack.c.bf16 %v419, %v418
        %v836 = vpack.c.bf16 %v652, %v650
        %v837 = vpack.c.bf16 %v738, %v736
        %v838 = vpack.c.bf16 %v421, %v420
        %v839 = vpack.c.bf16 %v656, %v654
        %v840 = vpack.c.bf16 %v742, %v740
        %v841 = vpack.c.bf16 %v423, %v422
        %v842 = vpack.c.bf16 %v776, %v774
        %v843 = vpack.c.bf16 %v782, %v780
        %v844 = vpack.c.bf16 %v425, %v424
        %v845 = vpack.c.bf16 %v790, %v788
        %v846 = vpack.c.bf16 %v796, %v794
        %v991 = vunpack.c.l.b16 %v426
        %v992 = vunpack.c.l.b16 %v427
        %v993 = vunpack.c.l.b16 %v428
        %v994 = vunpack.c.l.b16 %v429
        %v995 = vunpack.c.l.b16 %v430
        %v996 = vunpack.c.l.b16 %v431
        %v997 = vunpack.c.l.b16 %v432
        %v998 = vunpack.c.l.b16 %v433
        %v999 = vunpack.c.l.b16 %v434
        %v1000 = vunpack.c.l.b16 %v435
        %v1001 = vunpack.c.l.b16 %v436
        %v1002 = vunpack.c.l.b16 %v437
        %v1003 = vunpack.c.l.b16 %v438
        %v1004 = vunpack.c.l.b16 %v439
        %v1005 = vunpack.c.l.b16 %v440
        %v1006 = vunpack.c.l.b16 %v441
        %v1007 = vunpack.c.l.b16 %v442
        %v1008 = vunpack.c.l.b16 %v443
        %v1009 = vunpack.c.l.b16 %v444
        %v1010 = vunpack.c.l.b16 %v445
        %v1011 = vunpack.c.l.b16 %v446
        %v1012 = vunpack.c.l.b16 %v447
        %v1013 = vunpack.c.l.b16 %v448
        %v1014 = vunpack.c.l.b16 %v449
        %v1015 = vunpack.c.l.b16 %v450
        %v1016 = vunpack.c.l.b16 %v451
        %v1017 = vunpack.c.l.b16 %v452
        %v1018 = vunpack.c.l.b16 %v453
        %v1019 = vunpack.c.l.b16 %v454
        %v1020 = vunpack.c.l.b16 %v455
        %v1021 = vunpack.c.l.b16 %v456
        %v1022 = vunpack.c.l.b16 %v457
        %v1023 = vunpack.c.l.b16 %v458
        %v1024 = vunpack.c.l.b16 %v459
        %v1025 = vunpack.c.l.b16 %v460
        %v1026 = vunpack.c.l.b16 %v461
        %v1027 = vunpack.c.l.b16 %v462
        %v1028 = vunpack.c.l.b16 %v463
        %v1029 = vunpack.c.l.b16 %v464
        %v1030 = vunpack.c.l.b16 %v465
        %v1031 = vunpack.c.l.b16 %v466
        %v1032 = vunpack.c.l.b16 %v467
        %v1033 = vunpack.c.l.b16 %v468
        %v1034 = vunpack.c.l.b16 %v469
        %v1035 = vunpack.c.l.b16 %v470
        %v1036 = vunpack.c.l.b16 %v471
        %v1037 = vunpack.c.l.b16 %v472
        %v1038 = vunpack.c.l.b16 %v473
        %v1039 = vunpack.c.l.b16 %v474
        %v1040 = vunpack.c.l.b16 %v475
        %v1041 = vunpack.c.l.b16 %v476
        %v1042 = vunpack.c.l.b16 %v477
        %v1043 = vunpack.c.l.b16 %v478
        %v1044 = vunpack.c.l.b16 %v479
        %v1045 = vunpack.c.l.b16 %v480
        %v1046 = vunpack.c.l.b16 %v481
        %v1047 = vunpack.c.l.b16 %v482
        %v1048 = vunpack.c.l.b16 %v483
        %v1049 = vunpack.c.l.b16 %v484
        %v1050 = vunpack.c.l.b16 %v485
        %v1051 = vunpack.c.l.b16 %v486
        %v1052 = vunpack.c.l.b16 %v487
        %v1053 = vunpack.c.l.b16 %v488
        %v1054 = vunpack.c.l.b16 %v489
        %v1055 = vunpack.c.l.b16 %v490
        %v1056 = vunpack.c.l.b16 %v491
        %v1057 = vunpack.c.l.b16 %v492
        %v1058 = vunpack.c.l.b16 %v493
        %v1059 = vunpack.c.l.b16 %v494
        %v1060 = vunpack.c.l.b16 %v495
        %v1061 = vunpack.c.l.b16 %v496
        %v1062 = vunpack.c.l.b16 %v497
        %v1063 = vunpack.c.l.b16 %v498
        %v1064 = vunpack.c.l.b16 %v499
        %v1065 = vunpack.c.l.b16 %v500
        %v1066 = vunpack.c.l.b16 %v501
        %v1067 = vunpack.c.l.b16 %v502
        %v1068 = vunpack.c.l.b16 %v503
        %v1069 = vunpack.c.l.b16 %v504
        %v1070 = vunpack.c.l.b16 %v505
        %v1071 = vunpack.c.l.b16 %v506
        %v1072 = vunpack.c.l.b16 %v507
        %v1073 = vunpack.c.l.b16 %v508
        %v1074 = vunpack.c.l.b16 %v509
        %v1075 = vunpack.c.l.b16 %v510
        %v1076 = vunpack.c.l.b16 %v511
        %v1077 = vunpack.c.l.b16 %v512
        %v1078 = vunpack.c.l.b16 %v513
        %v1079 = vunpack.c.l.b16 %v514
        %v1080 = vunpack.c.l.b16 %v515
        %v1081 = vunpack.c.l.b16 %v516
        %v1082 = vunpack.c.l.b16 %v517
        %v1083 = vunpack.c.l.b16 %v518
        %v1084 = vunpack.c.l.b16 %v519
        %v1085 = vunpack.c.l.b16 %v520
        %v1086 = vunpack.c.l.b16 %v521
        %v1087 = vunpack.c.l.b16 %v522
        %v1088 = vunpack.c.l.b16 %v523
        %v1089 = vunpack.c.l.b16 %v524
        %v1090 = vunpack.c.l.b16 %v525
        %v1091 = vunpack.c.l.b16 %v526
        %v1092 = vunpack.c.l.b16 %v527
        %v1093 = vunpack.c.l.b16 %v528
        %v1094 = vunpack.c.l.b16 %v529
        %v1095 = vunpack.c.l.b16 %v530
        %v1096 = vunpack.c.l.b16 %v531
        %v1097 = vunpack.c.l.b16 %v532
        %v1098 = vunpack.c.l.b16 %v533
        %v1099 = vunpack.c.l.b16 %v534
        %v1100 = vunpack.c.l.b16 %v535
        %v1101 = vunpack.c.l.b16 %v536
        %v1102 = vunpack.c.l.b16 %v537
        %v1103 = vunpack.c.l.b16 %v538
        %v1104 = vunpack.c.l.b16 %v539
        %v1105 = vunpack.c.l.b16 %v540
        %v1106 = vunpack.c.l.b16 %v541
        %v1107 = vunpack.c.l.b16 %v542
        %v1108 = vunpack.c.l.b16 %v543
        %v1109 = vunpack.c.l.b16 %v544
        %v1110 = vunpack.c.l.b16 %v545
        %v1111 = vunpack.c.l.b16 %v546
        %v1112 = vunpack.c.l.b16 %v547
        %v1113 = vunpack.c.l.b16 %v548
        %v1114 = vunpack.c.l.b16 %v549
        %v1115 = vunpack.c.l.b16 %v550
        %v1116 = vunpack.c.l.b16 %v551
        %v1117 = vunpack.c.l.b16 %v552
        %v1118 = vunpack.c.l.b16 %v553
        %v1119 = vunpack.c.l.b16 %v554
        %v1120 = vunpack.c.l.b16 %v555
        %v1121 = vunpack.c.l.b16 %v556
        %v1122 = vunpack.c.l.b16 %v557
        %v1123 = vunpack.c.l.b16 %v558
        %v1124 = vunpack.c.l.b16 %v559
        %v1125 = vunpack.c.l.b16 %v560
        %v1126 = vunpack.c.l.b16 %v561
        %v1127 = vunpack.c.l.b16 %v562
        %v1128 = vunpack.c.l.b16 %v563
        %v1129 = vunpack.c.l.b16 %v564
        %v1130 = vunpack.c.l.b16 %v565
        %v1131 = vunpack.c.l.b16 %v566
        %v1132 = vunpack.c.l.b16 %v567
        %v1133 = vunpack.c.l.b16 %v568
        %v1134 = vunpack.c.l.b16 %v569
        %v1135 = vpack.c.b16 %v992, %v991
        %v1136 = vpack.c.b16 %v994, %v993
        %v1137 = vpack.c.b16 %v996, %v995
        %v1138 = vpack.c.b16 %v998, %v997
        %v1139 = vpack.c.b16 %v1000, %v999
        %v1140 = vpack.c.b16 %v1002, %v1001
        %v1141 = vpack.c.b16 %v1004, %v1003
        %v1142 = vpack.c.b16 %v1006, %v1005
        %v1143 = vpack.c.b16 %v1008, %v1007
        %v1144 = vpack.c.b16 %v1010, %v1009
        %v1145 = vpack.c.b16 %v1012, %v1011
        %v1146 = vpack.c.b16 %v1014, %v1013
        %v1147 = vpack.c.b16 %v1016, %v1015
        %v1148 = vpack.c.b16 %v1018, %v1017
        %v1149 = vpack.c.b16 %v1020, %v1019
        %v1150 = vpack.c.b16 %v1022, %v1021
        %v1151 = vpack.c.b16 %v1024, %v1023
        %v1152 = vpack.c.b16 %v1026, %v1025
        %v1153 = vpack.c.b16 %v1028, %v1027
        %v1154 = vpack.c.b16 %v1030, %v1029
        %v1155 = vpack.c.b16 %v1032, %v1031
        %v1156 = vpack.c.b16 %v1034, %v1033
        %v1157 = vpack.c.b16 %v1036, %v1035
        %v1158 = vpack.c.b16 %v1038, %v1037
        %v1159 = vpack.c.b16 %v1040, %v1039
        %v1160 = vpack.c.b16 %v1042, %v1041
        %v1161 = vpack.c.b16 %v1044, %v1043
        %v1162 = vpack.c.b16 %v1046, %v1045
        %v1163 = vpack.c.b16 %v1048, %v1047
        %v1164 = vpack.c.b16 %v1050, %v1049
        %v1165 = vpack.c.b16 %v1052, %v1051
        %v1166 = vpack.c.b16 %v1054, %v1053
        %v1167 = vpack.c.b16 %v1056, %v1055
        %v1168 = vpack.c.b16 %v1058, %v1057
        %v1169 = vpack.c.b16 %v1060, %v1059
        %v1170 = vpack.c.b16 %v1062, %v1061
        %v1171 = vpack.c.b16 %v1064, %v1063
        %v1172 = vpack.c.b16 %v1066, %v1065
        %v1173 = vpack.c.b16 %v1068, %v1067
        %v1174 = vpack.c.b16 %v1070, %v1069
        %v1175 = vpack.c.b16 %v1072, %v1071
        %v1176 = vpack.c.b16 %v1074, %v1073
        %v1177 = vpack.c.b16 %v1076, %v1075
        %v1178 = vpack.c.b16 %v1078, %v1077
        %v1179 = vpack.c.b16 %v1080, %v1079
        %v1180 = vpack.c.b16 %v1082, %v1081
        %v1181 = vpack.c.b16 %v1084, %v1083
        %v1182 = vpack.c.b16 %v1086, %v1085
        %v1183 = vpack.c.b16 %v1088, %v1087
        %v1184 = vpack.c.b16 %v1090, %v1089
        %v1185 = vpack.c.b16 %v1092, %v1091
        %v1186 = vpack.c.b16 %v1094, %v1093
        %v1187 = vpack.c.b16 %v1096, %v1095
        %v1188 = vpack.c.b16 %v1098, %v1097
        %v1189 = vpack.c.b16 %v1100, %v1099
        %v1190 = vpack.c.b16 %v1102, %v1101
        %v1191 = vpack.c.b16 %v1104, %v1103
        %v1192 = vpack.c.b16 %v1106, %v1105
        %v1193 = vpack.c.b16 %v1108, %v1107
        %v1194 = vpack.c.b16 %v1110, %v1109
        %v1195 = vpack.c.b16 %v1112, %v1111
        %v1196 = vpack.c.b16 %v1114, %v1113
        %v1197 = vpack.c.b16 %v1116, %v1115
        %v1198 = vpack.c.b16 %v1118, %v1117
        %v1199 = vpack.c.b16 %v1120, %v1119
        %v1200 = vpack.c.b16 %v1122, %v1121
        %v1201 = vpack.c.b16 %v1124, %v1123
        %v1202 = vpack.c.b16 %v1126, %v1125
        %v1203 = vpack.c.b16 %v1128, %v1127
        %v1204 = vpack.c.b16 %v1130, %v1129
        %v1205 = vpack.c.b16 %v1132, %v1131
        %v1206 = vpack.c.b16 %v1134, %v1133
        %1279 = vmatprep.subr.bf16.mxu0 0
        %1280 = vmatpush1.bf16.msra.mxu0 %v1142
        %1281 = vmatprep.subr.bf16.mxu0 0
        %1282 = vmatpush1.bf16.msra.mxu0 %v1141
        %1283 = vmatprep.subr.bf16.mxu0 0
        %1284 = vmatpush1.bf16.msra.mxu0 %v1140
        %1285 = vmatprep.subr.bf16.mxu0 0
        %1286 = vmatpush1.bf16.msra.mxu0 %v1139
        %1287 = vmatprep.subr.bf16.mxu0 0
        %1288 = vmatpush1.bf16.msra.mxu0 %v1138
        %1289 = vmatprep.subr.bf16.mxu0 0
        %1290 = vmatpush1.bf16.msra.mxu0 %v1137
        %1291 = vmatprep.subr.bf16.mxu0 0
        %1292 = vmatpush1.bf16.msra.mxu0 %v1136
        %1293 = vmatprep.subr.bf16.mxu0 0
        %1294 = vmatpush1.bf16.msra.mxu0 %v1135
        %1295 = vmatprep.subr.bf16.mxu0 0
        %1296 = vmatpush2.bf16.msra.mxu0 %v1150
        %1297 = vmatprep.subr.bf16.mxu0 0
        %1298 = vmatpush2.bf16.msra.mxu0 %v1149
        %1299 = vmatprep.subr.bf16.mxu0 0
        %1300 = vmatpush2.bf16.msra.mxu0 %v1148
        %1301 = vmatprep.subr.bf16.mxu0 0
        %1302 = vmatpush2.bf16.msra.mxu0 %v1147
        %1303 = vmatprep.subr.bf16.mxu0 0
        %1304 = vmatpush2.bf16.msra.mxu0 %v1146
        %1305 = vmatprep.subr.bf16.mxu0 0
        %1306 = vmatpush2.bf16.msra.mxu0 %v1145
        %1307 = vmatprep.subr.bf16.mxu0 0
        %1308 = vmatpush2.bf16.msra.mxu0 %v1144
        %1309 = vmatprep.subr.bf16.mxu0 0
        %1310 = vmatpush2.bf16.msra.mxu0 %v1143
        %1311 = vmatprep.mubr.bf16.mxu0 %v800
        %1312 = vmatmul.mubr.bf16.gmra.mxu0 %v799
        %v1313 = vpop.f32.mrf.mxu0
        %v1314 = vadd.f32 0.0, %v1313
        %v1315 = vpop.f32.mrf.mxu0
        %v1316 = vpop.f32.mrf.mxu0
        %v1317 = vadd.f32 0.0, %v1316
        %v1318 = vpop.f32.mrf.mxu0
        %1319 = vmatprep.mubr.bf16.mxu0 %v803
        %1320 = vmatmul.mubr.bf16.gmra.mxu0 %v802
        %v1321 = vpop.f32.mrf.mxu0
        %v1322 = vadd.f32 0.0, %v1321
        %v1323 = vpop.f32.mrf.mxu0
        %v1324 = vpop.f32.mrf.mxu0
        %v1325 = vadd.f32 0.0, %v1324
        %v1326 = vpop.f32.mrf.mxu0
        %1327 = vmatprep.mubr.bf16.mxu0 %v806
        %1328 = vmatmul.mubr.bf16.gmra.mxu0 %v805
        %v1329 = vpop.f32.mrf.mxu0
        %v1330 = vadd.f32 0.0, %v1329
        %v1331 = vpop.f32.mrf.mxu0
        %v1332 = vpop.f32.mrf.mxu0
        %v1333 = vadd.f32 0.0, %v1332
        %v1334 = vpop.f32.mrf.mxu0
        %1335 = vmatprep.mubr.bf16.mxu0 %v809
        %1336 = vmatmul.mubr.bf16.gmra.mxu0 %v808
        %v1337 = vpop.f32.mrf.mxu0
        %v1338 = vadd.f32 0.0, %v1337
        %v1339 = vpop.f32.mrf.mxu0
        %v1340 = vpop.f32.mrf.mxu0
        %v1341 = vadd.f32 0.0, %v1340
        %v1342 = vpop.f32.mrf.mxu0
        %1343 = vmatprep.mubr.bf16.mxu0 %v812
        %1344 = vmatmul.mubr.bf16.gmra.mxu0 %v811
        %v1345 = vpop.f32.mrf.mxu0
        %v1346 = vadd.f32 0.0, %v1345
        %v1347 = vpop.f32.mrf.mxu0
        %v1348 = vpop.f32.mrf.mxu0
        %v1349 = vadd.f32 0.0, %v1348
        %v1350 = vpop.f32.mrf.mxu0
        %1351 = vmatprep.mubr.bf16.mxu0 %v815
        %1352 = vmatmul.mubr.bf16.gmra.mxu0 %v814
        %v1353 = vpop.f32.mrf.mxu0
        %v1354 = vadd.f32 0.0, %v1353
        %v1355 = vpop.f32.mrf.mxu0
        %v1356 = vpop.f32.mrf.mxu0
        %v1357 = vadd.f32 0.0, %v1356
        %v1358 = vpop.f32.mrf.mxu0
        %1359 = vmatprep.mubr.bf16.mxu0 %v818
        %1360 = vmatmul.mubr.bf16.gmra.mxu0 %v817
        %v1361 = vpop.f32.mrf.mxu0
        %v1362 = vadd.f32 0.0, %v1361
        %v1363 = vpop.f32.mrf.mxu0
        %v1364 = vpop.f32.mrf.mxu0
        %v1365 = vadd.f32 0.0, %v1364
        %v1366 = vpop.f32.mrf.mxu0
        %1367 = vmatprep.mubr.bf16.mxu0 %v821
        %1368 = vmatmul.mubr.bf16.gmra.mxu0 %v820
        %v1369 = vpop.f32.mrf.mxu0
        %v1370 = vadd.f32 0.0, %v1369
        %v1371 = vpop.f32.mrf.mxu0
        %v1372 = vpop.f32.mrf.mxu0
        %v1373 = vadd.f32 0.0, %v1372
        %v1374 = vpop.f32.mrf.mxu0
        %1375 = vmatprep.mubr.bf16.mxu0 %v824
        %1376 = vmatmul.mubr.bf16.gmra.mxu0 %v823
        %v1377 = vpop.f32.mrf.mxu0
        %v1378 = vadd.f32 0.0, %v1377
        %v1379 = vpop.f32.mrf.mxu0
        %v1380 = vpop.f32.mrf.mxu0
        %v1381 = vadd.f32 0.0, %v1380
        %v1382 = vpop.f32.mrf.mxu0
        %1383 = vmatprep.mubr.bf16.mxu0 %v827
        %1384 = vmatmul.mubr.bf16.gmra.mxu0 %v826
        %v1385 = vpop.f32.mrf.mxu0
        %v1386 = vadd.f32 0.0, %v1385
        %v1387 = vpop.f32.mrf.mxu0
        %v1388 = vpop.f32.mrf.mxu0
        %v1389 = vadd.f32 0.0, %v1388
        %v1390 = vpop.f32.mrf.mxu0
        %1391 = vmatprep.mubr.bf16.mxu0 %v830
        %1392 = vmatmul.mubr.bf16.gmra.mxu0 %v829
        %v1393 = vpop.f32.mrf.mxu0
        %v1394 = vadd.f32 0.0, %v1393
        %v1395 = vpop.f32.mrf.mxu0
        %v1396 = vpop.f32.mrf.mxu0
        %v1397 = vadd.f32 0.0, %v1396
        %v1398 = vpop.f32.mrf.mxu0
        %1399 = vmatprep.mubr.bf16.mxu0 %v833
        %1400 = vmatmul.mubr.bf16.gmra.mxu0 %v832
        %v1401 = vpop.f32.mrf.mxu0
        %v1402 = vadd.f32 0.0, %v1401
        %v1403 = vpop.f32.mrf.mxu0
        %v1404 = vpop.f32.mrf.mxu0
        %v1405 = vadd.f32 0.0, %v1404
        %v1406 = vpop.f32.mrf.mxu0
        %1407 = vmatprep.mubr.bf16.mxu0 %v836
        %1408 = vmatmul.mubr.bf16.gmra.mxu0 %v835
        %v1409 = vpop.f32.mrf.mxu0
        %v1410 = vadd.f32 0.0, %v1409
        %v1411 = vpop.f32.mrf.mxu0
        %v1412 = vpop.f32.mrf.mxu0
        %v1413 = vadd.f32 0.0, %v1412
        %v1414 = vpop.f32.mrf.mxu0
        %1415 = vmatprep.mubr.bf16.mxu0 %v839
        %1416 = vmatmul.mubr.bf16.gmra.mxu0 %v838
        %v1417 = vpop.f32.mrf.mxu0
        %v1418 = vadd.f32 0.0, %v1417
        %v1419 = vpop.f32.mrf.mxu0
        %v1420 = vpop.f32.mrf.mxu0
        %v1421 = vadd.f32 0.0, %v1420
        %v1422 = vpop.f32.mrf.mxu0
        %1423 = vdwg.mxu0
        %1424 = vmatprep.subr.bf16.mxu0 0
        %1425 = vmatpush1.bf16.msra.mxu0 %v1158
        %1426 = vmatprep.subr.bf16.mxu0 0
        %1427 = vmatpush1.bf16.msra.mxu0 %v1157
        %1428 = vmatprep.subr.bf16.mxu0 0
        %1429 = vmatpush1.bf16.msra.mxu0 %v1156
        %1430 = vmatprep.subr.bf16.mxu0 0
        %1431 = vmatpush1.bf16.msra.mxu0 %v1155
        %1432 = vmatprep.subr.bf16.mxu0 0
        %1433 = vmatpush1.bf16.msra.mxu0 %v1154
        %1434 = vmatprep.subr.bf16.mxu0 0
        %1435 = vmatpush1.bf16.msra.mxu0 %v1153
        %1436 = vmatprep.subr.bf16.mxu0 0
        %1437 = vmatpush1.bf16.msra.mxu0 %v1152
        %1438 = vmatprep.subr.bf16.mxu0 0
        %1439 = vmatpush1.bf16.msra.mxu0 %v1151
        %1440 = vmatprep.subr.bf16.mxu0 0
        %1441 = vmatpush2.bf16.msra.mxu0 %v1166
        %1442 = vmatprep.subr.bf16.mxu0 0
        %1443 = vmatpush2.bf16.msra.mxu0 %v1165
        %1444 = vmatprep.subr.bf16.mxu0 0
        %1445 = vmatpush2.bf16.msra.mxu0 %v1164
        %1446 = vmatprep.subr.bf16.mxu0 0
        %1447 = vmatpush2.bf16.msra.mxu0 %v1163
        %1448 = vmatprep.subr.bf16.mxu0 0
        %1449 = vmatpush2.bf16.msra.mxu0 %v1162
        %1450 = vmatprep.subr.bf16.mxu0 0
        %1451 = vmatpush2.bf16.msra.mxu0 %v1161
        %1452 = vmatprep.subr.bf16.mxu0 0
        %1453 = vmatpush2.bf16.msra.mxu0 %v1160
        %1454 = vmatprep.subr.bf16.mxu0 0
        %1455 = vmatpush2.bf16.msra.mxu0 %v1159
        %1456 = vmatprep.mubr.bf16.mxu0 %v802
        %1457 = vmatmul.mubr.bf16.gmra.mxu0 %v801
        %v1458 = vpop.f32.mrf.mxu0
        %v1459 = vadd.f32 %v1314, %v1458
        %v1460 = vpop.f32.mrf.mxu0
        %v1461 = vpop.f32.mrf.mxu0
        %v1462 = vadd.f32 %v1317, %v1461
        %v1463 = vpop.f32.mrf.mxu0
        %1464 = vmatprep.mubr.bf16.mxu0 %v805
        %1465 = vmatmul.mubr.bf16.gmra.mxu0 %v804
        %v1466 = vpop.f32.mrf.mxu0
        %v1467 = vadd.f32 %v1322, %v1466
        %v1468 = vpop.f32.mrf.mxu0
        %v1469 = vpop.f32.mrf.mxu0
        %v1470 = vadd.f32 %v1325, %v1469
        %v1471 = vpop.f32.mrf.mxu0
        %1472 = vmatprep.mubr.bf16.mxu0 %v808
        %1473 = vmatmul.mubr.bf16.gmra.mxu0 %v807
        %v1474 = vpop.f32.mrf.mxu0
        %v1475 = vadd.f32 %v1330, %v1474
        %v1476 = vpop.f32.mrf.mxu0
        %v1477 = vpop.f32.mrf.mxu0
        %v1478 = vadd.f32 %v1333, %v1477
        %v1479 = vpop.f32.mrf.mxu0
        %1480 = vmatprep.mubr.bf16.mxu0 %v811
        %1481 = vmatmul.mubr.bf16.gmra.mxu0 %v810
        %v1482 = vpop.f32.mrf.mxu0
        %v1483 = vadd.f32 %v1338, %v1482
        %v1484 = vpop.f32.mrf.mxu0
        %v1485 = vpop.f32.mrf.mxu0
        %v1486 = vadd.f32 %v1341, %v1485
        %v1487 = vpop.f32.mrf.mxu0
        %1488 = vmatprep.mubr.bf16.mxu0 %v814
        %1489 = vmatmul.mubr.bf16.gmra.mxu0 %v813
        %v1490 = vpop.f32.mrf.mxu0
        %v1491 = vadd.f32 %v1346, %v1490
        %v1492 = vpop.f32.mrf.mxu0
        %v1493 = vpop.f32.mrf.mxu0
        %v1494 = vadd.f32 %v1349, %v1493
        %v1495 = vpop.f32.mrf.mxu0
        %1496 = vmatprep.mubr.bf16.mxu0 %v817
        %1497 = vmatmul.mubr.bf16.gmra.mxu0 %v816
        %v1498 = vpop.f32.mrf.mxu0
        %v1499 = vadd.f32 %v1354, %v1498
        %v1500 = vpop.f32.mrf.mxu0
        %v1501 = vpop.f32.mrf.mxu0
        %v1502 = vadd.f32 %v1357, %v1501
        %v1503 = vpop.f32.mrf.mxu0
        %1504 = vmatprep.mubr.bf16.mxu0 %v820
        %1505 = vmatmul.mubr.bf16.gmra.mxu0 %v819
        %v1506 = vpop.f32.mrf.mxu0
        %v1507 = vadd.f32 %v1362, %v1506
        %v1508 = vpop.f32.mrf.mxu0
        %v1509 = vpop.f32.mrf.mxu0
        %v1510 = vadd.f32 %v1365, %v1509
        %v1511 = vpop.f32.mrf.mxu0
        %1512 = vmatprep.mubr.bf16.mxu0 %v823
        %1513 = vmatmul.mubr.bf16.gmra.mxu0 %v822
        %v1514 = vpop.f32.mrf.mxu0
        %v1515 = vadd.f32 %v1370, %v1514
        %v1516 = vpop.f32.mrf.mxu0
        %v1517 = vpop.f32.mrf.mxu0
        %v1518 = vadd.f32 %v1373, %v1517
        %v1519 = vpop.f32.mrf.mxu0
        %1520 = vmatprep.mubr.bf16.mxu0 %v826
        %1521 = vmatmul.mubr.bf16.gmra.mxu0 %v825
        %v1522 = vpop.f32.mrf.mxu0
        %v1523 = vadd.f32 %v1378, %v1522
        %v1524 = vpop.f32.mrf.mxu0
        %v1525 = vpop.f32.mrf.mxu0
        %v1526 = vadd.f32 %v1381, %v1525
        %v1527 = vpop.f32.mrf.mxu0
        %1528 = vmatprep.mubr.bf16.mxu0 %v829
        %1529 = vmatmul.mubr.bf16.gmra.mxu0 %v828
        %v1530 = vpop.f32.mrf.mxu0
        %v1531 = vadd.f32 %v1386, %v1530
        %v1532 = vpop.f32.mrf.mxu0
        %v1533 = vpop.f32.mrf.mxu0
        %v1534 = vadd.f32 %v1389, %v1533
        %v1535 = vpop.f32.mrf.mxu0
        %1536 = vmatprep.mubr.bf16.mxu0 %v832
        %1537 = vmatmul.mubr.bf16.gmra.mxu0 %v831
        %v1538 = vpop.f32.mrf.mxu0
        %v1539 = vadd.f32 %v1394, %v1538
        %v1540 = vpop.f32.mrf.mxu0
        %v1541 = vpop.f32.mrf.mxu0
        %v1542 = vadd.f32 %v1397, %v1541
        %v1543 = vpop.f32.mrf.mxu0
        %1544 = vmatprep.mubr.bf16.mxu0 %v835
        %1545 = vmatmul.mubr.bf16.gmra.mxu0 %v834
        %v1546 = vpop.f32.mrf.mxu0
        %v1547 = vadd.f32 %v1402, %v1546
        %v1548 = vpop.f32.mrf.mxu0
        %v1549 = vpop.f32.mrf.mxu0
        %v1550 = vadd.f32 %v1405, %v1549
        %v1551 = vpop.f32.mrf.mxu0
        %1552 = vmatprep.mubr.bf16.mxu0 %v838
        %1553 = vmatmul.mubr.bf16.gmra.mxu0 %v837
        %v1554 = vpop.f32.mrf.mxu0
        %v1555 = vadd.f32 %v1410, %v1554
        %v1556 = vpop.f32.mrf.mxu0
        %v1557 = vpop.f32.mrf.mxu0
        %v1558 = vadd.f32 %v1413, %v1557
        %v1559 = vpop.f32.mrf.mxu0
        %1560 = vmatprep.mubr.bf16.mxu0 %v841
        %1561 = vmatmul.mubr.bf16.gmra.mxu0 %v840
        %v1562 = vpop.f32.mrf.mxu0
        %v1563 = vadd.f32 %v1418, %v1562
        %v1564 = vpop.f32.mrf.mxu0
        %v1565 = vpop.f32.mrf.mxu0
        %v1566 = vadd.f32 %v1421, %v1565
        %v1567 = vpop.f32.mrf.mxu0
        %1568 = vdwg.mxu0
        %1569 = vmatprep.subr.bf16.mxu0 0
        %1570 = vmatpush1.bf16.msra.mxu0 %v1174
        %1571 = vmatprep.subr.bf16.mxu0 0
        %1572 = vmatpush1.bf16.msra.mxu0 %v1173
        %1573 = vmatprep.subr.bf16.mxu0 0
        %1574 = vmatpush1.bf16.msra.mxu0 %v1172
        %1575 = vmatprep.subr.bf16.mxu0 0
        %1576 = vmatpush1.bf16.msra.mxu0 %v1171
        %1577 = vmatprep.subr.bf16.mxu0 0
        %1578 = vmatpush1.bf16.msra.mxu0 %v1170
        %1579 = vmatprep.subr.bf16.mxu0 0
        %1580 = vmatpush1.bf16.msra.mxu0 %v1169
        %1581 = vmatprep.subr.bf16.mxu0 0
        %1582 = vmatpush1.bf16.msra.mxu0 %v1168
        %1583 = vmatprep.subr.bf16.mxu0 0
        %1584 = vmatpush1.bf16.msra.mxu0 %v1167
        %1585 = vmatprep.subr.bf16.mxu0 0
        %1586 = vmatpush2.bf16.msra.mxu0 %v1182
        %1587 = vmatprep.subr.bf16.mxu0 0
        %1588 = vmatpush2.bf16.msra.mxu0 %v1181
        %1589 = vmatprep.subr.bf16.mxu0 0
        %1590 = vmatpush2.bf16.msra.mxu0 %v1180
        %1591 = vmatprep.subr.bf16.mxu0 0
        %1592 = vmatpush2.bf16.msra.mxu0 %v1179
        %1593 = vmatprep.subr.bf16.mxu0 0
        %1594 = vmatpush2.bf16.msra.mxu0 %v1178
        %1595 = vmatprep.subr.bf16.mxu0 0
        %1596 = vmatpush2.bf16.msra.mxu0 %v1177
        %1597 = vmatprep.subr.bf16.mxu0 0
        %1598 = vmatpush2.bf16.msra.mxu0 %v1176
        %1599 = vmatprep.subr.bf16.mxu0 0
        %1600 = vmatpush2.bf16.msra.mxu0 %v1175
        %1601 = vmatprep.mubr.bf16.mxu0 %v804
        %1602 = vmatmul.mubr.bf16.gmra.mxu0 %v803
        %v1603 = vpop.f32.mrf.mxu0
        %v1604 = vadd.f32 %v1459, %v1603
        %v1605 = vpop.f32.mrf.mxu0
        %v1606 = vpop.f32.mrf.mxu0
        %v1607 = vadd.f32 %v1462, %v1606
        %v1608 = vpop.f32.mrf.mxu0
        %1609 = vmatprep.mubr.bf16.mxu0 %v807
        %1610 = vmatmul.mubr.bf16.gmra.mxu0 %v806
        %v1611 = vpop.f32.mrf.mxu0
        %v1612 = vadd.f32 %v1467, %v1611
        %v1613 = vpop.f32.mrf.mxu0
        %v1614 = vpop.f32.mrf.mxu0
        %v1615 = vadd.f32 %v1470, %v1614
        %v1616 = vpop.f32.mrf.mxu0
        %1617 = vmatprep.mubr.bf16.mxu0 %v810
        %1618 = vmatmul.mubr.bf16.gmra.mxu0 %v809
        %v1619 = vpop.f32.mrf.mxu0
        %v1620 = vadd.f32 %v1475, %v1619
        %v1621 = vpop.f32.mrf.mxu0
        %v1622 = vpop.f32.mrf.mxu0
        %v1623 = vadd.f32 %v1478, %v1622
        %v1624 = vpop.f32.mrf.mxu0
        %1625 = vmatprep.mubr.bf16.mxu0 %v813
        %1626 = vmatmul.mubr.bf16.gmra.mxu0 %v812
        %v1627 = vpop.f32.mrf.mxu0
        %v1628 = vadd.f32 %v1483, %v1627
        %v1629 = vpop.f32.mrf.mxu0
        %v1630 = vpop.f32.mrf.mxu0
        %v1631 = vadd.f32 %v1486, %v1630
        %v1632 = vpop.f32.mrf.mxu0
        %1633 = vmatprep.mubr.bf16.mxu0 %v816
        %1634 = vmatmul.mubr.bf16.gmra.mxu0 %v815
        %v1635 = vpop.f32.mrf.mxu0
        %v1636 = vadd.f32 %v1491, %v1635
        %v1637 = vpop.f32.mrf.mxu0
        %v1638 = vpop.f32.mrf.mxu0
        %v1639 = vadd.f32 %v1494, %v1638
        %v1640 = vpop.f32.mrf.mxu0
        %1641 = vmatprep.mubr.bf16.mxu0 %v819
        %1642 = vmatmul.mubr.bf16.gmra.mxu0 %v818
        %v1643 = vpop.f32.mrf.mxu0
        %v1644 = vadd.f32 %v1499, %v1643
        %v1645 = vpop.f32.mrf.mxu0
        %v1646 = vpop.f32.mrf.mxu0
        %v1647 = vadd.f32 %v1502, %v1646
        %v1648 = vpop.f32.mrf.mxu0
        %1649 = vmatprep.mubr.bf16.mxu0 %v822
        %1650 = vmatmul.mubr.bf16.gmra.mxu0 %v821
        %v1651 = vpop.f32.mrf.mxu0
        %v1652 = vadd.f32 %v1507, %v1651
        %v1653 = vpop.f32.mrf.mxu0
        %v1654 = vpop.f32.mrf.mxu0
        %v1655 = vadd.f32 %v1510, %v1654
        %v1656 = vpop.f32.mrf.mxu0
        %1657 = vmatprep.mubr.bf16.mxu0 %v825
        %1658 = vmatmul.mubr.bf16.gmra.mxu0 %v824
        %v1659 = vpop.f32.mrf.mxu0
        %v1660 = vadd.f32 %v1515, %v1659
        %v1661 = vpop.f32.mrf.mxu0
        %v1662 = vpop.f32.mrf.mxu0
        %v1663 = vadd.f32 %v1518, %v1662
        %v1664 = vpop.f32.mrf.mxu0
        %1665 = vmatprep.mubr.bf16.mxu0 %v828
        %1666 = vmatmul.mubr.bf16.gmra.mxu0 %v827
        %v1667 = vpop.f32.mrf.mxu0
        %v1668 = vadd.f32 %v1523, %v1667
        %v1669 = vpop.f32.mrf.mxu0
        %v1670 = vpop.f32.mrf.mxu0
        %v1671 = vadd.f32 %v1526, %v1670
        %v1672 = vpop.f32.mrf.mxu0
        %1673 = vmatprep.mubr.bf16.mxu0 %v831
        %1674 = vmatmul.mubr.bf16.gmra.mxu0 %v830
        %v1675 = vpop.f32.mrf.mxu0
        %v1676 = vadd.f32 %v1531, %v1675
        %v1677 = vpop.f32.mrf.mxu0
        %v1678 = vpop.f32.mrf.mxu0
        %v1679 = vadd.f32 %v1534, %v1678
        %v1680 = vpop.f32.mrf.mxu0
        %1681 = vmatprep.mubr.bf16.mxu0 %v834
        %1682 = vmatmul.mubr.bf16.gmra.mxu0 %v833
        %v1683 = vpop.f32.mrf.mxu0
        %v1684 = vadd.f32 %v1539, %v1683
        %v1685 = vpop.f32.mrf.mxu0
        %v1686 = vpop.f32.mrf.mxu0
        %v1687 = vadd.f32 %v1542, %v1686
        %v1688 = vpop.f32.mrf.mxu0
        %1689 = vmatprep.mubr.bf16.mxu0 %v837
        %1690 = vmatmul.mubr.bf16.gmra.mxu0 %v836
        %v1691 = vpop.f32.mrf.mxu0
        %v1692 = vadd.f32 %v1547, %v1691
        %v1693 = vpop.f32.mrf.mxu0
        %v1694 = vpop.f32.mrf.mxu0
        %v1695 = vadd.f32 %v1550, %v1694
        %v1696 = vpop.f32.mrf.mxu0
        %1697 = vmatprep.mubr.bf16.mxu0 %v840
        %1698 = vmatmul.mubr.bf16.gmra.mxu0 %v839
        %v1699 = vpop.f32.mrf.mxu0
        %v1700 = vadd.f32 %v1555, %v1699
        %v1701 = vpop.f32.mrf.mxu0
        %v1702 = vpop.f32.mrf.mxu0
        %v1703 = vadd.f32 %v1558, %v1702
        %v1704 = vpop.f32.mrf.mxu0
        %1705 = vmatprep.mubr.bf16.mxu0 %v843
        %1706 = vmatmul.mubr.bf16.gmra.mxu0 %v842
        %v1707 = vpop.f32.mrf.mxu0
        %v1708 = vadd.f32 %v1563, %v1707
        %v1709 = vpop.f32.mrf.mxu0
        %v1710 = vpop.f32.mrf.mxu0
        %v1711 = vadd.f32 %v1566, %v1710
        %v1712 = vpop.f32.mrf.mxu0
        %1713 = vdwg.mxu0
        %1714 = vmatprep.subr.bf16.mxu0 0
        %1715 = vmatpush1.bf16.msra.mxu0 %v1190
        %1716 = vmatprep.subr.bf16.mxu0 0
        %1717 = vmatpush1.bf16.msra.mxu0 %v1189
        %1718 = vmatprep.subr.bf16.mxu0 0
        %1719 = vmatpush1.bf16.msra.mxu0 %v1188
        %1720 = vmatprep.subr.bf16.mxu0 0
        %1721 = vmatpush1.bf16.msra.mxu0 %v1187
        %1722 = vmatprep.subr.bf16.mxu0 0
        %1723 = vmatpush1.bf16.msra.mxu0 %v1186
        %1724 = vmatprep.subr.bf16.mxu0 0
        %1725 = vmatpush1.bf16.msra.mxu0 %v1185
        %1726 = vmatprep.subr.bf16.mxu0 0
        %1727 = vmatpush1.bf16.msra.mxu0 %v1184
        %1728 = vmatprep.subr.bf16.mxu0 0
        %1729 = vmatpush1.bf16.msra.mxu0 %v1183
        %1730 = vmatprep.subr.bf16.mxu0 0
        %1731 = vmatpush2.bf16.msra.mxu0 %v1198
        %1732 = vmatprep.subr.bf16.mxu0 0
        %1733 = vmatpush2.bf16.msra.mxu0 %v1197
        %1734 = vmatprep.subr.bf16.mxu0 0
        %1735 = vmatpush2.bf16.msra.mxu0 %v1196
        %1736 = vmatprep.subr.bf16.mxu0 0
        %1737 = vmatpush2.bf16.msra.mxu0 %v1195
        %1738 = vmatprep.subr.bf16.mxu0 0
        %1739 = vmatpush2.bf16.msra.mxu0 %v1194
        %1740 = vmatprep.subr.bf16.mxu0 0
        %1741 = vmatpush2.bf16.msra.mxu0 %v1193
        %1742 = vmatprep.subr.bf16.mxu0 0
        %1743 = vmatpush2.bf16.msra.mxu0 %v1192
        %1744 = vmatprep.subr.bf16.mxu0 0
        %1745 = vmatpush2.bf16.msra.mxu0 %v1191
        %1746 = vmatprep.mubr.bf16.mxu0 %v806
        %1747 = vmatmul.mubr.bf16.gmra.mxu0 %v805
        %v1748 = vpop.f32.mrf.mxu0
        %v1749 = vadd.f32 %v1604, %v1748
        %v1750 = vpop.f32.mrf.mxu0
        %v1751 = vpop.f32.mrf.mxu0
        %v1752 = vadd.f32 %v1607, %v1751
        %v1753 = vpop.f32.mrf.mxu0
        %1754 = vmatprep.mubr.bf16.mxu0 %v809
        %1755 = vmatmul.mubr.bf16.gmra.mxu0 %v808
        %v1756 = vpop.f32.mrf.mxu0
        %v1757 = vadd.f32 %v1612, %v1756
        %v1758 = vpop.f32.mrf.mxu0
        %v1759 = vpop.f32.mrf.mxu0
        %v1760 = vadd.f32 %v1615, %v1759
        %v1761 = vpop.f32.mrf.mxu0
        %1762 = vmatprep.mubr.bf16.mxu0 %v812
        %1763 = vmatmul.mubr.bf16.gmra.mxu0 %v811
        %v1764 = vpop.f32.mrf.mxu0
        %v1765 = vadd.f32 %v1620, %v1764
        %v1766 = vpop.f32.mrf.mxu0
        %v1767 = vpop.f32.mrf.mxu0
        %v1768 = vadd.f32 %v1623, %v1767
        %v1769 = vpop.f32.mrf.mxu0
        %1770 = vmatprep.mubr.bf16.mxu0 %v815
        %1771 = vmatmul.mubr.bf16.gmra.mxu0 %v814
        %v1772 = vpop.f32.mrf.mxu0
        %v1773 = vadd.f32 %v1628, %v1772
        %v1774 = vpop.f32.mrf.mxu0
        %v1775 = vpop.f32.mrf.mxu0
        %v1776 = vadd.f32 %v1631, %v1775
        %v1777 = vpop.f32.mrf.mxu0
        %1778 = vmatprep.mubr.bf16.mxu0 %v818
        %1779 = vmatmul.mubr.bf16.gmra.mxu0 %v817
        %v1780 = vpop.f32.mrf.mxu0
        %v1781 = vadd.f32 %v1636, %v1780
        %v1782 = vpop.f32.mrf.mxu0
        %v1783 = vpop.f32.mrf.mxu0
        %v1784 = vadd.f32 %v1639, %v1783
        %v1785 = vpop.f32.mrf.mxu0
        %1786 = vmatprep.mubr.bf16.mxu0 %v821
        %1787 = vmatmul.mubr.bf16.gmra.mxu0 %v820
        %v1788 = vpop.f32.mrf.mxu0
        %v1789 = vadd.f32 %v1644, %v1788
        %v1790 = vpop.f32.mrf.mxu0
        %v1791 = vpop.f32.mrf.mxu0
        %v1792 = vadd.f32 %v1647, %v1791
        %v1793 = vpop.f32.mrf.mxu0
        %1794 = vmatprep.mubr.bf16.mxu0 %v824
        %1795 = vmatmul.mubr.bf16.gmra.mxu0 %v823
        %v1796 = vpop.f32.mrf.mxu0
        %v1797 = vadd.f32 %v1652, %v1796
        %v1798 = vpop.f32.mrf.mxu0
        %v1799 = vpop.f32.mrf.mxu0
        %v1800 = vadd.f32 %v1655, %v1799
        %v1801 = vpop.f32.mrf.mxu0
        %1802 = vmatprep.mubr.bf16.mxu0 %v827
        %1803 = vmatmul.mubr.bf16.gmra.mxu0 %v826
        %v1804 = vpop.f32.mrf.mxu0
        %v1805 = vadd.f32 %v1660, %v1804
        %v1806 = vpop.f32.mrf.mxu0
        %v1807 = vpop.f32.mrf.mxu0
        %v1808 = vadd.f32 %v1663, %v1807
        %v1809 = vpop.f32.mrf.mxu0
        %1810 = vmatprep.mubr.bf16.mxu0 %v830
        %1811 = vmatmul.mubr.bf16.gmra.mxu0 %v829
        %v1812 = vpop.f32.mrf.mxu0
        %v1813 = vadd.f32 %v1668, %v1812
        %v1814 = vpop.f32.mrf.mxu0
        %v1815 = vpop.f32.mrf.mxu0
        %v1816 = vadd.f32 %v1671, %v1815
        %v1817 = vpop.f32.mrf.mxu0
        %1818 = vmatprep.mubr.bf16.mxu0 %v833
        %1819 = vmatmul.mubr.bf16.gmra.mxu0 %v832
        %v1820 = vpop.f32.mrf.mxu0
        %v1821 = vadd.f32 %v1676, %v1820
        %v1822 = vpop.f32.mrf.mxu0
        %v1823 = vpop.f32.mrf.mxu0
        %v1824 = vadd.f32 %v1679, %v1823
        %v1825 = vpop.f32.mrf.mxu0
        %1826 = vmatprep.mubr.bf16.mxu0 %v836
        %1827 = vmatmul.mubr.bf16.gmra.mxu0 %v835
        %v1828 = vpop.f32.mrf.mxu0
        %v1829 = vadd.f32 %v1684, %v1828
        %v1830 = vpop.f32.mrf.mxu0
        %v1831 = vpop.f32.mrf.mxu0
        %v1832 = vadd.f32 %v1687, %v1831
        %v1833 = vpop.f32.mrf.mxu0
        %1834 = vmatprep.mubr.bf16.mxu0 %v839
        %1835 = vmatmul.mubr.bf16.gmra.mxu0 %v838
        %v1836 = vpop.f32.mrf.mxu0
        %v1837 = vadd.f32 %v1692, %v1836
        %v1838 = vpop.f32.mrf.mxu0
        %v1839 = vpop.f32.mrf.mxu0
        %v1840 = vadd.f32 %v1695, %v1839
        %v1841 = vpop.f32.mrf.mxu0
        %1842 = vmatprep.mubr.bf16.mxu0 %v842
        %1843 = vmatmul.mubr.bf16.gmra.mxu0 %v841
        %v1844 = vpop.f32.mrf.mxu0
        %v1845 = vadd.f32 %v1700, %v1844
        %v1846 = vpop.f32.mrf.mxu0
        %v1847 = vpop.f32.mrf.mxu0
        %v1848 = vadd.f32 %v1703, %v1847
        %v1849 = vpop.f32.mrf.mxu0
        %1850 = vmatprep.mubr.bf16.mxu0 %v845
        %1851 = vmatmul.mubr.bf16.gmra.mxu0 %v844
        %v1852 = vpop.f32.mrf.mxu0
        %v1853 = vadd.f32 %v1708, %v1852
        %v1854 = vpop.f32.mrf.mxu0
        %v1855 = vpop.f32.mrf.mxu0
        %v1856 = vadd.f32 %v1711, %v1855
        %v1857 = vpop.f32.mrf.mxu0
        %1858 = vdwg.mxu0
        %1859 = vmatprep.subr.bf16.mxu0 0
        %1860 = vmatpush1.bf16.msra.mxu0 %v1206
        %1861 = vmatprep.subr.bf16.mxu0 0
        %1862 = vmatpush1.bf16.msra.mxu0 %v1205
        %1863 = vmatprep.subr.bf16.mxu0 0
        %1864 = vmatpush1.bf16.msra.mxu0 %v1204
        %1865 = vmatprep.subr.bf16.mxu0 0
        %1866 = vmatpush1.bf16.msra.mxu0 %v1203
        %1867 = vmatprep.subr.bf16.mxu0 0
        %1868 = vmatpush1.bf16.msra.mxu0 %v1202
        %1869 = vmatprep.subr.bf16.mxu0 0
        %1870 = vmatpush1.bf16.msra.mxu0 %v1201
        %1871 = vmatprep.subr.bf16.mxu0 0
        %1872 = vmatpush1.bf16.msra.mxu0 %v1200
        %1873 = vmatprep.subr.bf16.mxu0 0
        %1874 = vmatpush1.bf16.msra.mxu0 %v1199
        %1875 = vmatprep.subr.bf16.mxu0 0
        %1876 = vmatpush2.bf16.msra.mxu0 0
        %1877 = vmatprep.subr.bf16.mxu0 0
        %1878 = vmatpush2.bf16.msra.mxu0 0
        %1879 = vmatprep.subr.bf16.mxu0 0
        %1880 = vmatpush2.bf16.msra.mxu0 0
        %1881 = vmatprep.subr.bf16.mxu0 0
        %1882 = vmatpush2.bf16.msra.mxu0 0
        %1883 = vmatprep.subr.bf16.mxu0 0
        %1884 = vmatpush2.bf16.msra.mxu0 0
        %1885 = vmatprep.subr.bf16.mxu0 0
        %1886 = vmatpush2.bf16.msra.mxu0 0
        %1887 = vmatprep.subr.bf16.mxu0 0
        %1888 = vmatpush2.bf16.msra.mxu0 0
        %1889 = vmatprep.subr.bf16.mxu0 0
        %1890 = vmatpush2.bf16.msra.mxu0 0
        %1891 = vmatprep.mubr.bf16.mxu0 0
        %1892 = vmatmul.mubr.bf16.gmra.mxu0 %v807
        %v1893 = vpop.f32.mrf.mxu0
        %v1894 = vadd.f32 %v1749, %v1893
        %v1895 = vpop.f32.mrf.mxu0
        %v1896 = vpop.f32.mrf.mxu0
        %v1897 = vadd.f32 %v1752, %v1896
        %v1898 = vpop.f32.mrf.mxu0
        %1899 = vmatprep.mubr.bf16.mxu0 0
        %1900 = vmatmul.mubr.bf16.gmra.mxu0 %v810
        %v1901 = vpop.f32.mrf.mxu0
        %v1902 = vadd.f32 %v1757, %v1901
        %v1903 = vpop.f32.mrf.mxu0
        %v1904 = vpop.f32.mrf.mxu0
        %v1905 = vadd.f32 %v1760, %v1904
        %v1906 = vpop.f32.mrf.mxu0
        %1907 = vmatprep.mubr.bf16.mxu0 0
        %1908 = vmatmul.mubr.bf16.gmra.mxu0 %v813
        %v1909 = vpop.f32.mrf.mxu0
        %v1910 = vadd.f32 %v1765, %v1909
        %v1911 = vpop.f32.mrf.mxu0
        %v1912 = vpop.f32.mrf.mxu0
        %v1913 = vadd.f32 %v1768, %v1912
        %v1914 = vpop.f32.mrf.mxu0
        %1915 = vmatprep.mubr.bf16.mxu0 0
        %1916 = vmatmul.mubr.bf16.gmra.mxu0 %v816
        %v1917 = vpop.f32.mrf.mxu0
        %v1918 = vadd.f32 %v1773, %v1917
        %v1919 = vpop.f32.mrf.mxu0
        %v1920 = vpop.f32.mrf.mxu0
        %v1921 = vadd.f32 %v1776, %v1920
        %v1922 = vpop.f32.mrf.mxu0
        %1923 = vmatprep.mubr.bf16.mxu0 0
        %1924 = vmatmul.mubr.bf16.gmra.mxu0 %v819
        %v1925 = vpop.f32.mrf.mxu0
        %v1926 = vadd.f32 %v1781, %v1925
        %v1927 = vpop.f32.mrf.mxu0
        %v1928 = vpop.f32.mrf.mxu0
        %v1929 = vadd.f32 %v1784, %v1928
        %v1930 = vpop.f32.mrf.mxu0
        %1931 = vmatprep.mubr.bf16.mxu0 0
        %1932 = vmatmul.mubr.bf16.gmra.mxu0 %v822
        %v1933 = vpop.f32.mrf.mxu0
        %v1934 = vadd.f32 %v1789, %v1933
        %v1935 = vpop.f32.mrf.mxu0
        %v1936 = vpop.f32.mrf.mxu0
        %v1937 = vadd.f32 %v1792, %v1936
        %v1938 = vpop.f32.mrf.mxu0
        %1939 = vmatprep.mubr.bf16.mxu0 0
        %1940 = vmatmul.mubr.bf16.gmra.mxu0 %v825
        %v1941 = vpop.f32.mrf.mxu0
        %v1942 = vadd.f32 %v1797, %v1941
        %v1943 = vpop.f32.mrf.mxu0
        %v1944 = vpop.f32.mrf.mxu0
        %v1945 = vadd.f32 %v1800, %v1944
        %v1946 = vpop.f32.mrf.mxu0
        %1947 = vmatprep.mubr.bf16.mxu0 0
        %1948 = vmatmul.mubr.bf16.gmra.mxu0 %v828
        %v1949 = vpop.f32.mrf.mxu0
        %v1950 = vadd.f32 %v1805, %v1949
        %v1951 = vpop.f32.mrf.mxu0
        %v1952 = vpop.f32.mrf.mxu0
        %v1953 = vadd.f32 %v1808, %v1952
        %v1954 = vpop.f32.mrf.mxu0
        %1955 = vmatprep.mubr.bf16.mxu0 0
        %1956 = vmatmul.mubr.bf16.gmra.mxu0 %v831
        %v1957 = vpop.f32.mrf.mxu0
        %v1958 = vadd.f32 %v1813, %v1957
        %v1959 = vpop.f32.mrf.mxu0
        %v1960 = vpop.f32.mrf.mxu0
        %v1961 = vadd.f32 %v1816, %v1960
        %v1962 = vpop.f32.mrf.mxu0
        %1963 = vmatprep.mubr.bf16.mxu0 0
        %1964 = vmatmul.mubr.bf16.gmra.mxu0 %v834
        %v1965 = vpop.f32.mrf.mxu0
        %v1966 = vadd.f32 %v1821, %v1965
        %v1967 = vpop.f32.mrf.mxu0
        %v1968 = vpop.f32.mrf.mxu0
        %v1969 = vadd.f32 %v1824, %v1968
        %v1970 = vpop.f32.mrf.mxu0
        %1971 = vmatprep.mubr.bf16.mxu0 0
        %1972 = vmatmul.mubr.bf16.gmra.mxu0 %v837
        %v1973 = vpop.f32.mrf.mxu0
        %v1974 = vadd.f32 %v1829, %v1973
        %v1975 = vpop.f32.mrf.mxu0
        %v1976 = vpop.f32.mrf.mxu0
        %v1977 = vadd.f32 %v1832, %v1976
        %v1978 = vpop.f32.mrf.mxu0
        %1979 = vmatprep.mubr.bf16.mxu0 0
        %1980 = vmatmul.mubr.bf16.gmra.mxu0 %v840
        %v1981 = vpop.f32.mrf.mxu0
        %v1982 = vadd.f32 %v1837, %v1981
        %v1983 = vpop.f32.mrf.mxu0
        %v1984 = vpop.f32.mrf.mxu0
        %v1985 = vadd.f32 %v1840, %v1984
        %v1986 = vpop.f32.mrf.mxu0
        %1987 = vmatprep.mubr.bf16.mxu0 0
        %1988 = vmatmul.mubr.bf16.gmra.mxu0 %v843
        %v1989 = vpop.f32.mrf.mxu0
        %v1990 = vadd.f32 %v1845, %v1989
        %v1991 = vpop.f32.mrf.mxu0
        %v1992 = vpop.f32.mrf.mxu0
        %v1993 = vadd.f32 %v1848, %v1992
        %v1994 = vpop.f32.mrf.mxu0
        %1995 = vmatprep.mubr.bf16.mxu0 0
        %1996 = vmatmul.mubr.bf16.gmra.mxu0 %v846
        %v1997 = vpop.f32.mrf.mxu0
        %v1998 = vadd.f32 %v1853, %v1997
        %v1999 = vpop.f32.mrf.mxu0
        %v2000 = vpop.f32.mrf.mxu0
        %v2001 = vadd.f32 %v1856, %v2000
        %v2002 = vpop.f32.mrf.mxu0
        %2003 = vdwg.mxu0
        %v2004 = vld [vmem:[%s2] sm:$0x1]
        %v2006 = vlaneseq
        %v2007 = vshrl.u32 %v2006, 7
        %v2008 = vsub.s32 0, %v2007
        %v2009 = vrot.slane %v2004, %v2008
        %v2011 = vmul.f32 %v1894, %v2009
        %v2012 = vmul.f32 %v1897, %v2009
        %v2013 = vmul.f32 %v1902, %v2009
        %v2014 = vmul.f32 %v1905, %v2009
        %v2015 = vmul.f32 %v1910, %v2009
        %v2016 = vmul.f32 %v1913, %v2009
        %v2017 = vmul.f32 %v1918, %v2009
        %v2018 = vmul.f32 %v1921, %v2009
        %v2019 = vmul.f32 %v1926, %v2009
        %v2020 = vmul.f32 %v1929, %v2009
        %v2021 = vmul.f32 %v1934, %v2009
        %v2022 = vmul.f32 %v1937, %v2009
        %v2023 = vmul.f32 %v1942, %v2009
        %v2024 = vmul.f32 %v1945, %v2009
        %v2025 = vmul.f32 %v1950, %v2009
        %v2026 = vmul.f32 %v1953, %v2009
        %v2027 = vmul.f32 %v1958, %v2009
        %v2028 = vmul.f32 %v1961, %v2009
        %v2029 = vmul.f32 %v1966, %v2009
        %v2030 = vmul.f32 %v1969, %v2009
        %v2031 = vmul.f32 %v1974, %v2009
        %v2032 = vmul.f32 %v1977, %v2009
        %v2033 = vmul.f32 %v1982, %v2009
        %v2034 = vmul.f32 %v1985, %v2009
        %v2035 = vmul.f32 %v1990, %v2009
        %v2036 = vmul.f32 %v1993, %v2009
        %v2037 = vmul.f32 %v1998, %v2009
        %v2038 = vmul.f32 %v2001, %v2009
        %v2039 = vld [vmem:[%s3] sm:$0x1]
        %v2041 = vlaneseq
        %v2042 = vshrl.u32 %v2041, 7
        %v2043 = vsub.s32 0, %v2042
        %v2044 = vrot.slane %v2039, %v2043
        %v2046 = vadd.f32 %v2011, %v2044
        %v2047 = vadd.f32 %v2012, %v2044
        %v2048 = vadd.f32 %v2013, %v2044
        %v2049 = vadd.f32 %v2014, %v2044
        %v2050 = vadd.f32 %v2015, %v2044
        %v2051 = vadd.f32 %v2016, %v2044
        %v2052 = vadd.f32 %v2017, %v2044
        %v2053 = vadd.f32 %v2018, %v2044
        %v2054 = vadd.f32 %v2019, %v2044
        %v2055 = vadd.f32 %v2020, %v2044
        %v2056 = vadd.f32 %v2021, %v2044
        %v2057 = vadd.f32 %v2022, %v2044
        %v2058 = vadd.f32 %v2023, %v2044
        %v2059 = vadd.f32 %v2024, %v2044
        %v2060 = vadd.f32 %v2025, %v2044
        %v2061 = vadd.f32 %v2026, %v2044
        %v2062 = vadd.f32 %v2027, %v2044
        %v2063 = vadd.f32 %v2028, %v2044
        %v2064 = vadd.f32 %v2029, %v2044
        %v2065 = vadd.f32 %v2030, %v2044
        %v2066 = vadd.f32 %v2031, %v2044
        %v2067 = vadd.f32 %v2032, %v2044
        %v2068 = vadd.f32 %v2033, %v2044
        %v2069 = vadd.f32 %v2034, %v2044
        %v2070 = vadd.f32 %v2035, %v2044
        %v2071 = vadd.f32 %v2036, %v2044
        %v2072 = vadd.f32 %v2037, %v2044
        %v2073 = vadd.f32 %v2038, %v2044
        %v2074 = vmax.f32 %v2046, 0.0
        %v2075 = vmax.f32 %v2047, 0.0
        %v2076 = vmax.f32 %v2048, 0.0
        %v2077 = vmax.f32 %v2049, 0.0
        %v2078 = vmax.f32 %v2050, 0.0
        %v2079 = vmax.f32 %v2051, 0.0
        %v2080 = vmax.f32 %v2052, 0.0
        %v2081 = vmax.f32 %v2053, 0.0
        %v2082 = vmax.f32 %v2054, 0.0
        %v2083 = vmax.f32 %v2055, 0.0
        %v2084 = vmax.f32 %v2056, 0.0
        %v2085 = vmax.f32 %v2057, 0.0
        %v2086 = vmax.f32 %v2058, 0.0
        %v2087 = vmax.f32 %v2059, 0.0
        %v2088 = vmax.f32 %v2060, 0.0
        %v2089 = vmax.f32 %v2061, 0.0
        %v2090 = vmax.f32 %v2062, 0.0
        %v2091 = vmax.f32 %v2063, 0.0
        %v2092 = vmax.f32 %v2064, 0.0
        %v2093 = vmax.f32 %v2065, 0.0
        %v2094 = vmax.f32 %v2066, 0.0
        %v2095 = vmax.f32 %v2067, 0.0
        %v2096 = vmax.f32 %v2068, 0.0
        %v2097 = vmax.f32 %v2069, 0.0
        %v2098 = vmax.f32 %v2070, 0.0
        %v2099 = vmax.f32 %v2071, 0.0
        %v2100 = vmax.f32 %v2072, 0.0
        %v2101 = vmax.f32 %v2073, 0.0
        %v2102 = vld [vmem:[#allocation6] sm:$0xf]
        %v2103 = vld [vmem:[#allocation6 + $0x4] sm:$0xf]
        %v2104 = vld [vmem:[#allocation6 + $0x8] sm:$0xf]
        %v2105 = vld [vmem:[#allocation6 + $0xc] sm:$0xf]
        %v2106 = vld [vmem:[#allocation6 + $0x10] sm:$0xf]
        %v2107 = vld [vmem:[#allocation6 + $0x14] sm:$0xf]
        %v2108 = vld [vmem:[#allocation6 + $0x18] sm:$0xf]
        %v2109 = vld [vmem:[#allocation6 + $0x1c] sm:$0xf]
        %v2110 = vld [vmem:[#allocation6 + $0x20] sm:$0xf]
        %v2111 = vld [vmem:[#allocation6 + $0x24] sm:$0xf]
        %v2112 = vld [vmem:[#allocation6 + $0x28] sm:$0xf]
        %v2113 = vld [vmem:[#allocation6 + $0x2c] sm:$0xf]
        %v2114 = vld [vmem:[#allocation6 + $0x30] sm:$0xf]
        %v2115 = vld [vmem:[#allocation6 + $0x34] sm:$0xf]
        %v2116 = vld [vmem:[#allocation6 + $0x38] sm:$0xf]
        %v2117 = vld [vmem:[#allocation6 + $0x3c] sm:$0xf]
        %v2118 = vld [vmem:[#allocation6 + $0x40] sm:$0xf]
        %v2119 = vld [vmem:[#allocation6 + $0x44] sm:$0xf]
        %v2120 = vld [vmem:[#allocation6 + $0x48] sm:$0xf]
        %v2121 = vld [vmem:[#allocation6 + $0x4c] sm:$0xf]
        %v2122 = vld [vmem:[#allocation6 + $0x50] sm:$0xf]
        %v2123 = vld [vmem:[#allocation6 + $0x54] sm:$0xf]
        %v2124 = vld [vmem:[#allocation6 + $0x58] sm:$0xf]
        %v2125 = vld [vmem:[#allocation6 + $0x5c] sm:$0xf]
        %v2126 = vld [vmem:[#allocation6 + $0x60] sm:$0xf]
        %v2127 = vld [vmem:[#allocation6 + $0x64] sm:$0xf]
        %v2128 = vld [vmem:[#allocation6 + $0x68] sm:$0xf]
        %v2129 = vld [vmem:[#allocation6 + $0x6c] sm:$0xf]
        %v2130 = vld [vmem:[#allocation6 + $0x70] sm:$0xf]
        %v2131 = vld [vmem:[#allocation6 + $0x74] sm:$0xf]
        %v2132 = vld [vmem:[#allocation6 + $0x78] sm:$0xf]
        %v2133 = vld [vmem:[#allocation6 + $0x7c] sm:$0xf]
        %v2134 = vld [vmem:[#allocation6 + $0x80] sm:$0xf]
        %v2135 = vld [vmem:[#allocation6 + $0x84] sm:$0xf]
        %v2136 = vld [vmem:[#allocation6 + $0x88] sm:$0xf]
        %v2137 = vld [vmem:[#allocation6 + $0x8c] sm:$0xf]
        %v2138 = vld [vmem:[#allocation6 + $0x90] sm:$0xf]
        %v2139 = vld [vmem:[#allocation6 + $0x94] sm:$0xf]
        %v2140 = vld [vmem:[#allocation6 + $0x98] sm:$0xf]
        %v2141 = vld [vmem:[#allocation6 + $0x9c] sm:$0xf]
        %v2142 = vld [vmem:[#allocation6 + $0xa0] sm:$0xf]
        %v2143 = vld [vmem:[#allocation6 + $0xa4] sm:$0xf]
        %v2144 = vld [vmem:[#allocation6 + $0xa8] sm:$0xf]
        %v2145 = vld [vmem:[#allocation6 + $0xac] sm:$0xf]
        %v2146 = vld [vmem:[#allocation6 + $0xb0] sm:$0xf]
        %v2147 = vld [vmem:[#allocation6 + $0xb4] sm:$0xf]
        %v2148 = vld [vmem:[#allocation6 + $0xb8] sm:$0xf]
        %v2149 = vld [vmem:[#allocation6 + $0xbc] sm:$0xf]
        %v2150 = vld [vmem:[#allocation6 + $0xc0] sm:$0xf]
        %v2151 = vld [vmem:[#allocation6 + $0xc4] sm:$0xf]
        %v2152 = vld [vmem:[#allocation6 + $0xc8] sm:$0xf]
        %v2153 = vld [vmem:[#allocation6 + $0xcc] sm:$0xf]
        %v2154 = vld [vmem:[#allocation6 + $0xd0] sm:$0xf]
        %v2155 = vld [vmem:[#allocation6 + $0xd4] sm:$0xf]
        %v2156 = vld [vmem:[#allocation6 + $0xd8] sm:$0xf]
        %v2157 = vld [vmem:[#allocation6 + $0xdc] sm:$0xf]
        %v2158 = vld [vmem:[#allocation6 + $0xe0] sm:$0xf]
        %v2159 = vld [vmem:[#allocation6 + $0xe4] sm:$0xf]
        %v2160 = vld [vmem:[#allocation6 + $0xe8] sm:$0xf]
        %v2161 = vld [vmem:[#allocation6 + $0xec] sm:$0xf]
        %v2162 = vld [vmem:[#allocation6 + $0xf0] sm:$0xf]
        %v2163 = vld [vmem:[#allocation6 + $0xf4] sm:$0xf]
        %v2164 = vld [vmem:[#allocation6 + $0xf8] sm:$0xf]
        %v2165 = vld [vmem:[#allocation6 + $0xfc] sm:$0xf]
        %v2166 = vld [vmem:[#allocation6 + $0x100] sm:$0xf]
        %v2167 = vld [vmem:[#allocation6 + $0x104] sm:$0xf]
        %v2168 = vld [vmem:[#allocation6 + $0x108] sm:$0xf]
        %v2169 = vld [vmem:[#allocation6 + $0x10c] sm:$0xf]
        %v2170 = vld [vmem:[#allocation6 + $0x110] sm:$0xf]
        %v2171 = vld [vmem:[#allocation6 + $0x114] sm:$0xf]
        %v2172 = vld [vmem:[#allocation6 + $0x118] sm:$0xf]
        %v2173 = vld [vmem:[#allocation6 + $0x11c] sm:$0xf]
        %v2174 = vld [vmem:[#allocation6 + $0x120] sm:$0xf]
        %v2175 = vld [vmem:[#allocation6 + $0x124] sm:$0xf]
        %v2176 = vld [vmem:[#allocation6 + $0x128] sm:$0xf]
        %v2177 = vld [vmem:[#allocation6 + $0x12c] sm:$0xf]
        %v2178 = vld [vmem:[#allocation6 + $0x130] sm:$0xf]
        %v2179 = vld [vmem:[#allocation6 + $0x134] sm:$0xf]
        %v2180 = vld [vmem:[#allocation6 + $0x138] sm:$0xf]
        %v2181 = vld [vmem:[#allocation6 + $0x13c] sm:$0xf]
        %v2182 = vld [vmem:[#allocation6 + $0x140] sm:$0xf]
        %v2183 = vld [vmem:[#allocation6 + $0x144] sm:$0xf]
        %v2184 = vld [vmem:[#allocation6 + $0x148] sm:$0xf]
        %v2185 = vld [vmem:[#allocation6 + $0x14c] sm:$0xf]
        %v2186 = vld [vmem:[#allocation6 + $0x150] sm:$0xf]
        %v2187 = vld [vmem:[#allocation6 + $0x154] sm:$0xf]
        %v2188 = vld [vmem:[#allocation6 + $0x158] sm:$0xf]
        %v2189 = vld [vmem:[#allocation6 + $0x15c] sm:$0xf]
        %v2190 = vld [vmem:[#allocation6 + $0x160] sm:$0xf]
        %v2191 = vld [vmem:[#allocation6 + $0x164] sm:$0xf]
        %v2192 = vld [vmem:[#allocation6 + $0x168] sm:$0xf]
        %v2193 = vld [vmem:[#allocation6 + $0x16c] sm:$0xf]
        %v2194 = vld [vmem:[#allocation6 + $0x170] sm:$0xf]
        %v2195 = vld [vmem:[#allocation6 + $0x174] sm:$0xf]
        %v2196 = vld [vmem:[#allocation6 + $0x178] sm:$0xf]
        %v2197 = vld [vmem:[#allocation6 + $0x17c] sm:$0xf]
        %v2198 = vld [vmem:[#allocation6 + $0x180] sm:$0xf]
        %v2199 = vld [vmem:[#allocation6 + $0x184] sm:$0xf]
        %v2200 = vld [vmem:[#allocation6 + $0x188] sm:$0xf]
        %v2201 = vld [vmem:[#allocation6 + $0x18c] sm:$0xf]
        %v2202 = vld [vmem:[#allocation6 + $0x190] sm:$0xf]
        %v2203 = vld [vmem:[#allocation6 + $0x194] sm:$0xf]
        %v2204 = vld [vmem:[#allocation6 + $0x198] sm:$0xf]
        %v2205 = vld [vmem:[#allocation6 + $0x19c] sm:$0xf]
        %v2206 = vld [vmem:[#allocation6 + $0x1a0] sm:$0xf]
        %v2207 = vld [vmem:[#allocation6 + $0x1a4] sm:$0xf]
        %v2208 = vld [vmem:[#allocation6 + $0x1a8] sm:$0xf]
        %v2209 = vld [vmem:[#allocation6 + $0x1ac] sm:$0xf]
        %v2210 = vld [vmem:[#allocation6 + $0x1b0] sm:$0xf]
        %v2211 = vld [vmem:[#allocation6 + $0x1b4] sm:$0xf]
        %v2212 = vld [vmem:[#allocation6 + $0x1b8] sm:$0xf]
        %v2213 = vld [vmem:[#allocation6 + $0x1bc] sm:$0xf]
        %v2214 = vld [vmem:[#allocation6 + $0x1c0] sm:$0xf]
        %v2215 = vld [vmem:[#allocation6 + $0x1c4] sm:$0xf]
        %v2216 = vld [vmem:[#allocation6 + $0x1c8] sm:$0xf]
        %v2217 = vld [vmem:[#allocation6 + $0x1cc] sm:$0xf]
        %v2218 = vld [vmem:[#allocation6 + $0x1d0] sm:$0xf]
        %v2219 = vld [vmem:[#allocation6 + $0x1d4] sm:$0xf]
        %v2220 = vld [vmem:[#allocation6 + $0x1d8] sm:$0xf]
        %v2221 = vld [vmem:[#allocation6 + $0x1dc] sm:$0xf]
        %v2222 = vld [vmem:[#allocation6 + $0x1e0] sm:$0xf]
        %v2223 = vld [vmem:[#allocation6 + $0x1e4] sm:$0xf]
        %v2224 = vld [vmem:[#allocation6 + $0x1e8] sm:$0xf]
        %v2225 = vld [vmem:[#allocation6 + $0x1ec] sm:$0xf]
        %v2226 = vld [vmem:[#allocation6 + $0x1f0] sm:$0xf]
        %v2227 = vld [vmem:[#allocation6 + $0x1f4] sm:$0xf]
        %v2228 = vld [vmem:[#allocation6 + $0x1f8] sm:$0xf]
        %v2229 = vld [vmem:[#allocation6 + $0x1fc] sm:$0xf]
        %v2230 = vld [vmem:[#allocation6 + $0x200] sm:$0xf]
        %v2231 = vld [vmem:[#allocation6 + $0x204] sm:$0xf]
        %v2232 = vld [vmem:[#allocation6 + $0x208] sm:$0xf]
        %v2233 = vld [vmem:[#allocation6 + $0x20c] sm:$0xf]
        %v2234 = vld [vmem:[#allocation6 + $0x210] sm:$0xf]
        %v2235 = vld [vmem:[#allocation6 + $0x214] sm:$0xf]
        %v2236 = vld [vmem:[#allocation6 + $0x218] sm:$0xf]
        %v2237 = vld [vmem:[#allocation6 + $0x21c] sm:$0xf]
        %v2238 = vld [vmem:[#allocation6 + $0x220] sm:$0xf]
        %v2239 = vld [vmem:[#allocation6 + $0x224] sm:$0xf]
        %v2240 = vld [vmem:[#allocation6 + $0x228] sm:$0xf]
        %v2241 = vld [vmem:[#allocation6 + $0x22c] sm:$0xf]
        %v2242 = vld [vmem:[#allocation6 + $0x230] sm:$0xf]
        %v2243 = vld [vmem:[#allocation6 + $0x234] sm:$0xf]
        %v2244 = vld [vmem:[#allocation6 + $0x238] sm:$0xf]
        %v2245 = vld [vmem:[#allocation6 + $0x23c] sm:$0xf]
        %v2271 = vrot.slane %v2074, 1
        %v2272 = vrot.slane %v2075, 1
        %v2273 = vsel %vm599, %v2271, %v2272
        %v2274 = vrot.slane %v2076, 1
        %v2275 = vsel %vm599, %v2272, %v2274
        %v2276 = vrot.slane %v2077, 1
        %v2277 = vsel %vm599, %v2274, %v2276
        %v2278 = vrot.slane %v2078, 1
        %v2279 = vsel %vm599, %v2276, %v2278
        %v2280 = vrot.slane %v2079, 1
        %v2281 = vsel %vm599, %v2278, %v2280
        %v2282 = vrot.slane %v2080, 1
        %v2283 = vsel %vm599, %v2280, %v2282
        %v2284 = vrot.slane %v2081, 1
        %v2285 = vsel %vm599, %v2282, %v2284
        %v2286 = vrot.slane %v2082, 1
        %v2287 = vsel %vm599, %v2284, %v2286
        %v2288 = vrot.slane %v2083, 1
        %v2289 = vsel %vm599, %v2286, %v2288
        %v2290 = vrot.slane %v2084, 1
        %v2291 = vsel %vm599, %v2288, %v2290
        %v2292 = vrot.slane %v2085, 1
        %v2293 = vsel %vm599, %v2290, %v2292
        %v2294 = vrot.slane %v2086, 1
        %v2295 = vsel %vm599, %v2292, %v2294
        %v2296 = vrot.slane %v2087, 1
        %v2297 = vsel %vm599, %v2294, %v2296
        %v2298 = vrot.slane %v2088, 1
        %v2299 = vsel %vm599, %v2296, %v2298
        %v2300 = vrot.slane %v2089, 1
        %v2301 = vsel %vm599, %v2298, %v2300
        %v2302 = vrot.slane %v2090, 1
        %v2303 = vsel %vm599, %v2300, %v2302
        %v2304 = vrot.slane %v2091, 1
        %v2305 = vsel %vm599, %v2302, %v2304
        %v2306 = vrot.slane %v2092, 1
        %v2307 = vsel %vm599, %v2304, %v2306
        %v2308 = vrot.slane %v2093, 1
        %v2309 = vsel %vm599, %v2306, %v2308
        %v2310 = vrot.slane %v2094, 1
        %v2311 = vsel %vm599, %v2308, %v2310
        %v2312 = vrot.slane %v2095, 1
        %v2313 = vsel %vm599, %v2310, %v2312
        %v2314 = vrot.slane %v2096, 1
        %v2315 = vsel %vm599, %v2312, %v2314
        %v2316 = vrot.slane %v2097, 1
        %v2317 = vsel %vm599, %v2314, %v2316
        %v2318 = vrot.slane %v2098, 1
        %v2319 = vsel %vm599, %v2316, %v2318
        %v2344 = vrot.slane %v2074, 2
        %v2345 = vrot.slane %v2075, 2
        %v2346 = vsel %vm685, %v2344, %v2345
        %v2347 = vrot.slane %v2076, 2
        %v2348 = vsel %vm685, %v2345, %v2347
        %v2349 = vrot.slane %v2077, 2
        %v2350 = vsel %vm685, %v2347, %v2349
        %v2351 = vrot.slane %v2078, 2
        %v2352 = vsel %vm685, %v2349, %v2351
        %v2353 = vrot.slane %v2079, 2
        %v2354 = vsel %vm685, %v2351, %v2353
        %v2355 = vrot.slane %v2080, 2
        %v2356 = vsel %vm685, %v2353, %v2355
        %v2357 = vrot.slane %v2081, 2
        %v2358 = vsel %vm685, %v2355, %v2357
        %v2359 = vrot.slane %v2082, 2
        %v2360 = vsel %vm685, %v2357, %v2359
        %v2361 = vrot.slane %v2083, 2
        %v2362 = vsel %vm685, %v2359, %v2361
        %v2363 = vrot.slane %v2084, 2
        %v2364 = vsel %vm685, %v2361, %v2363
        %v2365 = vrot.slane %v2085, 2
        %v2366 = vsel %vm685, %v2363, %v2365
        %v2367 = vrot.slane %v2086, 2
        %v2368 = vsel %vm685, %v2365, %v2367
        %v2369 = vrot.slane %v2087, 2
        %v2370 = vsel %vm685, %v2367, %v2369
        %v2371 = vrot.slane %v2088, 2
        %v2372 = vsel %vm685, %v2369, %v2371
        %v2373 = vrot.slane %v2089, 2
        %v2374 = vsel %vm685, %v2371, %v2373
        %v2375 = vrot.slane %v2090, 2
        %v2376 = vsel %vm685, %v2373, %v2375
        %v2377 = vrot.slane %v2091, 2
        %v2378 = vsel %vm685, %v2375, %v2377
        %v2379 = vrot.slane %v2092, 2
        %v2380 = vsel %vm685, %v2377, %v2379
        %v2381 = vrot.slane %v2093, 2
        %v2382 = vsel %vm685, %v2379, %v2381
        %v2383 = vrot.slane %v2094, 2
        %v2384 = vsel %vm685, %v2381, %v2383
        %v2385 = vrot.slane %v2095, 2
        %v2386 = vsel %vm685, %v2383, %v2385
        %v2387 = vrot.slane %v2096, 2
        %v2388 = vsel %vm685, %v2385, %v2387
        %v2389 = vrot.slane %v2097, 2
        %v2390 = vsel %vm685, %v2387, %v2389
        %v2391 = vrot.slane %v2098, 2
        %v2392 = vsel %vm685, %v2389, %v2391
        %v2419 = vrot.slane %v2099, 1
        %v2420 = vsel %vm599, %v2318, %v2419
        %v2421 = vrot.slane %v2100, 1
        %v2422 = vsel %vm599, %v2419, %v2421
        %v2425 = vrot.slane %v2099, 2
        %v2426 = vsel %vm685, %v2391, %v2425
        %v2427 = vrot.slane %v2100, 2
        %v2428 = vsel %vm685, %v2425, %v2427
        %v2432 = vrot.slane %v2101, 1
        %v2433 = vsel %vm599, %v2421, %v2432
        %v2434 = vsel %vm599, %v2432, %v789
        %v2437 = vrot.slane %v2101, 2
        %v2438 = vsel %vm685, %v2427, %v2437
        %v2439 = vsel %vm685, %v2437, %v795
        %v2442 = vpack.c.bf16 %v2075, %v2074
        %v2443 = vpack.c.bf16 %v2275, %v2273
        %v2444 = vpack.c.bf16 %v2348, %v2346
        %v2445 = vpack.c.bf16 %v2077, %v2076
        %v2446 = vpack.c.bf16 %v2279, %v2277
        %v2447 = vpack.c.bf16 %v2352, %v2350
        %v2448 = vpack.c.bf16 %v2079, %v2078
        %v2449 = vpack.c.bf16 %v2283, %v2281
        %v2450 = vpack.c.bf16 %v2356, %v2354
        %v2451 = vpack.c.bf16 %v2081, %v2080
        %v2452 = vpack.c.bf16 %v2287, %v2285
        %v2453 = vpack.c.bf16 %v2360, %v2358
        %v2454 = vpack.c.bf16 %v2083, %v2082
        %v2455 = vpack.c.bf16 %v2291, %v2289
        %v2456 = vpack.c.bf16 %v2364, %v2362
        %v2457 = vpack.c.bf16 %v2085, %v2084
        %v2458 = vpack.c.bf16 %v2295, %v2293
        %v2459 = vpack.c.bf16 %v2368, %v2366
        %v2460 = vpack.c.bf16 %v2087, %v2086
        %v2461 = vpack.c.bf16 %v2299, %v2297
        %v2462 = vpack.c.bf16 %v2372, %v2370
        %v2463 = vpack.c.bf16 %v2089, %v2088
        %v2464 = vpack.c.bf16 %v2303, %v2301
        %v2465 = vpack.c.bf16 %v2376, %v2374
        %v2466 = vpack.c.bf16 %v2091, %v2090
        %v2467 = vpack.c.bf16 %v2307, %v2305
        %v2468 = vpack.c.bf16 %v2380, %v2378
        %v2469 = vpack.c.bf16 %v2093, %v2092
        %v2470 = vpack.c.bf16 %v2311, %v2309
        %v2471 = vpack.c.bf16 %v2384, %v2382
        %v2472 = vpack.c.bf16 %v2095, %v2094
        %v2473 = vpack.c.bf16 %v2315, %v2313
        %v2474 = vpack.c.bf16 %v2388, %v2386
        %v2475 = vpack.c.bf16 %v2097, %v2096
        %v2476 = vpack.c.bf16 %v2319, %v2317
        %v2477 = vpack.c.bf16 %v2392, %v2390
        %v2478 = vpack.c.bf16 %v2099, %v2098
        %v2479 = vpack.c.bf16 %v2422, %v2420
        %v2480 = vpack.c.bf16 %v2428, %v2426
        %v2481 = vpack.c.bf16 %v2101, %v2100
        %v2482 = vpack.c.bf16 %v2434, %v2433
        %v2483 = vpack.c.bf16 %v2439, %v2438
        %v2628 = vunpack.c.l.b16 %v2102
        %v2629 = vunpack.c.l.b16 %v2103
        %v2630 = vunpack.c.l.b16 %v2104
        %v2631 = vunpack.c.l.b16 %v2105
        %v2632 = vunpack.c.l.b16 %v2106
        %v2633 = vunpack.c.l.b16 %v2107
        %v2634 = vunpack.c.l.b16 %v2108
        %v2635 = vunpack.c.l.b16 %v2109
        %v2636 = vunpack.c.l.b16 %v2110
        %v2637 = vunpack.c.l.b16 %v2111
        %v2638 = vunpack.c.l.b16 %v2112
        %v2639 = vunpack.c.l.b16 %v2113
        %v2640 = vunpack.c.l.b16 %v2114
        %v2641 = vunpack.c.l.b16 %v2115
        %v2642 = vunpack.c.l.b16 %v2116
        %v2643 = vunpack.c.l.b16 %v2117
        %v2644 = vunpack.c.l.b16 %v2118
        %v2645 = vunpack.c.l.b16 %v2119
        %v2646 = vunpack.c.l.b16 %v2120
        %v2647 = vunpack.c.l.b16 %v2121
        %v2648 = vunpack.c.l.b16 %v2122
        %v2649 = vunpack.c.l.b16 %v2123
        %v2650 = vunpack.c.l.b16 %v2124
        %v2651 = vunpack.c.l.b16 %v2125
        %v2652 = vunpack.c.l.b16 %v2126
        %v2653 = vunpack.c.l.b16 %v2127
        %v2654 = vunpack.c.l.b16 %v2128
        %v2655 = vunpack.c.l.b16 %v2129
        %v2656 = vunpack.c.l.b16 %v2130
        %v2657 = vunpack.c.l.b16 %v2131
        %v2658 = vunpack.c.l.b16 %v2132
        %v2659 = vunpack.c.l.b16 %v2133
        %v2660 = vunpack.c.l.b16 %v2134
        %v2661 = vunpack.c.l.b16 %v2135
        %v2662 = vunpack.c.l.b16 %v2136
        %v2663 = vunpack.c.l.b16 %v2137
        %v2664 = vunpack.c.l.b16 %v2138
        %v2665 = vunpack.c.l.b16 %v2139
        %v2666 = vunpack.c.l.b16 %v2140
        %v2667 = vunpack.c.l.b16 %v2141
        %v2668 = vunpack.c.l.b16 %v2142
        %v2669 = vunpack.c.l.b16 %v2143
        %v2670 = vunpack.c.l.b16 %v2144
        %v2671 = vunpack.c.l.b16 %v2145
        %v2672 = vunpack.c.l.b16 %v2146
        %v2673 = vunpack.c.l.b16 %v2147
        %v2674 = vunpack.c.l.b16 %v2148
        %v2675 = vunpack.c.l.b16 %v2149
        %v2676 = vunpack.c.l.b16 %v2150
        %v2677 = vunpack.c.l.b16 %v2151
        %v2678 = vunpack.c.l.b16 %v2152
        %v2679 = vunpack.c.l.b16 %v2153
        %v2680 = vunpack.c.l.b16 %v2154
        %v2681 = vunpack.c.l.b16 %v2155
        %v2682 = vunpack.c.l.b16 %v2156
        %v2683 = vunpack.c.l.b16 %v2157
        %v2684 = vunpack.c.l.b16 %v2158
        %v2685 = vunpack.c.l.b16 %v2159
        %v2686 = vunpack.c.l.b16 %v2160
        %v2687 = vunpack.c.l.b16 %v2161
        %v2688 = vunpack.c.l.b16 %v2162
        %v2689 = vunpack.c.l.b16 %v2163
        %v2690 = vunpack.c.l.b16 %v2164
        %v2691 = vunpack.c.l.b16 %v2165
        %v2692 = vunpack.c.l.b16 %v2166
        %v2693 = vunpack.c.l.b16 %v2167
        %v2694 = vunpack.c.l.b16 %v2168
        %v2695 = vunpack.c.l.b16 %v2169
        %v2696 = vunpack.c.l.b16 %v2170
        %v2697 = vunpack.c.l.b16 %v2171
        %v2698 = vunpack.c.l.b16 %v2172
        %v2699 = vunpack.c.l.b16 %v2173
        %v2700 = vunpack.c.l.b16 %v2174
        %v2701 = vunpack.c.l.b16 %v2175
        %v2702 = vunpack.c.l.b16 %v2176
        %v2703 = vunpack.c.l.b16 %v2177
        %v2704 = vunpack.c.l.b16 %v2178
        %v2705 = vunpack.c.l.b16 %v2179
        %v2706 = vunpack.c.l.b16 %v2180
        %v2707 = vunpack.c.l.b16 %v2181
        %v2708 = vunpack.c.l.b16 %v2182
        %v2709 = vunpack.c.l.b16 %v2183
        %v2710 = vunpack.c.l.b16 %v2184
        %v2711 = vunpack.c.l.b16 %v2185
        %v2712 = vunpack.c.l.b16 %v2186
        %v2713 = vunpack.c.l.b16 %v2187
        %v2714 = vunpack.c.l.b16 %v2188
        %v2715 = vunpack.c.l.b16 %v2189
        %v2716 = vunpack.c.l.b16 %v2190
        %v2717 = vunpack.c.l.b16 %v2191
        %v2718 = vunpack.c.l.b16 %v2192
        %v2719 = vunpack.c.l.b16 %v2193
        %v2720 = vunpack.c.l.b16 %v2194
        %v2721 = vunpack.c.l.b16 %v2195
        %v2722 = vunpack.c.l.b16 %v2196
        %v2723 = vunpack.c.l.b16 %v2197
        %v2724 = vunpack.c.l.b16 %v2198
        %v2725 = vunpack.c.l.b16 %v2199
        %v2726 = vunpack.c.l.b16 %v2200
        %v2727 = vunpack.c.l.b16 %v2201
        %v2728 = vunpack.c.l.b16 %v2202
        %v2729 = vunpack.c.l.b16 %v2203
        %v2730 = vunpack.c.l.b16 %v2204
        %v2731 = vunpack.c.l.b16 %v2205
        %v2732 = vunpack.c.l.b16 %v2206
        %v2733 = vunpack.c.l.b16 %v2207
        %v2734 = vunpack.c.l.b16 %v2208
        %v2735 = vunpack.c.l.b16 %v2209
        %v2736 = vunpack.c.l.b16 %v2210
        %v2737 = vunpack.c.l.b16 %v2211
        %v2738 = vunpack.c.l.b16 %v2212
        %v2739 = vunpack.c.l.b16 %v2213
        %v2740 = vunpack.c.l.b16 %v2214
        %v2741 = vunpack.c.l.b16 %v2215
        %v2742 = vunpack.c.l.b16 %v2216
        %v2743 = vunpack.c.l.b16 %v2217
        %v2744 = vunpack.c.l.b16 %v2218
        %v2745 = vunpack.c.l.b16 %v2219
        %v2746 = vunpack.c.l.b16 %v2220
        %v2747 = vunpack.c.l.b16 %v2221
        %v2748 = vunpack.c.l.b16 %v2222
        %v2749 = vunpack.c.l.b16 %v2223
        %v2750 = vunpack.c.l.b16 %v2224
        %v2751 = vunpack.c.l.b16 %v2225
        %v2752 = vunpack.c.l.b16 %v2226
        %v2753 = vunpack.c.l.b16 %v2227
        %v2754 = vunpack.c.l.b16 %v2228
        %v2755 = vunpack.c.l.b16 %v2229
        %v2756 = vunpack.c.l.b16 %v2230
        %v2757 = vunpack.c.l.b16 %v2231
        %v2758 = vunpack.c.l.b16 %v2232
        %v2759 = vunpack.c.l.b16 %v2233
        %v2760 = vunpack.c.l.b16 %v2234
        %v2761 = vunpack.c.l.b16 %v2235
        %v2762 = vunpack.c.l.b16 %v2236
        %v2763 = vunpack.c.l.b16 %v2237
        %v2764 = vunpack.c.l.b16 %v2238
        %v2765 = vunpack.c.l.b16 %v2239
        %v2766 = vunpack.c.l.b16 %v2240
        %v2767 = vunpack.c.l.b16 %v2241
        %v2768 = vunpack.c.l.b16 %v2242
        %v2769 = vunpack.c.l.b16 %v2243
        %v2770 = vunpack.c.l.b16 %v2244
        %v2771 = vunpack.c.l.b16 %v2245
        %v2772 = vpack.c.b16 %v2629, %v2628
        %v2773 = vpack.c.b16 %v2631, %v2630
        %v2774 = vpack.c.b16 %v2633, %v2632
        %v2775 = vpack.c.b16 %v2635, %v2634
        %v2776 = vpack.c.b16 %v2637, %v2636
        %v2777 = vpack.c.b16 %v2639, %v2638
        %v2778 = vpack.c.b16 %v2641, %v2640
        %v2779 = vpack.c.b16 %v2643, %v2642
        %v2780 = vpack.c.b16 %v2645, %v2644
        %v2781 = vpack.c.b16 %v2647, %v2646
        %v2782 = vpack.c.b16 %v2649, %v2648
        %v2783 = vpack.c.b16 %v2651, %v2650
        %v2784 = vpack.c.b16 %v2653, %v2652
        %v2785 = vpack.c.b16 %v2655, %v2654
        %v2786 = vpack.c.b16 %v2657, %v2656
        %v2787 = vpack.c.b16 %v2659, %v2658
        %v2788 = vpack.c.b16 %v2661, %v2660
        %v2789 = vpack.c.b16 %v2663, %v2662
        %v2790 = vpack.c.b16 %v2665, %v2664
        %v2791 = vpack.c.b16 %v2667, %v2666
        %v2792 = vpack.c.b16 %v2669, %v2668
        %v2793 = vpack.c.b16 %v2671, %v2670
        %v2794 = vpack.c.b16 %v2673, %v2672
        %v2795 = vpack.c.b16 %v2675, %v2674
        %v2796 = vpack.c.b16 %v2677, %v2676
        %v2797 = vpack.c.b16 %v2679, %v2678
        %v2798 = vpack.c.b16 %v2681, %v2680
        %v2799 = vpack.c.b16 %v2683, %v2682
        %v2800 = vpack.c.b16 %v2685, %v2684
        %v2801 = vpack.c.b16 %v2687, %v2686
        %v2802 = vpack.c.b16 %v2689, %v2688
        %v2803 = vpack.c.b16 %v2691, %v2690
        %v2804 = vpack.c.b16 %v2693, %v2692
        %v2805 = vpack.c.b16 %v2695, %v2694
        %v2806 = vpack.c.b16 %v2697, %v2696
        %v2807 = vpack.c.b16 %v2699, %v2698
        %v2808 = vpack.c.b16 %v2701, %v2700
        %v2809 = vpack.c.b16 %v2703, %v2702
        %v2810 = vpack.c.b16 %v2705, %v2704
        %v2811 = vpack.c.b16 %v2707, %v2706
        %v2812 = vpack.c.b16 %v2709, %v2708
        %v2813 = vpack.c.b16 %v2711, %v2710
        %v2814 = vpack.c.b16 %v2713, %v2712
        %v2815 = vpack.c.b16 %v2715, %v2714
        %v2816 = vpack.c.b16 %v2717, %v2716
        %v2817 = vpack.c.b16 %v2719, %v2718
        %v2818 = vpack.c.b16 %v2721, %v2720
        %v2819 = vpack.c.b16 %v2723, %v2722
        %v2820 = vpack.c.b16 %v2725, %v2724
        %v2821 = vpack.c.b16 %v2727, %v2726
        %v2822 = vpack.c.b16 %v2729, %v2728
        %v2823 = vpack.c.b16 %v2731, %v2730
        %v2824 = vpack.c.b16 %v2733, %v2732
        %v2825 = vpack.c.b16 %v2735, %v2734
        %v2826 = vpack.c.b16 %v2737, %v2736
        %v2827 = vpack.c.b16 %v2739, %v2738
        %v2828 = vpack.c.b16 %v2741, %v2740
        %v2829 = vpack.c.b16 %v2743, %v2742
        %v2830 = vpack.c.b16 %v2745, %v2744
        %v2831 = vpack.c.b16 %v2747, %v2746
        %v2832 = vpack.c.b16 %v2749, %v2748
        %v2833 = vpack.c.b16 %v2751, %v2750
        %v2834 = vpack.c.b16 %v2753, %v2752
        %v2835 = vpack.c.b16 %v2755, %v2754
        %v2836 = vpack.c.b16 %v2757, %v2756
        %v2837 = vpack.c.b16 %v2759, %v2758
        %v2838 = vpack.c.b16 %v2761, %v2760
        %v2839 = vpack.c.b16 %v2763, %v2762
        %v2840 = vpack.c.b16 %v2765, %v2764
        %v2841 = vpack.c.b16 %v2767, %v2766
        %v2842 = vpack.c.b16 %v2769, %v2768
        %v2843 = vpack.c.b16 %v2771, %v2770
        %2916 = vmatprep.subr.bf16.mxu0 0
        %2917 = vmatpush1.bf16.msra.mxu0 %v2779
        %2918 = vmatprep.subr.bf16.mxu0 0
        %2919 = vmatpush1.bf16.msra.mxu0 %v2778
        %2920 = vmatprep.subr.bf16.mxu0 0
        %2921 = vmatpush1.bf16.msra.mxu0 %v2777
        %2922 = vmatprep.subr.bf16.mxu0 0
        %2923 = vmatpush1.bf16.msra.mxu0 %v2776
        %2924 = vmatprep.subr.bf16.mxu0 0
        %2925 = vmatpush1.bf16.msra.mxu0 %v2775
        %2926 = vmatprep.subr.bf16.mxu0 0
        %2927 = vmatpush1.bf16.msra.mxu0 %v2774
        %2928 = vmatprep.subr.bf16.mxu0 0
        %2929 = vmatpush1.bf16.msra.mxu0 %v2773
        %2930 = vmatprep.subr.bf16.mxu0 0
        %2931 = vmatpush1.bf16.msra.mxu0 %v2772
        %2932 = vmatprep.subr.bf16.mxu0 0
        %2933 = vmatpush2.bf16.msra.mxu0 %v2787
        %2934 = vmatprep.subr.bf16.mxu0 0
        %2935 = vmatpush2.bf16.msra.mxu0 %v2786
        %2936 = vmatprep.subr.bf16.mxu0 0
        %2937 = vmatpush2.bf16.msra.mxu0 %v2785
        %2938 = vmatprep.subr.bf16.mxu0 0
        %2939 = vmatpush2.bf16.msra.mxu0 %v2784
        %2940 = vmatprep.subr.bf16.mxu0 0
        %2941 = vmatpush2.bf16.msra.mxu0 %v2783
        %2942 = vmatprep.subr.bf16.mxu0 0
        %2943 = vmatpush2.bf16.msra.mxu0 %v2782
        %2944 = vmatprep.subr.bf16.mxu0 0
        %2945 = vmatpush2.bf16.msra.mxu0 %v2781
        %2946 = vmatprep.subr.bf16.mxu0 0
        %2947 = vmatpush2.bf16.msra.mxu0 %v2780
        %2948 = vmatprep.mubr.bf16.mxu0 %v2443
        %2949 = vmatmul.mubr.bf16.gmra.mxu0 %v2442
        %v2950 = vpop.f32.mrf.mxu0
        %v2951 = vadd.f32 0.0, %v2950
        %v2952 = vpop.f32.mrf.mxu0
        %v2953 = vpop.f32.mrf.mxu0
        %v2954 = vadd.f32 0.0, %v2953
        %v2955 = vpop.f32.mrf.mxu0
        %2956 = vmatprep.mubr.bf16.mxu0 %v2446
        %2957 = vmatmul.mubr.bf16.gmra.mxu0 %v2445
        %v2958 = vpop.f32.mrf.mxu0
        %v2959 = vadd.f32 0.0, %v2958
        %v2960 = vpop.f32.mrf.mxu0
        %v2961 = vpop.f32.mrf.mxu0
        %v2962 = vadd.f32 0.0, %v2961
        %v2963 = vpop.f32.mrf.mxu0
        %2964 = vmatprep.mubr.bf16.mxu0 %v2449
        %2965 = vmatmul.mubr.bf16.gmra.mxu0 %v2448
        %v2966 = vpop.f32.mrf.mxu0
        %v2967 = vadd.f32 0.0, %v2966
        %v2968 = vpop.f32.mrf.mxu0
        %v2969 = vpop.f32.mrf.mxu0
        %v2970 = vadd.f32 0.0, %v2969
        %v2971 = vpop.f32.mrf.mxu0
        %2972 = vmatprep.mubr.bf16.mxu0 %v2452
        %2973 = vmatmul.mubr.bf16.gmra.mxu0 %v2451
        %v2974 = vpop.f32.mrf.mxu0
        %v2975 = vadd.f32 0.0, %v2974
        %v2976 = vpop.f32.mrf.mxu0
        %v2977 = vpop.f32.mrf.mxu0
        %v2978 = vadd.f32 0.0, %v2977
        %v2979 = vpop.f32.mrf.mxu0
        %2980 = vmatprep.mubr.bf16.mxu0 %v2455
        %2981 = vmatmul.mubr.bf16.gmra.mxu0 %v2454
        %v2982 = vpop.f32.mrf.mxu0
        %v2983 = vadd.f32 0.0, %v2982
        %v2984 = vpop.f32.mrf.mxu0
        %v2985 = vpop.f32.mrf.mxu0
        %v2986 = vadd.f32 0.0, %v2985
        %v2987 = vpop.f32.mrf.mxu0
        %2988 = vmatprep.mubr.bf16.mxu0 %v2458
        %2989 = vmatmul.mubr.bf16.gmra.mxu0 %v2457
        %v2990 = vpop.f32.mrf.mxu0
        %v2991 = vadd.f32 0.0, %v2990
        %v2992 = vpop.f32.mrf.mxu0
        %v2993 = vpop.f32.mrf.mxu0
        %v2994 = vadd.f32 0.0, %v2993
        %v2995 = vpop.f32.mrf.mxu0
        %2996 = vmatprep.mubr.bf16.mxu0 %v2461
        %2997 = vmatmul.mubr.bf16.gmra.mxu0 %v2460
        %v2998 = vpop.f32.mrf.mxu0
        %v2999 = vadd.f32 0.0, %v2998
        %v3000 = vpop.f32.mrf.mxu0
        %v3001 = vpop.f32.mrf.mxu0
        %v3002 = vadd.f32 0.0, %v3001
        %v3003 = vpop.f32.mrf.mxu0
        %3004 = vmatprep.mubr.bf16.mxu0 %v2464
        %3005 = vmatmul.mubr.bf16.gmra.mxu0 %v2463
        %v3006 = vpop.f32.mrf.mxu0
        %v3007 = vadd.f32 0.0, %v3006
        %v3008 = vpop.f32.mrf.mxu0
        %v3009 = vpop.f32.mrf.mxu0
        %v3010 = vadd.f32 0.0, %v3009
        %v3011 = vpop.f32.mrf.mxu0
        %3012 = vmatprep.mubr.bf16.mxu0 %v2467
        %3013 = vmatmul.mubr.bf16.gmra.mxu0 %v2466
        %v3014 = vpop.f32.mrf.mxu0
        %v3015 = vadd.f32 0.0, %v3014
        %v3016 = vpop.f32.mrf.mxu0
        %v3017 = vpop.f32.mrf.mxu0
        %v3018 = vadd.f32 0.0, %v3017
        %v3019 = vpop.f32.mrf.mxu0
        %3020 = vmatprep.mubr.bf16.mxu0 %v2470
        %3021 = vmatmul.mubr.bf16.gmra.mxu0 %v2469
        %v3022 = vpop.f32.mrf.mxu0
        %v3023 = vadd.f32 0.0, %v3022
        %v3024 = vpop.f32.mrf.mxu0
        %v3025 = vpop.f32.mrf.mxu0
        %v3026 = vadd.f32 0.0, %v3025
        %v3027 = vpop.f32.mrf.mxu0
        %3028 = vmatprep.mubr.bf16.mxu0 %v2473
        %3029 = vmatmul.mubr.bf16.gmra.mxu0 %v2472
        %v3030 = vpop.f32.mrf.mxu0
        %v3031 = vadd.f32 0.0, %v3030
        %v3032 = vpop.f32.mrf.mxu0
        %v3033 = vpop.f32.mrf.mxu0
        %v3034 = vadd.f32 0.0, %v3033
        %v3035 = vpop.f32.mrf.mxu0
        %3036 = vmatprep.mubr.bf16.mxu0 %v2476
        %3037 = vmatmul.mubr.bf16.gmra.mxu0 %v2475
        %v3038 = vpop.f32.mrf.mxu0
        %v3039 = vadd.f32 0.0, %v3038
        %v3040 = vpop.f32.mrf.mxu0
        %v3041 = vpop.f32.mrf.mxu0
        %v3042 = vadd.f32 0.0, %v3041
        %v3043 = vpop.f32.mrf.mxu0
        %3044 = vdwg.mxu0
        %3045 = vmatprep.subr.bf16.mxu0 0
        %3046 = vmatpush1.bf16.msra.mxu0 %v2795
        %3047 = vmatprep.subr.bf16.mxu0 0
        %3048 = vmatpush1.bf16.msra.mxu0 %v2794
        %3049 = vmatprep.subr.bf16.mxu0 0
        %3050 = vmatpush1.bf16.msra.mxu0 %v2793
        %3051 = vmatprep.subr.bf16.mxu0 0
        %3052 = vmatpush1.bf16.msra.mxu0 %v2792
        %3053 = vmatprep.subr.bf16.mxu0 0
        %3054 = vmatpush1.bf16.msra.mxu0 %v2791
        %3055 = vmatprep.subr.bf16.mxu0 0
        %3056 = vmatpush1.bf16.msra.mxu0 %v2790
        %3057 = vmatprep.subr.bf16.mxu0 0
        %3058 = vmatpush1.bf16.msra.mxu0 %v2789
        %3059 = vmatprep.subr.bf16.mxu0 0
        %3060 = vmatpush1.bf16.msra.mxu0 %v2788
        %3061 = vmatprep.subr.bf16.mxu0 0
        %3062 = vmatpush2.bf16.msra.mxu0 %v2803
        %3063 = vmatprep.subr.bf16.mxu0 0
        %3064 = vmatpush2.bf16.msra.mxu0 %v2802
        %3065 = vmatprep.subr.bf16.mxu0 0
        %3066 = vmatpush2.bf16.msra.mxu0 %v2801
        %3067 = vmatprep.subr.bf16.mxu0 0
        %3068 = vmatpush2.bf16.msra.mxu0 %v2800
        %3069 = vmatprep.subr.bf16.mxu0 0
        %3070 = vmatpush2.bf16.msra.mxu0 %v2799
        %3071 = vmatprep.subr.bf16.mxu0 0
        %3072 = vmatpush2.bf16.msra.mxu0 %v2798
        %3073 = vmatprep.subr.bf16.mxu0 0
        %3074 = vmatpush2.bf16.msra.mxu0 %v2797
        %3075 = vmatprep.subr.bf16.mxu0 0
        %3076 = vmatpush2.bf16.msra.mxu0 %v2796
        %3077 = vmatprep.mubr.bf16.mxu0 %v2445
        %3078 = vmatmul.mubr.bf16.gmra.mxu0 %v2444
        %v3079 = vpop.f32.mrf.mxu0
        %v3080 = vadd.f32 %v2951, %v3079
        %v3081 = vpop.f32.mrf.mxu0
        %v3082 = vpop.f32.mrf.mxu0
        %v3083 = vadd.f32 %v2954, %v3082
        %v3084 = vpop.f32.mrf.mxu0
        %3085 = vmatprep.mubr.bf16.mxu0 %v2448
        %3086 = vmatmul.mubr.bf16.gmra.mxu0 %v2447
        %v3087 = vpop.f32.mrf.mxu0
        %v3088 = vadd.f32 %v2959, %v3087
        %v3089 = vpop.f32.mrf.mxu0
        %v3090 = vpop.f32.mrf.mxu0
        %v3091 = vadd.f32 %v2962, %v3090
        %v3092 = vpop.f32.mrf.mxu0
        %3093 = vmatprep.mubr.bf16.mxu0 %v2451
        %3094 = vmatmul.mubr.bf16.gmra.mxu0 %v2450
        %v3095 = vpop.f32.mrf.mxu0
        %v3096 = vadd.f32 %v2967, %v3095
        %v3097 = vpop.f32.mrf.mxu0
        %v3098 = vpop.f32.mrf.mxu0
        %v3099 = vadd.f32 %v2970, %v3098
        %v3100 = vpop.f32.mrf.mxu0
        %3101 = vmatprep.mubr.bf16.mxu0 %v2454
        %3102 = vmatmul.mubr.bf16.gmra.mxu0 %v2453
        %v3103 = vpop.f32.mrf.mxu0
        %v3104 = vadd.f32 %v2975, %v3103
        %v3105 = vpop.f32.mrf.mxu0
        %v3106 = vpop.f32.mrf.mxu0
        %v3107 = vadd.f32 %v2978, %v3106
        %v3108 = vpop.f32.mrf.mxu0
        %3109 = vmatprep.mubr.bf16.mxu0 %v2457
        %3110 = vmatmul.mubr.bf16.gmra.mxu0 %v2456
        %v3111 = vpop.f32.mrf.mxu0
        %v3112 = vadd.f32 %v2983, %v3111
        %v3113 = vpop.f32.mrf.mxu0
        %v3114 = vpop.f32.mrf.mxu0
        %v3115 = vadd.f32 %v2986, %v3114
        %v3116 = vpop.f32.mrf.mxu0
        %3117 = vmatprep.mubr.bf16.mxu0 %v2460
        %3118 = vmatmul.mubr.bf16.gmra.mxu0 %v2459
        %v3119 = vpop.f32.mrf.mxu0
        %v3120 = vadd.f32 %v2991, %v3119
        %v3121 = vpop.f32.mrf.mxu0
        %v3122 = vpop.f32.mrf.mxu0
        %v3123 = vadd.f32 %v2994, %v3122
        %v3124 = vpop.f32.mrf.mxu0
        %3125 = vmatprep.mubr.bf16.mxu0 %v2463
        %3126 = vmatmul.mubr.bf16.gmra.mxu0 %v2462
        %v3127 = vpop.f32.mrf.mxu0
        %v3128 = vadd.f32 %v2999, %v3127
        %v3129 = vpop.f32.mrf.mxu0
        %v3130 = vpop.f32.mrf.mxu0
        %v3131 = vadd.f32 %v3002, %v3130
        %v3132 = vpop.f32.mrf.mxu0
        %3133 = vmatprep.mubr.bf16.mxu0 %v2466
        %3134 = vmatmul.mubr.bf16.gmra.mxu0 %v2465
        %v3135 = vpop.f32.mrf.mxu0
        %v3136 = vadd.f32 %v3007, %v3135
        %v3137 = vpop.f32.mrf.mxu0
        %v3138 = vpop.f32.mrf.mxu0
        %v3139 = vadd.f32 %v3010, %v3138
        %v3140 = vpop.f32.mrf.mxu0
        %3141 = vmatprep.mubr.bf16.mxu0 %v2469
        %3142 = vmatmul.mubr.bf16.gmra.mxu0 %v2468
        %v3143 = vpop.f32.mrf.mxu0
        %v3144 = vadd.f32 %v3015, %v3143
        %v3145 = vpop.f32.mrf.mxu0
        %v3146 = vpop.f32.mrf.mxu0
        %v3147 = vadd.f32 %v3018, %v3146
        %v3148 = vpop.f32.mrf.mxu0
        %3149 = vmatprep.mubr.bf16.mxu0 %v2472
        %3150 = vmatmul.mubr.bf16.gmra.mxu0 %v2471
        %v3151 = vpop.f32.mrf.mxu0
        %v3152 = vadd.f32 %v3023, %v3151
        %v3153 = vpop.f32.mrf.mxu0
        %v3154 = vpop.f32.mrf.mxu0
        %v3155 = vadd.f32 %v3026, %v3154
        %v3156 = vpop.f32.mrf.mxu0
        %3157 = vmatprep.mubr.bf16.mxu0 %v2475
        %3158 = vmatmul.mubr.bf16.gmra.mxu0 %v2474
        %v3159 = vpop.f32.mrf.mxu0
        %v3160 = vadd.f32 %v3031, %v3159
        %v3161 = vpop.f32.mrf.mxu0
        %v3162 = vpop.f32.mrf.mxu0
        %v3163 = vadd.f32 %v3034, %v3162
        %v3164 = vpop.f32.mrf.mxu0
        %3165 = vmatprep.mubr.bf16.mxu0 %v2478
        %3166 = vmatmul.mubr.bf16.gmra.mxu0 %v2477
        %v3167 = vpop.f32.mrf.mxu0
        %v3168 = vadd.f32 %v3039, %v3167
        %v3169 = vpop.f32.mrf.mxu0
        %v3170 = vpop.f32.mrf.mxu0
        %v3171 = vadd.f32 %v3042, %v3170
        %v3172 = vpop.f32.mrf.mxu0
        %3173 = vdwg.mxu0
        %3174 = vmatprep.subr.bf16.mxu0 0
        %3175 = vmatpush1.bf16.msra.mxu0 %v2811
        %3176 = vmatprep.subr.bf16.mxu0 0
        %3177 = vmatpush1.bf16.msra.mxu0 %v2810
        %3178 = vmatprep.subr.bf16.mxu0 0
        %3179 = vmatpush1.bf16.msra.mxu0 %v2809
        %3180 = vmatprep.subr.bf16.mxu0 0
        %3181 = vmatpush1.bf16.msra.mxu0 %v2808
        %3182 = vmatprep.subr.bf16.mxu0 0
        %3183 = vmatpush1.bf16.msra.mxu0 %v2807
        %3184 = vmatprep.subr.bf16.mxu0 0
        %3185 = vmatpush1.bf16.msra.mxu0 %v2806
        %3186 = vmatprep.subr.bf16.mxu0 0
        %3187 = vmatpush1.bf16.msra.mxu0 %v2805
        %3188 = vmatprep.subr.bf16.mxu0 0
        %3189 = vmatpush1.bf16.msra.mxu0 %v2804
        %3190 = vmatprep.subr.bf16.mxu0 0
        %3191 = vmatpush2.bf16.msra.mxu0 %v2819
        %3192 = vmatprep.subr.bf16.mxu0 0
        %3193 = vmatpush2.bf16.msra.mxu0 %v2818
        %3194 = vmatprep.subr.bf16.mxu0 0
        %3195 = vmatpush2.bf16.msra.mxu0 %v2817
        %3196 = vmatprep.subr.bf16.mxu0 0
        %3197 = vmatpush2.bf16.msra.mxu0 %v2816
        %3198 = vmatprep.subr.bf16.mxu0 0
        %3199 = vmatpush2.bf16.msra.mxu0 %v2815
        %3200 = vmatprep.subr.bf16.mxu0 0
        %3201 = vmatpush2.bf16.msra.mxu0 %v2814
        %3202 = vmatprep.subr.bf16.mxu0 0
        %3203 = vmatpush2.bf16.msra.mxu0 %v2813
        %3204 = vmatprep.subr.bf16.mxu0 0
        %3205 = vmatpush2.bf16.msra.mxu0 %v2812
        %3206 = vmatprep.mubr.bf16.mxu0 %v2447
        %3207 = vmatmul.mubr.bf16.gmra.mxu0 %v2446
        %v3208 = vpop.f32.mrf.mxu0
        %v3209 = vadd.f32 %v3080, %v3208
        %v3210 = vpop.f32.mrf.mxu0
        %v3211 = vpop.f32.mrf.mxu0
        %v3212 = vadd.f32 %v3083, %v3211
        %v3213 = vpop.f32.mrf.mxu0
        %3214 = vmatprep.mubr.bf16.mxu0 %v2450
        %3215 = vmatmul.mubr.bf16.gmra.mxu0 %v2449
        %v3216 = vpop.f32.mrf.mxu0
        %v3217 = vadd.f32 %v3088, %v3216
        %v3218 = vpop.f32.mrf.mxu0
        %v3219 = vpop.f32.mrf.mxu0
        %v3220 = vadd.f32 %v3091, %v3219
        %v3221 = vpop.f32.mrf.mxu0
        %3222 = vmatprep.mubr.bf16.mxu0 %v2453
        %3223 = vmatmul.mubr.bf16.gmra.mxu0 %v2452
        %v3224 = vpop.f32.mrf.mxu0
        %v3225 = vadd.f32 %v3096, %v3224
        %v3226 = vpop.f32.mrf.mxu0
        %v3227 = vpop.f32.mrf.mxu0
        %v3228 = vadd.f32 %v3099, %v3227
        %v3229 = vpop.f32.mrf.mxu0
        %3230 = vmatprep.mubr.bf16.mxu0 %v2456
        %3231 = vmatmul.mubr.bf16.gmra.mxu0 %v2455
        %v3232 = vpop.f32.mrf.mxu0
        %v3233 = vadd.f32 %v3104, %v3232
        %v3234 = vpop.f32.mrf.mxu0
        %v3235 = vpop.f32.mrf.mxu0
        %v3236 = vadd.f32 %v3107, %v3235
        %v3237 = vpop.f32.mrf.mxu0
        %3238 = vmatprep.mubr.bf16.mxu0 %v2459
        %3239 = vmatmul.mubr.bf16.gmra.mxu0 %v2458
        %v3240 = vpop.f32.mrf.mxu0
        %v3241 = vadd.f32 %v3112, %v3240
        %v3242 = vpop.f32.mrf.mxu0
        %v3243 = vpop.f32.mrf.mxu0
        %v3244 = vadd.f32 %v3115, %v3243
        %v3245 = vpop.f32.mrf.mxu0
        %3246 = vmatprep.mubr.bf16.mxu0 %v2462
        %3247 = vmatmul.mubr.bf16.gmra.mxu0 %v2461
        %v3248 = vpop.f32.mrf.mxu0
        %v3249 = vadd.f32 %v3120, %v3248
        %v3250 = vpop.f32.mrf.mxu0
        %v3251 = vpop.f32.mrf.mxu0
        %v3252 = vadd.f32 %v3123, %v3251
        %v3253 = vpop.f32.mrf.mxu0
        %3254 = vmatprep.mubr.bf16.mxu0 %v2465
        %3255 = vmatmul.mubr.bf16.gmra.mxu0 %v2464
        %v3256 = vpop.f32.mrf.mxu0
        %v3257 = vadd.f32 %v3128, %v3256
        %v3258 = vpop.f32.mrf.mxu0
        %v3259 = vpop.f32.mrf.mxu0
        %v3260 = vadd.f32 %v3131, %v3259
        %v3261 = vpop.f32.mrf.mxu0
        %3262 = vmatprep.mubr.bf16.mxu0 %v2468
        %3263 = vmatmul.mubr.bf16.gmra.mxu0 %v2467
        %v3264 = vpop.f32.mrf.mxu0
        %v3265 = vadd.f32 %v3136, %v3264
        %v3266 = vpop.f32.mrf.mxu0
        %v3267 = vpop.f32.mrf.mxu0
        %v3268 = vadd.f32 %v3139, %v3267
        %v3269 = vpop.f32.mrf.mxu0
        %3270 = vmatprep.mubr.bf16.mxu0 %v2471
        %3271 = vmatmul.mubr.bf16.gmra.mxu0 %v2470
        %v3272 = vpop.f32.mrf.mxu0
        %v3273 = vadd.f32 %v3144, %v3272
        %v3274 = vpop.f32.mrf.mxu0
        %v3275 = vpop.f32.mrf.mxu0
        %v3276 = vadd.f32 %v3147, %v3275
        %v3277 = vpop.f32.mrf.mxu0
        %3278 = vmatprep.mubr.bf16.mxu0 %v2474
        %3279 = vmatmul.mubr.bf16.gmra.mxu0 %v2473
        %v3280 = vpop.f32.mrf.mxu0
        %v3281 = vadd.f32 %v3152, %v3280
        %v3282 = vpop.f32.mrf.mxu0
        %v3283 = vpop.f32.mrf.mxu0
        %v3284 = vadd.f32 %v3155, %v3283
        %v3285 = vpop.f32.mrf.mxu0
        %3286 = vmatprep.mubr.bf16.mxu0 %v2477
        %3287 = vmatmul.mubr.bf16.gmra.mxu0 %v2476
        %v3288 = vpop.f32.mrf.mxu0
        %v3289 = vadd.f32 %v3160, %v3288
        %v3290 = vpop.f32.mrf.mxu0
        %v3291 = vpop.f32.mrf.mxu0
        %v3292 = vadd.f32 %v3163, %v3291
        %v3293 = vpop.f32.mrf.mxu0
        %3294 = vmatprep.mubr.bf16.mxu0 %v2480
        %3295 = vmatmul.mubr.bf16.gmra.mxu0 %v2479
        %v3296 = vpop.f32.mrf.mxu0
        %v3297 = vadd.f32 %v3168, %v3296
        %v3298 = vpop.f32.mrf.mxu0
        %v3299 = vpop.f32.mrf.mxu0
        %v3300 = vadd.f32 %v3171, %v3299
        %v3301 = vpop.f32.mrf.mxu0
        %3302 = vdwg.mxu0
        %3303 = vmatprep.subr.bf16.mxu0 0
        %3304 = vmatpush1.bf16.msra.mxu0 %v2827
        %3305 = vmatprep.subr.bf16.mxu0 0
        %3306 = vmatpush1.bf16.msra.mxu0 %v2826
        %3307 = vmatprep.subr.bf16.mxu0 0
        %3308 = vmatpush1.bf16.msra.mxu0 %v2825
        %3309 = vmatprep.subr.bf16.mxu0 0
        %3310 = vmatpush1.bf16.msra.mxu0 %v2824
        %3311 = vmatprep.subr.bf16.mxu0 0
        %3312 = vmatpush1.bf16.msra.mxu0 %v2823
        %3313 = vmatprep.subr.bf16.mxu0 0
        %3314 = vmatpush1.bf16.msra.mxu0 %v2822
        %3315 = vmatprep.subr.bf16.mxu0 0
        %3316 = vmatpush1.bf16.msra.mxu0 %v2821
        %3317 = vmatprep.subr.bf16.mxu0 0
        %3318 = vmatpush1.bf16.msra.mxu0 %v2820
        %3319 = vmatprep.subr.bf16.mxu0 0
        %3320 = vmatpush2.bf16.msra.mxu0 %v2835
        %3321 = vmatprep.subr.bf16.mxu0 0
        %3322 = vmatpush2.bf16.msra.mxu0 %v2834
        %3323 = vmatprep.subr.bf16.mxu0 0
        %3324 = vmatpush2.bf16.msra.mxu0 %v2833
        %3325 = vmatprep.subr.bf16.mxu0 0
        %3326 = vmatpush2.bf16.msra.mxu0 %v2832
        %3327 = vmatprep.subr.bf16.mxu0 0
        %3328 = vmatpush2.bf16.msra.mxu0 %v2831
        %3329 = vmatprep.subr.bf16.mxu0 0
        %3330 = vmatpush2.bf16.msra.mxu0 %v2830
        %3331 = vmatprep.subr.bf16.mxu0 0
        %3332 = vmatpush2.bf16.msra.mxu0 %v2829
        %3333 = vmatprep.subr.bf16.mxu0 0
        %3334 = vmatpush2.bf16.msra.mxu0 %v2828
        %3335 = vmatprep.mubr.bf16.mxu0 %v2449
        %3336 = vmatmul.mubr.bf16.gmra.mxu0 %v2448
        %v3337 = vpop.f32.mrf.mxu0
        %v3338 = vadd.f32 %v3209, %v3337
        %v3339 = vpop.f32.mrf.mxu0
        %v3340 = vpop.f32.mrf.mxu0
        %v3341 = vadd.f32 %v3212, %v3340
        %v3342 = vpop.f32.mrf.mxu0
        %3343 = vmatprep.mubr.bf16.mxu0 %v2452
        %3344 = vmatmul.mubr.bf16.gmra.mxu0 %v2451
        %v3345 = vpop.f32.mrf.mxu0
        %v3346 = vadd.f32 %v3217, %v3345
        %v3347 = vpop.f32.mrf.mxu0
        %v3348 = vpop.f32.mrf.mxu0
        %v3349 = vadd.f32 %v3220, %v3348
        %v3350 = vpop.f32.mrf.mxu0
        %3351 = vmatprep.mubr.bf16.mxu0 %v2455
        %3352 = vmatmul.mubr.bf16.gmra.mxu0 %v2454
        %v3353 = vpop.f32.mrf.mxu0
        %v3354 = vadd.f32 %v3225, %v3353
        %v3355 = vpop.f32.mrf.mxu0
        %v3356 = vpop.f32.mrf.mxu0
        %v3357 = vadd.f32 %v3228, %v3356
        %v3358 = vpop.f32.mrf.mxu0
        %3359 = vmatprep.mubr.bf16.mxu0 %v2458
        %3360 = vmatmul.mubr.bf16.gmra.mxu0 %v2457
        %v3361 = vpop.f32.mrf.mxu0
        %v3362 = vadd.f32 %v3233, %v3361
        %v3363 = vpop.f32.mrf.mxu0
        %v3364 = vpop.f32.mrf.mxu0
        %v3365 = vadd.f32 %v3236, %v3364
        %v3366 = vpop.f32.mrf.mxu0
        %3367 = vmatprep.mubr.bf16.mxu0 %v2461
        %3368 = vmatmul.mubr.bf16.gmra.mxu0 %v2460
        %v3369 = vpop.f32.mrf.mxu0
        %v3370 = vadd.f32 %v3241, %v3369
        %v3371 = vpop.f32.mrf.mxu0
        %v3372 = vpop.f32.mrf.mxu0
        %v3373 = vadd.f32 %v3244, %v3372
        %v3374 = vpop.f32.mrf.mxu0
        %3375 = vmatprep.mubr.bf16.mxu0 %v2464
        %3376 = vmatmul.mubr.bf16.gmra.mxu0 %v2463
        %v3377 = vpop.f32.mrf.mxu0
        %v3378 = vadd.f32 %v3249, %v3377
        %v3379 = vpop.f32.mrf.mxu0
        %v3380 = vpop.f32.mrf.mxu0
        %v3381 = vadd.f32 %v3252, %v3380
        %v3382 = vpop.f32.mrf.mxu0
        %3383 = vmatprep.mubr.bf16.mxu0 %v2467
        %3384 = vmatmul.mubr.bf16.gmra.mxu0 %v2466
        %v3385 = vpop.f32.mrf.mxu0
        %v3386 = vadd.f32 %v3257, %v3385
        %v3387 = vpop.f32.mrf.mxu0
        %v3388 = vpop.f32.mrf.mxu0
        %v3389 = vadd.f32 %v3260, %v3388
        %v3390 = vpop.f32.mrf.mxu0
        %3391 = vmatprep.mubr.bf16.mxu0 %v2470
        %3392 = vmatmul.mubr.bf16.gmra.mxu0 %v2469
        %v3393 = vpop.f32.mrf.mxu0
        %v3394 = vadd.f32 %v3265, %v3393
        %v3395 = vpop.f32.mrf.mxu0
        %v3396 = vpop.f32.mrf.mxu0
        %v3397 = vadd.f32 %v3268, %v3396
        %v3398 = vpop.f32.mrf.mxu0
        %3399 = vmatprep.mubr.bf16.mxu0 %v2473
        %3400 = vmatmul.mubr.bf16.gmra.mxu0 %v2472
        %v3401 = vpop.f32.mrf.mxu0
        %v3402 = vadd.f32 %v3273, %v3401
        %v3403 = vpop.f32.mrf.mxu0
        %v3404 = vpop.f32.mrf.mxu0
        %v3405 = vadd.f32 %v3276, %v3404
        %v3406 = vpop.f32.mrf.mxu0
        %3407 = vmatprep.mubr.bf16.mxu0 %v2476
        %3408 = vmatmul.mubr.bf16.gmra.mxu0 %v2475
        %v3409 = vpop.f32.mrf.mxu0
        %v3410 = vadd.f32 %v3281, %v3409
        %v3411 = vpop.f32.mrf.mxu0
        %v3412 = vpop.f32.mrf.mxu0
        %v3413 = vadd.f32 %v3284, %v3412
        %v3414 = vpop.f32.mrf.mxu0
        %3415 = vmatprep.mubr.bf16.mxu0 %v2479
        %3416 = vmatmul.mubr.bf16.gmra.mxu0 %v2478
        %v3417 = vpop.f32.mrf.mxu0
        %v3418 = vadd.f32 %v3289, %v3417
        %v3419 = vpop.f32.mrf.mxu0
        %v3420 = vpop.f32.mrf.mxu0
        %v3421 = vadd.f32 %v3292, %v3420
        %v3422 = vpop.f32.mrf.mxu0
        %3423 = vmatprep.mubr.bf16.mxu0 %v2482
        %3424 = vmatmul.mubr.bf16.gmra.mxu0 %v2481
        %v3425 = vpop.f32.mrf.mxu0
        %v3426 = vadd.f32 %v3297, %v3425
        %v3427 = vpop.f32.mrf.mxu0
        %v3428 = vpop.f32.mrf.mxu0
        %v3429 = vadd.f32 %v3300, %v3428
        %v3430 = vpop.f32.mrf.mxu0
        %3431 = vdwg.mxu0
        %3432 = vmatprep.subr.bf16.mxu0 0
        %3433 = vmatpush1.bf16.msra.mxu0 %v2843
        %3434 = vmatprep.subr.bf16.mxu0 0
        %3435 = vmatpush1.bf16.msra.mxu0 %v2842
        %3436 = vmatprep.subr.bf16.mxu0 0
        %3437 = vmatpush1.bf16.msra.mxu0 %v2841
        %3438 = vmatprep.subr.bf16.mxu0 0
        %3439 = vmatpush1.bf16.msra.mxu0 %v2840
        %3440 = vmatprep.subr.bf16.mxu0 0
        %3441 = vmatpush1.bf16.msra.mxu0 %v2839
        %3442 = vmatprep.subr.bf16.mxu0 0
        %3443 = vmatpush1.bf16.msra.mxu0 %v2838
        %3444 = vmatprep.subr.bf16.mxu0 0
        %3445 = vmatpush1.bf16.msra.mxu0 %v2837
        %3446 = vmatprep.subr.bf16.mxu0 0
        %3447 = vmatpush1.bf16.msra.mxu0 %v2836
        %3448 = vmatprep.subr.bf16.mxu0 0
        %3449 = vmatpush2.bf16.msra.mxu0 0
        %3450 = vmatprep.subr.bf16.mxu0 0
        %3451 = vmatpush2.bf16.msra.mxu0 0
        %3452 = vmatprep.subr.bf16.mxu0 0
        %3453 = vmatpush2.bf16.msra.mxu0 0
        %3454 = vmatprep.subr.bf16.mxu0 0
        %3455 = vmatpush2.bf16.msra.mxu0 0
        %3456 = vmatprep.subr.bf16.mxu0 0
        %3457 = vmatpush2.bf16.msra.mxu0 0
        %3458 = vmatprep.subr.bf16.mxu0 0
        %3459 = vmatpush2.bf16.msra.mxu0 0
        %3460 = vmatprep.subr.bf16.mxu0 0
        %3461 = vmatpush2.bf16.msra.mxu0 0
        %3462 = vmatprep.subr.bf16.mxu0 0
        %3463 = vmatpush2.bf16.msra.mxu0 0
        %3464 = vmatprep.mubr.bf16.mxu0 0
        %3465 = vmatmul.mubr.bf16.gmra.mxu0 %v2450
        %v3466 = vpop.f32.mrf.mxu0
        %v3467 = vadd.f32 %v3338, %v3466
        %v3468 = vpop.f32.mrf.mxu0
        %v3469 = vpop.f32.mrf.mxu0
        %v3470 = vadd.f32 %v3341, %v3469
        %v3471 = vpop.f32.mrf.mxu0
        %3472 = vmatprep.mubr.bf16.mxu0 0
        %3473 = vmatmul.mubr.bf16.gmra.mxu0 %v2453
        %v3474 = vpop.f32.mrf.mxu0
        %v3475 = vadd.f32 %v3346, %v3474
        %v3476 = vpop.f32.mrf.mxu0
        %v3477 = vpop.f32.mrf.mxu0
        %v3478 = vadd.f32 %v3349, %v3477
        %v3479 = vpop.f32.mrf.mxu0
        %3480 = vmatprep.mubr.bf16.mxu0 0
        %3481 = vmatmul.mubr.bf16.gmra.mxu0 %v2456
        %v3482 = vpop.f32.mrf.mxu0
        %v3483 = vadd.f32 %v3354, %v3482
        %v3484 = vpop.f32.mrf.mxu0
        %v3485 = vpop.f32.mrf.mxu0
        %v3486 = vadd.f32 %v3357, %v3485
        %v3487 = vpop.f32.mrf.mxu0
        %3488 = vmatprep.mubr.bf16.mxu0 0
        %3489 = vmatmul.mubr.bf16.gmra.mxu0 %v2459
        %v3490 = vpop.f32.mrf.mxu0
        %v3491 = vadd.f32 %v3362, %v3490
        %v3492 = vpop.f32.mrf.mxu0
        %v3493 = vpop.f32.mrf.mxu0
        %v3494 = vadd.f32 %v3365, %v3493
        %v3495 = vpop.f32.mrf.mxu0
        %3496 = vmatprep.mubr.bf16.mxu0 0
        %3497 = vmatmul.mubr.bf16.gmra.mxu0 %v2462
        %v3498 = vpop.f32.mrf.mxu0
        %v3499 = vadd.f32 %v3370, %v3498
        %v3500 = vpop.f32.mrf.mxu0
        %v3501 = vpop.f32.mrf.mxu0
        %v3502 = vadd.f32 %v3373, %v3501
        %v3503 = vpop.f32.mrf.mxu0
        %3504 = vmatprep.mubr.bf16.mxu0 0
        %3505 = vmatmul.mubr.bf16.gmra.mxu0 %v2465
        %v3506 = vpop.f32.mrf.mxu0
        %v3507 = vadd.f32 %v3378, %v3506
        %v3508 = vpop.f32.mrf.mxu0
        %v3509 = vpop.f32.mrf.mxu0
        %v3510 = vadd.f32 %v3381, %v3509
        %v3511 = vpop.f32.mrf.mxu0
        %3512 = vmatprep.mubr.bf16.mxu0 0
        %3513 = vmatmul.mubr.bf16.gmra.mxu0 %v2468
        %v3514 = vpop.f32.mrf.mxu0
        %v3515 = vadd.f32 %v3386, %v3514
        %v3516 = vpop.f32.mrf.mxu0
        %v3517 = vpop.f32.mrf.mxu0
        %v3518 = vadd.f32 %v3389, %v3517
        %v3519 = vpop.f32.mrf.mxu0
        %3520 = vmatprep.mubr.bf16.mxu0 0
        %3521 = vmatmul.mubr.bf16.gmra.mxu0 %v2471
        %v3522 = vpop.f32.mrf.mxu0
        %v3523 = vadd.f32 %v3394, %v3522
        %v3524 = vpop.f32.mrf.mxu0
        %v3525 = vpop.f32.mrf.mxu0
        %v3526 = vadd.f32 %v3397, %v3525
        %v3527 = vpop.f32.mrf.mxu0
        %3528 = vmatprep.mubr.bf16.mxu0 0
        %3529 = vmatmul.mubr.bf16.gmra.mxu0 %v2474
        %v3530 = vpop.f32.mrf.mxu0
        %v3531 = vadd.f32 %v3402, %v3530
        %v3532 = vpop.f32.mrf.mxu0
        %v3533 = vpop.f32.mrf.mxu0
        %v3534 = vadd.f32 %v3405, %v3533
        %v3535 = vpop.f32.mrf.mxu0
        %3536 = vmatprep.mubr.bf16.mxu0 0
        %3537 = vmatmul.mubr.bf16.gmra.mxu0 %v2477
        %v3538 = vpop.f32.mrf.mxu0
        %v3539 = vadd.f32 %v3410, %v3538
        %v3540 = vpop.f32.mrf.mxu0
        %v3541 = vpop.f32.mrf.mxu0
        %v3542 = vadd.f32 %v3413, %v3541
        %v3543 = vpop.f32.mrf.mxu0
        %3544 = vmatprep.mubr.bf16.mxu0 0
        %3545 = vmatmul.mubr.bf16.gmra.mxu0 %v2480
        %v3546 = vpop.f32.mrf.mxu0
        %v3547 = vadd.f32 %v3418, %v3546
        %v3548 = vpop.f32.mrf.mxu0
        %v3549 = vpop.f32.mrf.mxu0
        %v3550 = vadd.f32 %v3421, %v3549
        %v3551 = vpop.f32.mrf.mxu0
        %3552 = vmatprep.mubr.bf16.mxu0 0
        %3553 = vmatmul.mubr.bf16.gmra.mxu0 %v2483
        %v3554 = vpop.f32.mrf.mxu0
        %v3555 = vadd.f32 %v3426, %v3554
        %v3556 = vpop.f32.mrf.mxu0
        %v3557 = vpop.f32.mrf.mxu0
        %v3558 = vadd.f32 %v3429, %v3557
        %v3559 = vpop.f32.mrf.mxu0
        %3560 = vdwg.mxu0
        %v3561 = vld [vmem:[%s5] sm:$0x1]
        %v3563 = vlaneseq
        %v3564 = vshrl.u32 %v3563, 7
        %v3565 = vsub.s32 0, %v3564
        %v3566 = vrot.slane %v3561, %v3565
        %v3568 = vmul.f32 %v3467, %v3566
        %v3569 = vmul.f32 %v3470, %v3566
        %v3570 = vmul.f32 %v3475, %v3566
        %v3571 = vmul.f32 %v3478, %v3566
        %v3572 = vmul.f32 %v3483, %v3566
        %v3573 = vmul.f32 %v3486, %v3566
        %v3574 = vmul.f32 %v3491, %v3566
        %v3575 = vmul.f32 %v3494, %v3566
        %v3576 = vmul.f32 %v3499, %v3566
        %v3577 = vmul.f32 %v3502, %v3566
        %v3578 = vmul.f32 %v3507, %v3566
        %v3579 = vmul.f32 %v3510, %v3566
        %v3580 = vmul.f32 %v3515, %v3566
        %v3581 = vmul.f32 %v3518, %v3566
        %v3582 = vmul.f32 %v3523, %v3566
        %v3583 = vmul.f32 %v3526, %v3566
        %v3584 = vmul.f32 %v3531, %v3566
        %v3585 = vmul.f32 %v3534, %v3566
        %v3586 = vmul.f32 %v3539, %v3566
        %v3587 = vmul.f32 %v3542, %v3566
        %v3588 = vmul.f32 %v3547, %v3566
        %v3589 = vmul.f32 %v3550, %v3566
        %v3590 = vmul.f32 %v3555, %v3566
        %v3591 = vmul.f32 %v3558, %v3566
        %v3592 = vld [vmem:[%s6] sm:$0x1]
        %v3594 = vlaneseq
        %v3595 = vshrl.u32 %v3594, 7
        %v3596 = vsub.s32 0, %v3595
        %v3597 = vrot.slane %v3592, %v3596
        %v3599 = vadd.f32 %v3568, %v3597
        %v3600 = vadd.f32 %v3569, %v3597
        %v3601 = vadd.f32 %v3570, %v3597
        %v3602 = vadd.f32 %v3571, %v3597
        %v3603 = vadd.f32 %v3572, %v3597
        %v3604 = vadd.f32 %v3573, %v3597
        %v3605 = vadd.f32 %v3574, %v3597
        %v3606 = vadd.f32 %v3575, %v3597
        %v3607 = vadd.f32 %v3576, %v3597
        %v3608 = vadd.f32 %v3577, %v3597
        %v3609 = vadd.f32 %v3578, %v3597
        %v3610 = vadd.f32 %v3579, %v3597
        %v3611 = vadd.f32 %v3580, %v3597
        %v3612 = vadd.f32 %v3581, %v3597
        %v3613 = vadd.f32 %v3582, %v3597
        %v3614 = vadd.f32 %v3583, %v3597
        %v3615 = vadd.f32 %v3584, %v3597
        %v3616 = vadd.f32 %v3585, %v3597
        %v3617 = vadd.f32 %v3586, %v3597
        %v3618 = vadd.f32 %v3587, %v3597
        %v3619 = vadd.f32 %v3588, %v3597
        %v3620 = vadd.f32 %v3589, %v3597
        %v3621 = vadd.f32 %v3590, %v3597
        %v3622 = vadd.f32 %v3591, %v3597
        %v3623 = vmax.f32 %v3599, 0.0
        %v3624 = vmax.f32 %v3600, 0.0
        %v3625 = vmax.f32 %v3601, 0.0
        %v3626 = vmax.f32 %v3602, 0.0
        %v3627 = vmax.f32 %v3603, 0.0
        %v3628 = vmax.f32 %v3604, 0.0
        %v3629 = vmax.f32 %v3605, 0.0
        %v3630 = vmax.f32 %v3606, 0.0
        %v3631 = vmax.f32 %v3607, 0.0
        %v3632 = vmax.f32 %v3608, 0.0
        %v3633 = vmax.f32 %v3609, 0.0
        %v3634 = vmax.f32 %v3610, 0.0
        %v3635 = vmax.f32 %v3611, 0.0
        %v3636 = vmax.f32 %v3612, 0.0
        %v3637 = vmax.f32 %v3613, 0.0
        %v3638 = vmax.f32 %v3614, 0.0
        %v3639 = vmax.f32 %v3615, 0.0
        %v3640 = vmax.f32 %v3616, 0.0
        %v3641 = vmax.f32 %v3617, 0.0
        %v3642 = vmax.f32 %v3618, 0.0
        %v3643 = vmax.f32 %v3619, 0.0
        %v3644 = vmax.f32 %v3620, 0.0
        %v3645 = vmax.f32 %v3621, 0.0
        %v3646 = vmax.f32 %v3622, 0.0
        %v3647 = vmax.f32 %v3623, 0.0
        %v3648 = vmax.f32 %v3624, 0.0
        %v3649 = vmax.f32 %v3625, 0.0
        %v3650 = vmax.f32 %v3626, 0.0
        %v3651 = vmax.f32 %v3627, 0.0
        %v3652 = vmax.f32 %v3628, 0.0
        %v3653 = vmax.f32 %v3629, 0.0
        %v3654 = vmax.f32 %v3630, 0.0
        %v3655 = vmax.f32 %v3631, 0.0
        %v3656 = vmax.f32 %v3632, 0.0
        %v3657 = vmax.f32 %v3633, 0.0
        %v3658 = vmax.f32 %v3634, 0.0
        %v3659 = vmax.f32 %v3635, 0.0
        %v3660 = vmax.f32 %v3636, 0.0
        %v3661 = vmax.f32 %v3637, 0.0
        %v3662 = vmax.f32 %v3638, 0.0
        %v3663 = vmax.f32 %v3639, 0.0
        %v3664 = vmax.f32 %v3640, 0.0
        %v3665 = vmax.f32 %v3641, 0.0
        %v3666 = vmax.f32 %v3642, 0.0
        %v3667 = vmax.f32 %v3643, 0.0
        %v3668 = vmax.f32 %v3644, 0.0
        %v3669 = vmax.f32 %v3645, 0.0
        %v3670 = vmax.f32 %v3646, 0.0
        %3671 = vst [vmem:[%s327] sm:$0xff] %v3647
        %3672 = vst [vmem:[%s327 + $0x8] sm:$0xf] %v3648
        %3673 = vst [vmem:[%s327 + $0x10] sm:$0xff] %v3649
        %3674 = vst [vmem:[%s327 + $0x18] sm:$0xf] %v3650
        %3675 = vst [vmem:[%s327 + $0x20] sm:$0xff] %v3651
        %3676 = vst [vmem:[%s327 + $0x28] sm:$0xf] %v3652
        %3677 = vst [vmem:[%s327 + $0x30] sm:$0xff] %v3653
        %3678 = vst [vmem:[%s327 + $0x38] sm:$0xf] %v3654
        %3679 = vst [vmem:[%s327 + $0x40] sm:$0xff] %v3655
        %3680 = vst [vmem:[%s327 + $0x48] sm:$0xf] %v3656
        %3681 = vst [vmem:[%s327 + $0x50] sm:$0xff] %v3657
        %3682 = vst [vmem:[%s327 + $0x58] sm:$0xf] %v3658
        %3683 = vst [vmem:[%s327 + $0x60] sm:$0xff] %v3659
        %3684 = vst [vmem:[%s327 + $0x68] sm:$0xf] %v3660
        %3685 = vst [vmem:[%s327 + $0x70] sm:$0xff] %v3661
        %3686 = vst [vmem:[%s327 + $0x78] sm:$0xf] %v3662
        %3687 = vst [vmem:[%s327 + $0x80] sm:$0xff] %v3663
        %3688 = vst [vmem:[%s327 + $0x88] sm:$0xf] %v3664
        %3689 = vst [vmem:[%s327 + $0x90] sm:$0xff] %v3665
        %3690 = vst [vmem:[%s327 + $0x98] sm:$0xf] %v3666
        %3691 = vst [vmem:[%s327 + $0xa0] sm:$0xff] %v3667
        %3692 = vst [vmem:[%s327 + $0xa8] sm:$0xf] %v3668
        %3693 = vst [vmem:[%s327 + $0xb0] sm:$0xff] %v3669
        %3694 = vst [vmem:[%s327 + $0xb8] sm:$0xf] %v3670
        %p3695 = scmp.lt.s32.totalorder %s22, 1
        %s3696 = scalar_select %p3695, %s22, 1
        %s3697 = smul.addr %s3696, 24
        %s3698 = smul.addr %s3697, 8
        %s3699 = scalar_lea.vmem %s7, %s3698
        // Predicated region
        $region61: #{tpu_custom_call.1} parent=47 // pred_check
          %p3700 = pneg %p192
        $region62: #{tpu_custom_call.1} parent=47 // pred_check_branch
          %3702 = sbr.rel (%p3700) target = $region64
        $region63: #{tpu_custom_call.1} parent=47 // pred_region
          _
        $region64: #{tpu_custom_call.1} parent=47 // pred_fallthru
          _
      $region48: #{tpu_custom_call.1} parent=5 // pred_fallthru
        _
      %p3703 = scmp.le.s32.totalorder 2, %s17
      // Predicated region
      $region65: #{tpu_custom_call.1} parent=5 // pred_check
        %p3704 = pneg %p3703
      $region66: #{tpu_custom_call.1} parent=5 // pred_check_branch
        %3706 = sbr.rel (%p3704) target = $region68
      $region67: #{tpu_custom_call.1} parent=5 // pred_region
        %s3707 = ssub.s32 %s17, 2
        // Predicated region
        $region69: #{tpu_custom_call.1} parent=67 // pred_check
          %p3708 = pneg %p198
        $region70: #{tpu_custom_call.1} parent=67 // pred_check_branch
          %3710 = sbr.rel (%p3708) target = $region72
        $region71: #{tpu_custom_call.1} parent=67 // pred_region
          %p3711 = scmp.lt.s32.totalorder %s23, 1
          %s3712 = scalar_select %p3711, %s23, 1
          %s3713 = smul.addr %s3712, 24
          %s3714 = smul.addr %s3713, 8
          %s3715 = scalar_lea.vmem %s7, %s3714
        $region72: #{tpu_custom_call.1} parent=67 // pred_fallthru
          _
      $region68: #{tpu_custom_call.1} parent=5 // pred_fallthru
        _
    $region6: #{tpu_custom_call.1} parent=1 // loop_footer
      %s21 = sadd.s32 1, %s17
    $region7: #{tpu_custom_call.1} parent=1 // loop_footer_branch
      %16 = sbr.rel target = $region3
    $region8: #{tpu_custom_call.1} parent=1 // loop_exit
      _
    %3716 = vsyncpa [#allocation3], 1
    %s3717 = scalar_lea.sflag [#allocation3], 1
    %3718 = vsyncpa %s3717, 1
    %3719 = vsyncpa [#allocation5], 1

</llo_original>
